<compile_context>
chip_gen: v5e
topology: v5e:2x2
jax: 0.10.0
libtpu: 0.0.40
codegen_flags: <defaults>
</compile_context>

<pallas_src>
import functools

import jax
import jax.numpy as jnp
from jax import lax
from jax.experimental import pallas as pl
from jax.experimental.pallas import tpu as pltpu


# ----------------------------------------------------------------------------
# Kernel: fused scaled-dot-product attention for a block of batch*head rows.
#   q_ref, k_ref : (Bb, L, Dk)
#   v_ref        : (Bb, L, Dv)
#   o_ref        : (Bb, L, Dv)   output = attn @ v
#   attn_ref     : (Bb, L, L)    softmax attention weights
# ----------------------------------------------------------------------------
def sdpa_kernel(q_ref, k_ref, v_ref, o_ref, attn_ref, *, inv_temperature):
    q = q_ref[...]                                   # (Bb, L, Dk)
    k = k_ref[...]                                   # (Bb, L, Dk)
    v = v_ref[...]                                   # (Bb, L, Dv)

    # scores = q @ k^T / temperature  -- one batched MXU contraction.
    s = lax.dot_general(
        q, k, (((2,), (2,)), ((0,), (0,))),
        preferred_element_type=jnp.float32) * inv_temperature      # (Bb, L, L)

    # softmax over keys (dim=2), numerically stabilized (matches torch.softmax).
    s = s - jnp.max(s, axis=-1, keepdims=True)
    p = jnp.exp(s)
    denom = jnp.sum(p, axis=-1, keepdims=True)
    attn = p * pl.reciprocal(denom, approx=True)                   # EUP reciprocal

    attn_ref[...] = attn.astype(attn_ref.dtype)

    # output = attn @ v  -- one batched MXU contraction.
    out = lax.dot_general(
        attn.astype(v.dtype), v, (((2,), (1,)), ((0,), (0,))),
        preferred_element_type=jnp.float32)                        # (Bb, L, Dv)
    o_ref[...] = out.astype(o_ref.dtype)


# ----------------------------------------------------------------------------
# Wrapper
# ----------------------------------------------------------------------------
def scaled_dot_product_attention(q, k, v, temperature, *, block_b=None):
    """q, k: (B, L, Dk); v: (B, L, Dv). Returns (output (B,L,Dv), attn (B,L,L))."""
    B, Lq, Dk = q.shape
    _, Lk, Dv = v.shape
    assert k.shape == (B, Lk, Dk)
    assert Lq == Lk, "self-attention path used by the parent module"

    if block_b is None:
        # Two grid steps when possible: negligible sequential overhead on
        # v5e/v6e, and a size-2 "parallel" axis to shard across v7x's two TCs.
        block_b = B // 2 if (B % 2 == 0 and B >= 2) else B
    assert B % block_b == 0
    grid = (B // block_b,)

    kernel = functools.partial(sdpa_kernel, inv_temperature=1.0 / float(temperature))

    out, attn = pl.pallas_call(
        kernel,
        out_shape=(
            jax.ShapeDtypeStruct((B, Lq, Dv), q.dtype),
            jax.ShapeDtypeStruct((B, Lq, Lk), jnp.float32),
        ),
        grid=grid,
        in_specs=[
            pl.BlockSpec((block_b, Lq, Dk), lambda b: (b, 0, 0)),
            pl.BlockSpec((block_b, Lk, Dk), lambda b: (b, 0, 0)),
            pl.BlockSpec((block_b, Lk, Dv), lambda b: (b, 0, 0)),
        ],
        out_specs=(
            pl.BlockSpec((block_b, Lq, Dv), lambda b: (b, 0, 0)),
            pl.BlockSpec((block_b, Lq, Lk), lambda b: (b, 0, 0)),
        ),
        compiler_params=pltpu.CompilerParams(
            dimension_semantics=("parallel",)),
    )(q, k, v)
    return out, attn


# ----------------------------------------------------------------------------
# Demo / self-check
# ----------------------------------------------------------------------------
if __name__ == "__main__":
    key = jax.random.PRNGKey(0)
    kq, kk, kv = jax.random.split(key, 3)

    # Shapes as produced by the parent MultiHeadAttention: q/k/v are
    # (n_head * batch, seq_len, d_k) with temperature = sqrt(d_k).
    n_head, batch, seq_len, d_k = 8, 2, 128, 64
    B = n_head * batch
    temperature = float(d_k) ** 0.5

    q = jax.random.normal(kq, (B, seq_len, d_k), dtype=jnp.float32)
    k = jax.random.normal(kk, (B, seq_len, d_k), dtype=jnp.float32)
    v = jax.random.normal(kv, (B, seq_len, d_k), dtype=jnp.float32)

    fn = jax.jit(functools.partial(scaled_dot_product_attention,
                                   temperature=temperature))
    out, attn = fn(q, k, v)
    out, attn = jax.block_until_ready((out, attn))

    # Pure-JAX reference (loose tolerance: pl.reciprocal(approx=True)).
    attn_ref = jax.nn.softmax(
        jnp.einsum("bqd,bkd->bqk", q, k) / temperature, axis=-1)
    out_ref = jnp.einsum("bqk,bkd->bqd", attn_ref, v)

    assert out.shape == (B, seq_len, d_k), out.shape
    assert attn.shape == (B, seq_len, seq_len), attn.shape
    assert bool(jnp.allclose(attn, attn_ref, rtol=1e-2, atol=1e-2))
    assert bool(jnp.allclose(out, out_ref, rtol=1e-2, atol=1e-2))
    print("KERNEL_OK")
</pallas_src>

<mosaic_0001>
module attributes {stable_mosaic.version = 11 : i64} {
  func.func @sdpa_kernel(%arg0: i32, %arg1: memref<8x128x64xf32, #tpu.memory_space<vmem>>, %arg2: memref<8x128x64xf32, #tpu.memory_space<vmem>>, %arg3: memref<8x128x64xf32, #tpu.memory_space<vmem>>, %arg4: memref<8x128x64xf32, #tpu.memory_space<vmem>>, %arg5: memref<8x128x128xf32, #tpu.memory_space<vmem>>) attributes {dimension_semantics = [#tpu.dimension_semantics<parallel>], iteration_bounds = array<i64: 2>, scalar_prefetch = 0 : i64, scratch_operands = 0 : i64, tpu.core_type = #tpu.core_type<tc>, window_params = [{transform_indices = @transform_0, window_bounds = array<i64: 8, 128, 64>}, {transform_indices = @transform_1, window_bounds = array<i64: 8, 128, 64>}, {transform_indices = @transform_2, window_bounds = array<i64: 8, 128, 64>}, {transform_indices = @transform_3, window_bounds = array<i64: 8, 128, 64>}, {transform_indices = @transform_4, window_bounds = array<i64: 8, 128, 128>}]} {
    %c0 = arith.constant 0 : index
    %c0_0 = arith.constant 0 : index
    %c0_1 = arith.constant 0 : index
    %0 = vector.load %arg1[%c0, %c0_0, %c0_1] : memref<8x128x64xf32, #tpu.memory_space<vmem>>, vector<8x128x64xf32>
    %c0_2 = arith.constant 0 : index
    %c0_3 = arith.constant 0 : index
    %c0_4 = arith.constant 0 : index
    %1 = vector.load %arg2[%c0_2, %c0_3, %c0_4] : memref<8x128x64xf32, #tpu.memory_space<vmem>>, vector<8x128x64xf32>
    %c0_5 = arith.constant 0 : index
    %c0_6 = arith.constant 0 : index
    %c0_7 = arith.constant 0 : index
    %2 = vector.load %arg3[%c0_5, %c0_6, %c0_7] : memref<8x128x64xf32, #tpu.memory_space<vmem>>, vector<8x128x64xf32>
    %cst = arith.constant dense<0.000000e+00> : vector<8x128x128xf32>
    %3 = tpu.matmul %0, %1, %cst {dimension_numbers = #tpu.dot_dimension_numbers<[2], [2], [1], [1], [0, 0, 0, 1, 1, 1], [0], [0]>} : vector<8x128x64xf32>, vector<8x128x64xf32>, vector<8x128x128xf32> -> vector<8x128x128xf32>
    %cst_8 = arith.constant 1.250000e-01 : f32
    %4 = vector.broadcast %cst_8 : f32 to vector<8x128x128xf32>
    %5 = arith.mulf %3, %4 : vector<8x128x128xf32>
    %cst_9 = arith.constant dense<0xFF800000> : vector<8x128xf32>
    %6 = vector.multi_reduction <maximumf>, %5, %cst_9 [2] : vector<8x128x128xf32> to vector<8x128xf32>
    %7 = vector.shape_cast %6 : vector<8x128xf32> to vector<8x128x1xf32>
    %8 = vector.broadcast %7 : vector<8x128x1xf32> to vector<8x128x128xf32>
    %9 = arith.subf %5, %8 : vector<8x128x128xf32>
    %10 = math.exp %9 : vector<8x128x128xf32>
    %cst_10 = arith.constant dense<0.000000e+00> : vector<8x128xf32>
    %11 = vector.multi_reduction <add>, %10, %cst_10 [2] : vector<8x128x128xf32> to vector<8x128xf32>
    %12 = vector.shape_cast %11 : vector<8x128xf32> to vector<8x128x1xf32>
    %13 = tpu.reciprocal %12 {approx = true} : vector<8x128x1xf32> -> vector<8x128x1xf32>
    %14 = vector.broadcast %13 : vector<8x128x1xf32> to vector<8x128x128xf32>
    %15 = arith.mulf %10, %14 : vector<8x128x128xf32>
    %c0_11 = arith.constant 0 : index
    %c0_12 = arith.constant 0 : index
    %c0_13 = arith.constant 0 : index
    %16 = vector.load %arg5[%c0_11, %c0_12, %c0_13] : memref<8x128x128xf32, #tpu.memory_space<vmem>>, vector<8x128x128xf32>
    tpu.vector_store %arg5[%c0_11, %c0_12, %c0_13], %15 {strides = array<i32>} : memref<8x128x128xf32, #tpu.memory_space<vmem>>, vector<8x128x128xf32>,
    %cst_14 = arith.constant dense<0.000000e+00> : vector<8x128x64xf32>
    %17 = tpu.matmul %15, %2, %cst_14 {dimension_numbers = #tpu.dot_dimension_numbers<[2], [1], [1], [2], [0, 0, 0, 1, 1, 2], [0], [0]>} : vector<8x128x128xf32>, vector<8x128x64xf32>, vector<8x128x64xf32> -> vector<8x128x64xf32>
    %c0_15 = arith.constant 0 : index
    %c0_16 = arith.constant 0 : index
    %c0_17 = arith.constant 0 : index
    %18 = vector.load %arg4[%c0_15, %c0_16, %c0_17] : memref<8x128x64xf32, #tpu.memory_space<vmem>>, vector<8x128x64xf32>
    tpu.vector_store %arg4[%c0_15, %c0_16, %c0_17], %17 {strides = array<i32>} : memref<8x128x64xf32, #tpu.memory_space<vmem>>, vector<8x128x64xf32>,
    return
  }
  func.func @transform_0(%arg0: i32) -> (i32, i32, i32) {
    %c0_i32 = arith.constant 0 : i32
    %c0_i32_0 = arith.constant 0 : i32
    %c0_i32_1 = arith.constant 0 : i32
    return %arg0, %c0_i32, %c0_i32_0 : i32, i32, i32
  }
  func.func @transform_1(%arg0: i32) -> (i32, i32, i32) {
    %c0_i32 = arith.constant 0 : i32
    %c0_i32_0 = arith.constant 0 : i32
    %c0_i32_1 = arith.constant 0 : i32
    return %arg0, %c0_i32, %c0_i32_0 : i32, i32, i32
  }
  func.func @transform_2(%arg0: i32) -> (i32, i32, i32) {
    %c0_i32 = arith.constant 0 : i32
    %c0_i32_0 = arith.constant 0 : i32
    %c0_i32_1 = arith.constant 0 : i32
    return %arg0, %c0_i32, %c0_i32_0 : i32, i32, i32
  }
  func.func @transform_3(%arg0: i32) -> (i32, i32, i32) {
    %c0_i32 = arith.constant 0 : i32
    %c0_i32_0 = arith.constant 0 : i32
    %c0_i32_1 = arith.constant 0 : i32
    return %arg0, %c0_i32, %c0_i32_0 : i32, i32, i32
  }
  func.func @transform_4(%arg0: i32) -> (i32, i32, i32) {
    %c0_i32 = arith.constant 0 : i32
    %c0_i32_0 = arith.constant 0 : i32
    %c0_i32_1 = arith.constant 0 : i32
    return %arg0, %c0_i32, %c0_i32_0 : i32, i32, i32
  }
}

</mosaic_0001>

<llo_original>
// kernel: scaled_dot_product_attention.1
$region0: #{scaled_dot_product_attention.1}
  #allocation0 [shape = 'u32[]', space=smem, size = 0x4, offset = 0x4, fixed_abs, tag = 'smem constant byte address 0x4 - core index']
  #allocation1 [shape = 'u32[72,128]{1,0:T(1,128)}', space=vmem, size = 0x9000, scoped, tag = 'internal scratch']
  %s0 = inlined_call_operand.vmem [shape: f32[16,128,64], index: 0, kind: input, shape index: {}]
  %s1 = inlined_call_operand.vmem [shape: f32[16,128,64], index: 1, kind: input, shape index: {}]
  %s2 = inlined_call_operand.vmem [shape: f32[16,128,64], index: 2, kind: input, shape index: {}]
  %s3 = inlined_call_operand.vmem [shape: f32[16,128,64], index: 3, kind: output, shape index: {0}]
  %s4 = inlined_call_operand.hbm [shape: f32[16,128,128], index: 4, kind: output, shape index: {1}]
  %5 = xla_tuple %s3, %s4
  %s6 = sld [smem:[#allocation0]]
  $region53: #{scaled_dot_product_attention.1} parent=0
    _
  %s8 = ssub.s32 1, %s6
  %s9 = scalar_select 0, %s8, %s6
  $region1: #{scaled_dot_product_attention.1} parent=0
    #allocation2 [shape = 'u8[1048576]{0}', space=vmem, size = 0x100000, scoped, tag = 'output window, operand 1']
    #allocation3 [shape = 's32[2]{0}', space=sflag, size = 0x8, scoped, tag = 'scoped memory for scaled_dot_product_attention.1']
    %10 = vsyncpa [#allocation3], 0
    %s11 = scalar_lea.sflag [#allocation3], 1
    %12 = vsyncpa %s11, 0
    loop: start=0, step=1, limit=4
    $region2: #{scaled_dot_product_attention.1} parent=1 // loop_pre_header
      _
    $region3: #{scaled_dot_product_attention.1} parent=1 // loop_header
      %s14 = sphi 0, %s18
      %p15 = scmp.ge.s32.totalorder %s14, 4
      %s24 = sphi 0, %s26
      %s27 = sphi 0, %s24
      %s28 = sphi 0, %s27
      %s44 = sphi 0, %s28
      %s50 = sphi 0, %s52
      %s53 = sphi 0, %s50
      %s54 = sphi 0, %s53
      %s70 = sphi 0, %s54
      %s76 = sphi 0, %s78
      %s79 = sphi 0, %s76
      %s80 = sphi 0, %s79
      %s96 = sphi 0, %s80
      %s102 = sphi 0, %s104
      %s105 = sphi 0, %s102
      %s106 = sphi 0, %s105
      %s122 = sphi 0, %s106
      %s128 = sphi 0, %s130
      %s131 = sphi 0, %s128
      %s132 = sphi 0, %s131
      %s148 = sphi 0, %s132
    $region4: #{scaled_dot_product_attention.1} parent=1 // loop_header_branch
      %17 = sbr.rel (%p15) target = $region8
    $region5: #{scaled_dot_product_attention.1} parent=1 // loop_body
      %s19 = ssub.s32 %s14, 1
      %s20 = ssub.s32 %s14, 2
      %s21 = sadd.s32 %s14, 1
      %s22 = ssub.s32 %s14, %s21
      %p23 = scmp.eq.s32.totalorder %s22, 0
      %s25 = sadd.s32 %s24, 1
      %s26 = scalar_select %p23, %s24, %s25
      %p29 = pneg %p23
      %p30 = scmp.eq.s32.totalorder %s14, 1
      %p31 = por %p29, %p30
      %p32 = scmp.ne.s32.totalorder %s24, %s27
      %p33 = scmp.eq.s32.totalorder %s14, 0
      %p34 = por %p32, %p33
      %p35 = scmp.ne.s32.totalorder %s24, %s27
      %p36 = scmp.eq.s32.totalorder %s19, 1
      %p37 = por %p35, %p36
      %p38 = scmp.ne.s32.totalorder %s27, %s28
      %p39 = scmp.eq.s32.totalorder %s19, 0
      %p40 = por %p38, %p39
      %p41 = scmp.ne.s32.totalorder %s27, %s28
      %p42 = scmp.eq.s32.totalorder %s20, 1
      %p43 = por %p41, %p42
      %p45 = scmp.ne.s32.totalorder %s28, %s44
      %p46 = scmp.eq.s32.totalorder %s20, 0
      %p47 = por %p45, %p46
      %s48 = ssub.s32 %s14, %s21
      %p49 = scmp.eq.s32.totalorder %s48, 0
      %s51 = sadd.s32 %s50, 1
      %s52 = scalar_select %p49, %s50, %s51
      %p55 = pneg %p49
      %p56 = scmp.eq.s32.totalorder %s14, 1
      %p57 = por %p55, %p56
      %p58 = scmp.ne.s32.totalorder %s50, %s53
      %p59 = scmp.eq.s32.totalorder %s14, 0
      %p60 = por %p58, %p59
      %p61 = scmp.ne.s32.totalorder %s50, %s53
      %p62 = scmp.eq.s32.totalorder %s19, 1
      %p63 = por %p61, %p62
      %p64 = scmp.ne.s32.totalorder %s53, %s54
      %p65 = scmp.eq.s32.totalorder %s19, 0
      %p66 = por %p64, %p65
      %p67 = scmp.ne.s32.totalorder %s53, %s54
      %p68 = scmp.eq.s32.totalorder %s20, 1
      %p69 = por %p67, %p68
      %p71 = scmp.ne.s32.totalorder %s54, %s70
      %p72 = scmp.eq.s32.totalorder %s20, 0
      %p73 = por %p71, %p72
      %s74 = ssub.s32 %s14, %s21
      %p75 = scmp.eq.s32.totalorder %s74, 0
      %s77 = sadd.s32 %s76, 1
      %s78 = scalar_select %p75, %s76, %s77
      %p81 = pneg %p75
      %p82 = scmp.eq.s32.totalorder %s14, 1
      %p83 = por %p81, %p82
      %p84 = scmp.ne.s32.totalorder %s76, %s79
      %p85 = scmp.eq.s32.totalorder %s14, 0
      %p86 = por %p84, %p85
      %p87 = scmp.ne.s32.totalorder %s76, %s79
      %p88 = scmp.eq.s32.totalorder %s19, 1
      %p89 = por %p87, %p88
      %p90 = scmp.ne.s32.totalorder %s79, %s80
      %p91 = scmp.eq.s32.totalorder %s19, 0
      %p92 = por %p90, %p91
      %p93 = scmp.ne.s32.totalorder %s79, %s80
      %p94 = scmp.eq.s32.totalorder %s20, 1
      %p95 = por %p93, %p94
      %p97 = scmp.ne.s32.totalorder %s80, %s96
      %p98 = scmp.eq.s32.totalorder %s20, 0
      %p99 = por %p97, %p98
      %s100 = ssub.s32 %s14, %s21
      %p101 = scmp.eq.s32.totalorder %s100, 0
      %s103 = sadd.s32 %s102, 1
      %s104 = scalar_select %p101, %s102, %s103
      %p107 = pneg %p101
      %p108 = scmp.eq.s32.totalorder %s14, 1
      %p109 = por %p107, %p108
      %p110 = scmp.ne.s32.totalorder %s102, %s105
      %p111 = scmp.eq.s32.totalorder %s14, 0
      %p112 = por %p110, %p111
      %p113 = scmp.ne.s32.totalorder %s102, %s105
      %p114 = scmp.eq.s32.totalorder %s19, 1
      %p115 = por %p113, %p114
      %p116 = scmp.ne.s32.totalorder %s105, %s106
      %p117 = scmp.eq.s32.totalorder %s19, 0
      %p118 = por %p116, %p117
      %p119 = scmp.ne.s32.totalorder %s105, %s106
      %p120 = scmp.eq.s32.totalorder %s20, 1
      %p121 = por %p119, %p120
      %p123 = scmp.ne.s32.totalorder %s106, %s122
      %p124 = scmp.eq.s32.totalorder %s20, 0
      %p125 = por %p123, %p124
      %s126 = ssub.s32 %s14, %s21
      %p127 = scmp.eq.s32.totalorder %s126, 0
      %s129 = sadd.s32 %s128, 1
      %s130 = scalar_select %p127, %s128, %s129
      %p133 = pneg %p127
      %p134 = scmp.eq.s32.totalorder %s14, 1
      %p135 = por %p133, %p134
      %p136 = scmp.ne.s32.totalorder %s128, %s131
      %p137 = scmp.eq.s32.totalorder %s14, 0
      %p138 = por %p136, %p137
      %p139 = scmp.ne.s32.totalorder %s128, %s131
      %p140 = scmp.eq.s32.totalorder %s19, 1
      %p141 = por %p139, %p140
      %p142 = scmp.ne.s32.totalorder %s131, %s132
      %p143 = scmp.eq.s32.totalorder %s19, 0
      %p144 = por %p142, %p143
      %p145 = scmp.ne.s32.totalorder %s131, %s132
      %p146 = scmp.eq.s32.totalorder %s20, 1
      %p147 = por %p145, %p146
      %p149 = scmp.ne.s32.totalorder %s132, %s148
      %p150 = scmp.eq.s32.totalorder %s20, 0
      %p151 = por %p149, %p150
      %p152 = scmp.le.s32.totalorder 1, %s14
      %p153 = scmp.lt.s32.totalorder %s14, 3
      %p154 = pnand %p152, %p153
      %p155 = pneg %p154
      // Predicated region
      $region9: #{scaled_dot_product_attention.1} parent=5 // pred_check
        _
      $region10: #{scaled_dot_product_attention.1} parent=5 // pred_check_branch
        %157 = sbr.rel (%p154) target = $region12
      $region11: #{scaled_dot_product_attention.1} parent=5 // pred_region
        %s158 = ssub.s32 %s14, 1
      $region12: #{scaled_dot_product_attention.1} parent=5 // pred_fallthru
        _
      %p159 = scmp.lt.s32.totalorder %s14, 2
      // Predicated region
      $region13: #{scaled_dot_product_attention.1} parent=5 // pred_check
        %p160 = pneg %p159
      $region14: #{scaled_dot_product_attention.1} parent=5 // pred_check_branch
        %162 = sbr.rel (%p160) target = $region16
      $region15: #{scaled_dot_product_attention.1} parent=5 // pred_region
        // Predicated region
        $region17: #{scaled_dot_product_attention.1} parent=15 // pred_check
          %p163 = pneg %p34
        $region18: #{scaled_dot_product_attention.1} parent=15 // pred_check_branch
          %165 = sbr.rel (%p163) target = $region20
        $region19: #{scaled_dot_product_attention.1} parent=15 // pred_region
          %s166 = smul.u32 8, %s14
          %p167 = scmp.lt.s32.totalorder %s166, 15
          %s168 = scalar_select %p167, %s166, 15
          %s169 = smul.addr %s168, 16
          %s170 = smul.addr %s169, 8
          %s171 = scalar_lea.vmem %s0, %s170
          %s172 = smul.u32 8, %s14
        $region20: #{scaled_dot_product_attention.1} parent=15 // pred_fallthru
          _
        // Predicated region
        $region21: #{scaled_dot_product_attention.1} parent=15 // pred_check
          %p173 = pneg %p60
        $region22: #{scaled_dot_product_attention.1} parent=15 // pred_check_branch
          %175 = sbr.rel (%p173) target = $region24
        $region23: #{scaled_dot_product_attention.1} parent=15 // pred_region
          %s176 = smul.u32 8, %s14
          %p177 = scmp.lt.s32.totalorder %s176, 15
          %s178 = scalar_select %p177, %s176, 15
          %s179 = smul.addr %s178, 16
          %s180 = smul.addr %s179, 8
          %s181 = scalar_lea.vmem %s1, %s180
          %s182 = smul.u32 8, %s14
        $region24: #{scaled_dot_product_attention.1} parent=15 // pred_fallthru
          _
        // Predicated region
        $region25: #{scaled_dot_product_attention.1} parent=15 // pred_check
          %p183 = pneg %p86
        $region26: #{scaled_dot_product_attention.1} parent=15 // pred_check_branch
          %185 = sbr.rel (%p183) target = $region28
        $region27: #{scaled_dot_product_attention.1} parent=15 // pred_region
          %s186 = smul.u32 8, %s14
          %p187 = scmp.lt.s32.totalorder %s186, 15
          %s188 = scalar_select %p187, %s186, 15
          %s189 = smul.addr %s188, 16
          %s190 = smul.addr %s189, 8
          %s191 = scalar_lea.vmem %s2, %s190
          %s192 = smul.u32 8, %s14
        $region28: #{scaled_dot_product_attention.1} parent=15 // pred_fallthru
          _
      $region16: #{scaled_dot_product_attention.1} parent=5 // pred_fallthru
        _
      %p193 = scmp.le.s32.totalorder 1, %s14
      %p194 = scmp.lt.s32.totalorder %s14, 3
      %p195 = pnand %p193, %p194
      %p196 = pneg %p195
      // Predicated region
      $region29: #{scaled_dot_product_attention.1} parent=5 // pred_check
        _
      $region30: #{scaled_dot_product_attention.1} parent=5 // pred_check_branch
        %198 = sbr.rel (%p195) target = $region32
      $region31: #{scaled_dot_product_attention.1} parent=5 // pred_region
        %s199 = ssub.s32 %s14, 1
        %s200 = smul.u32 8, %s19
        %p201 = scmp.lt.s32.totalorder %s200, 15
        %s202 = scalar_select %p201, %s200, 15
        %s203 = smul.addr %s202, 16
        %s204 = smul.addr %s203, 8
        %s205 = scalar_lea.vmem %s0, %s204
        %p206 = pneg %p40
        %p207 = pneg %p37
        %s208 = smul.u32 8, %s19
        %p209 = scmp.lt.s32.totalorder %s208, 15
        %s210 = scalar_select %p209, %s208, 15
        %s211 = smul.addr %s210, 16
        %s212 = smul.addr %s211, 8
        %s213 = scalar_lea.vmem %s1, %s212
        %p214 = pneg %p66
        %p215 = pneg %p63
        %s216 = smul.u32 8, %s19
        %p217 = scmp.lt.s32.totalorder %s216, 15
        %s218 = scalar_select %p217, %s216, 15
        %s219 = smul.addr %s218, 16
        %s220 = smul.addr %s219, 8
        %s221 = scalar_lea.vmem %s2, %s220
        %p222 = pneg %p92
        %p223 = pneg %p89
        %p224 = pneg %p118
        %p225 = pneg %p115
        %s226 = smul.u32 8, %s19
        %p227 = scmp.lt.s32.totalorder %s226, 15
        %s228 = scalar_select %p227, %s226, 15
        %s229 = smul.addr %s228, 16
        %s230 = smul.addr %s229, 8
        %s231 = scalar_lea.vmem %s3, %s230
        %p232 = pneg %p144
        %p233 = pneg %p141
        %s234 = sand.u32 %s131, 1
        %s235 = scalar_lea.sflag [#allocation3], %s234
        %s236 = sand.u32 %s131, 1
        %s237 = smul.addr %s236, 1024
        %s238 = scalar_lea.vmem [#allocation2], %s237
        %s239 = smul.u32 8, %s19
        %p240 = scmp.lt.s32.totalorder %s239, 15
        %s241 = scalar_select %p240, %s239, 15
        %s242 = smul.addr %s241, 16
        %s243 = smul.addr %s242, 8
        %s244 = scalar_lea.vmem %s0, %s243
        %s245 = smul.u32 8, %s19
        %s246 = smul.u32 8, %s19
        %p247 = scmp.lt.s32.totalorder %s246, 15
        %s248 = scalar_select %p247, %s246, 15
        %s249 = smul.addr %s248, 16
        %s250 = smul.addr %s249, 8
        %s251 = scalar_lea.vmem %s1, %s250
        %s252 = smul.u32 8, %s19
        %s253 = smul.u32 8, %s19
        %p254 = scmp.lt.s32.totalorder %s253, 15
        %s255 = scalar_select %p254, %s253, 15
        %s256 = smul.addr %s255, 16
        %s257 = smul.addr %s256, 8
        %s258 = scalar_lea.vmem %s2, %s257
        %s259 = smul.u32 8, %s19
        %s260 = smul.u32 8, %s19
        %p261 = scmp.lt.s32.totalorder %s260, 15
        %s262 = scalar_select %p261, %s260, 15
        %s263 = smul.addr %s262, 16
        %s264 = smul.addr %s263, 8
        %s265 = scalar_lea.vmem %s3, %s264
        %s266 = smul.u32 8, %s19
        %s267 = smul.u32 8, %s19
        %v268 = vld [vmem:[%s244] sm:$0xff]
        %v269 = vld [vmem:[%s244 + $0x8] sm:$0xff]
        %v270 = vld [vmem:[%s244 + $0x10] sm:$0xff]
        %v271 = vld [vmem:[%s244 + $0x18] sm:$0xff]
        %v272 = vld [vmem:[%s244 + $0x20] sm:$0xff]
        %v273 = vld [vmem:[%s244 + $0x28] sm:$0xff]
        %v274 = vld [vmem:[%s244 + $0x30] sm:$0xff]
        %v275 = vld [vmem:[%s244 + $0x38] sm:$0xff]
        %v276 = vld [vmem:[%s244 + $0x40] sm:$0xff]
        %v277 = vld [vmem:[%s244 + $0x48] sm:$0xff]
        %v278 = vld [vmem:[%s244 + $0x50] sm:$0xff]
        %v279 = vld [vmem:[%s244 + $0x58] sm:$0xff]
        %v280 = vld [vmem:[%s244 + $0x60] sm:$0xff]
        %v281 = vld [vmem:[%s244 + $0x68] sm:$0xff]
        %v282 = vld [vmem:[%s244 + $0x70] sm:$0xff]
        %v283 = vld [vmem:[%s244 + $0x78] sm:$0xff]
        %v284 = vld [vmem:[%s244 + $0x80] sm:$0xff]
        %v285 = vld [vmem:[%s244 + $0x88] sm:$0xff]
        %v286 = vld [vmem:[%s244 + $0x90] sm:$0xff]
        %v287 = vld [vmem:[%s244 + $0x98] sm:$0xff]
        %v288 = vld [vmem:[%s244 + $0xa0] sm:$0xff]
        %v289 = vld [vmem:[%s244 + $0xa8] sm:$0xff]
        %v290 = vld [vmem:[%s244 + $0xb0] sm:$0xff]
        %v291 = vld [vmem:[%s244 + $0xb8] sm:$0xff]
        %v292 = vld [vmem:[%s244 + $0xc0] sm:$0xff]
        %v293 = vld [vmem:[%s244 + $0xc8] sm:$0xff]
        %v294 = vld [vmem:[%s244 + $0xd0] sm:$0xff]
        %v295 = vld [vmem:[%s244 + $0xd8] sm:$0xff]
        %v296 = vld [vmem:[%s244 + $0xe0] sm:$0xff]
        %v297 = vld [vmem:[%s244 + $0xe8] sm:$0xff]
        %v298 = vld [vmem:[%s244 + $0xf0] sm:$0xff]
        %v299 = vld [vmem:[%s244 + $0xf8] sm:$0xff]
        %v300 = vld [vmem:[%s244 + $0x100] sm:$0xff]
        %v301 = vld [vmem:[%s244 + $0x108] sm:$0xff]
        %v302 = vld [vmem:[%s244 + $0x110] sm:$0xff]
        %v303 = vld [vmem:[%s244 + $0x118] sm:$0xff]
        %v304 = vld [vmem:[%s244 + $0x120] sm:$0xff]
        %v305 = vld [vmem:[%s244 + $0x128] sm:$0xff]
        %v306 = vld [vmem:[%s244 + $0x130] sm:$0xff]
        %v307 = vld [vmem:[%s244 + $0x138] sm:$0xff]
        %v308 = vld [vmem:[%s244 + $0x140] sm:$0xff]
        %v309 = vld [vmem:[%s244 + $0x148] sm:$0xff]
        %v310 = vld [vmem:[%s244 + $0x150] sm:$0xff]
        %v311 = vld [vmem:[%s244 + $0x158] sm:$0xff]
        %v312 = vld [vmem:[%s244 + $0x160] sm:$0xff]
        %v313 = vld [vmem:[%s244 + $0x168] sm:$0xff]
        %v314 = vld [vmem:[%s244 + $0x170] sm:$0xff]
        %v315 = vld [vmem:[%s244 + $0x178] sm:$0xff]
        %v316 = vld [vmem:[%s244 + $0x180] sm:$0xff]
        %v317 = vld [vmem:[%s244 + $0x188] sm:$0xff]
        %v318 = vld [vmem:[%s244 + $0x190] sm:$0xff]
        %v319 = vld [vmem:[%s244 + $0x198] sm:$0xff]
        %v320 = vld [vmem:[%s244 + $0x1a0] sm:$0xff]
        %v321 = vld [vmem:[%s244 + $0x1a8] sm:$0xff]
        %v322 = vld [vmem:[%s244 + $0x1b0] sm:$0xff]
        %v323 = vld [vmem:[%s244 + $0x1b8] sm:$0xff]
        %v324 = vld [vmem:[%s244 + $0x1c0] sm:$0xff]
        %v325 = vld [vmem:[%s244 + $0x1c8] sm:$0xff]
        %v326 = vld [vmem:[%s244 + $0x1d0] sm:$0xff]
        %v327 = vld [vmem:[%s244 + $0x1d8] sm:$0xff]
        %v328 = vld [vmem:[%s244 + $0x1e0] sm:$0xff]
        %v329 = vld [vmem:[%s244 + $0x1e8] sm:$0xff]
        %v330 = vld [vmem:[%s244 + $0x1f0] sm:$0xff]
        %v331 = vld [vmem:[%s244 + $0x1f8] sm:$0xff]
        %v332 = vld [vmem:[%s244 + $0x200] sm:$0xff]
        %v333 = vld [vmem:[%s244 + $0x208] sm:$0xff]
        %v334 = vld [vmem:[%s244 + $0x210] sm:$0xff]
        %v335 = vld [vmem:[%s244 + $0x218] sm:$0xff]
        %v336 = vld [vmem:[%s244 + $0x220] sm:$0xff]
        %v337 = vld [vmem:[%s244 + $0x228] sm:$0xff]
        %v338 = vld [vmem:[%s244 + $0x230] sm:$0xff]
        %v339 = vld [vmem:[%s244 + $0x238] sm:$0xff]
        %v340 = vld [vmem:[%s244 + $0x240] sm:$0xff]
        %v341 = vld [vmem:[%s244 + $0x248] sm:$0xff]
        %v342 = vld [vmem:[%s244 + $0x250] sm:$0xff]
        %v343 = vld [vmem:[%s244 + $0x258] sm:$0xff]
        %v344 = vld [vmem:[%s244 + $0x260] sm:$0xff]
        %v345 = vld [vmem:[%s244 + $0x268] sm:$0xff]
        %v346 = vld [vmem:[%s244 + $0x270] sm:$0xff]
        %v347 = vld [vmem:[%s244 + $0x278] sm:$0xff]
        %v348 = vld [vmem:[%s244 + $0x280] sm:$0xff]
        %v349 = vld [vmem:[%s244 + $0x288] sm:$0xff]
        %v350 = vld [vmem:[%s244 + $0x290] sm:$0xff]
        %v351 = vld [vmem:[%s244 + $0x298] sm:$0xff]
        %v352 = vld [vmem:[%s244 + $0x2a0] sm:$0xff]
        %v353 = vld [vmem:[%s244 + $0x2a8] sm:$0xff]
        %v354 = vld [vmem:[%s244 + $0x2b0] sm:$0xff]
        %v355 = vld [vmem:[%s244 + $0x2b8] sm:$0xff]
        %v356 = vld [vmem:[%s244 + $0x2c0] sm:$0xff]
        %v357 = vld [vmem:[%s244 + $0x2c8] sm:$0xff]
        %v358 = vld [vmem:[%s244 + $0x2d0] sm:$0xff]
        %v359 = vld [vmem:[%s244 + $0x2d8] sm:$0xff]
        %v360 = vld [vmem:[%s244 + $0x2e0] sm:$0xff]
        %v361 = vld [vmem:[%s244 + $0x2e8] sm:$0xff]
        %v362 = vld [vmem:[%s244 + $0x2f0] sm:$0xff]
        %v363 = vld [vmem:[%s244 + $0x2f8] sm:$0xff]
        %v364 = vld [vmem:[%s244 + $0x300] sm:$0xff]
        %v365 = vld [vmem:[%s244 + $0x308] sm:$0xff]
        %v366 = vld [vmem:[%s244 + $0x310] sm:$0xff]
        %v367 = vld [vmem:[%s244 + $0x318] sm:$0xff]
        %v368 = vld [vmem:[%s244 + $0x320] sm:$0xff]
        %v369 = vld [vmem:[%s244 + $0x328] sm:$0xff]
        %v370 = vld [vmem:[%s244 + $0x330] sm:$0xff]
        %v371 = vld [vmem:[%s244 + $0x338] sm:$0xff]
        %v372 = vld [vmem:[%s244 + $0x340] sm:$0xff]
        %v373 = vld [vmem:[%s244 + $0x348] sm:$0xff]
        %v374 = vld [vmem:[%s244 + $0x350] sm:$0xff]
        %v375 = vld [vmem:[%s244 + $0x358] sm:$0xff]
        %v376 = vld [vmem:[%s244 + $0x360] sm:$0xff]
        %v377 = vld [vmem:[%s244 + $0x368] sm:$0xff]
        %v378 = vld [vmem:[%s244 + $0x370] sm:$0xff]
        %v379 = vld [vmem:[%s244 + $0x378] sm:$0xff]
        %v380 = vld [vmem:[%s244 + $0x380] sm:$0xff]
        %v381 = vld [vmem:[%s244 + $0x388] sm:$0xff]
        %v382 = vld [vmem:[%s244 + $0x390] sm:$0xff]
        %v383 = vld [vmem:[%s244 + $0x398] sm:$0xff]
        %v384 = vld [vmem:[%s244 + $0x3a0] sm:$0xff]
        %v385 = vld [vmem:[%s244 + $0x3a8] sm:$0xff]
        %v386 = vld [vmem:[%s244 + $0x3b0] sm:$0xff]
        %v387 = vld [vmem:[%s244 + $0x3b8] sm:$0xff]
        %v388 = vld [vmem:[%s244 + $0x3c0] sm:$0xff]
        %v389 = vld [vmem:[%s244 + $0x3c8] sm:$0xff]
        %v390 = vld [vmem:[%s244 + $0x3d0] sm:$0xff]
        %v391 = vld [vmem:[%s244 + $0x3d8] sm:$0xff]
        %v392 = vld [vmem:[%s244 + $0x3e0] sm:$0xff]
        %v393 = vld [vmem:[%s244 + $0x3e8] sm:$0xff]
        %v394 = vld [vmem:[%s244 + $0x3f0] sm:$0xff]
        %v395 = vld [vmem:[%s244 + $0x3f8] sm:$0xff]
        %v396 = vld [vmem:[%s251] sm:$0xff]
        %v397 = vld [vmem:[%s251 + $0x8] sm:$0xff]
        %v398 = vld [vmem:[%s251 + $0x10] sm:$0xff]
        %v399 = vld [vmem:[%s251 + $0x18] sm:$0xff]
        %v400 = vld [vmem:[%s251 + $0x20] sm:$0xff]
        %v401 = vld [vmem:[%s251 + $0x28] sm:$0xff]
        %v402 = vld [vmem:[%s251 + $0x30] sm:$0xff]
        %v403 = vld [vmem:[%s251 + $0x38] sm:$0xff]
        %v404 = vld [vmem:[%s251 + $0x40] sm:$0xff]
        %v405 = vld [vmem:[%s251 + $0x48] sm:$0xff]
        %v406 = vld [vmem:[%s251 + $0x50] sm:$0xff]
        %v407 = vld [vmem:[%s251 + $0x58] sm:$0xff]
        %v408 = vld [vmem:[%s251 + $0x60] sm:$0xff]
        %v409 = vld [vmem:[%s251 + $0x68] sm:$0xff]
        %v410 = vld [vmem:[%s251 + $0x70] sm:$0xff]
        %v411 = vld [vmem:[%s251 + $0x78] sm:$0xff]
        %v412 = vld [vmem:[%s251 + $0x80] sm:$0xff]
        %v413 = vld [vmem:[%s251 + $0x88] sm:$0xff]
        %v414 = vld [vmem:[%s251 + $0x90] sm:$0xff]
        %v415 = vld [vmem:[%s251 + $0x98] sm:$0xff]
        %v416 = vld [vmem:[%s251 + $0xa0] sm:$0xff]
        %v417 = vld [vmem:[%s251 + $0xa8] sm:$0xff]
        %v418 = vld [vmem:[%s251 + $0xb0] sm:$0xff]
        %v419 = vld [vmem:[%s251 + $0xb8] sm:$0xff]
        %v420 = vld [vmem:[%s251 + $0xc0] sm:$0xff]
        %v421 = vld [vmem:[%s251 + $0xc8] sm:$0xff]
        %v422 = vld [vmem:[%s251 + $0xd0] sm:$0xff]
        %v423 = vld [vmem:[%s251 + $0xd8] sm:$0xff]
        %v424 = vld [vmem:[%s251 + $0xe0] sm:$0xff]
        %v425 = vld [vmem:[%s251 + $0xe8] sm:$0xff]
        %v426 = vld [vmem:[%s251 + $0xf0] sm:$0xff]
        %v427 = vld [vmem:[%s251 + $0xf8] sm:$0xff]
        %v428 = vld [vmem:[%s251 + $0x100] sm:$0xff]
        %v429 = vld [vmem:[%s251 + $0x108] sm:$0xff]
        %v430 = vld [vmem:[%s251 + $0x110] sm:$0xff]
        %v431 = vld [vmem:[%s251 + $0x118] sm:$0xff]
        %v432 = vld [vmem:[%s251 + $0x120] sm:$0xff]
        %v433 = vld [vmem:[%s251 + $0x128] sm:$0xff]
        %v434 = vld [vmem:[%s251 + $0x130] sm:$0xff]
        %v435 = vld [vmem:[%s251 + $0x138] sm:$0xff]
        %v436 = vld [vmem:[%s251 + $0x140] sm:$0xff]
        %v437 = vld [vmem:[%s251 + $0x148] sm:$0xff]
        %v438 = vld [vmem:[%s251 + $0x150] sm:$0xff]
        %v439 = vld [vmem:[%s251 + $0x158] sm:$0xff]
        %v440 = vld [vmem:[%s251 + $0x160] sm:$0xff]
        %v441 = vld [vmem:[%s251 + $0x168] sm:$0xff]
        %v442 = vld [vmem:[%s251 + $0x170] sm:$0xff]
        %v443 = vld [vmem:[%s251 + $0x178] sm:$0xff]
        %v444 = vld [vmem:[%s251 + $0x180] sm:$0xff]
        %v445 = vld [vmem:[%s251 + $0x188] sm:$0xff]
        %v446 = vld [vmem:[%s251 + $0x190] sm:$0xff]
        %v447 = vld [vmem:[%s251 + $0x198] sm:$0xff]
        %v448 = vld [vmem:[%s251 + $0x1a0] sm:$0xff]
        %v449 = vld [vmem:[%s251 + $0x1a8] sm:$0xff]
        %v450 = vld [vmem:[%s251 + $0x1b0] sm:$0xff]
        %v451 = vld [vmem:[%s251 + $0x1b8] sm:$0xff]
        %v452 = vld [vmem:[%s251 + $0x1c0] sm:$0xff]
        %v453 = vld [vmem:[%s251 + $0x1c8] sm:$0xff]
        %v454 = vld [vmem:[%s251 + $0x1d0] sm:$0xff]
        %v455 = vld [vmem:[%s251 + $0x1d8] sm:$0xff]
        %v456 = vld [vmem:[%s251 + $0x1e0] sm:$0xff]
        %v457 = vld [vmem:[%s251 + $0x1e8] sm:$0xff]
        %v458 = vld [vmem:[%s251 + $0x1f0] sm:$0xff]
        %v459 = vld [vmem:[%s251 + $0x1f8] sm:$0xff]
        %v460 = vld [vmem:[%s251 + $0x200] sm:$0xff]
        %v461 = vld [vmem:[%s251 + $0x208] sm:$0xff]
        %v462 = vld [vmem:[%s251 + $0x210] sm:$0xff]
        %v463 = vld [vmem:[%s251 + $0x218] sm:$0xff]
        %v464 = vld [vmem:[%s251 + $0x220] sm:$0xff]
        %v465 = vld [vmem:[%s251 + $0x228] sm:$0xff]
        %v466 = vld [vmem:[%s251 + $0x230] sm:$0xff]
        %v467 = vld [vmem:[%s251 + $0x238] sm:$0xff]
        %v468 = vld [vmem:[%s251 + $0x240] sm:$0xff]
        %v469 = vld [vmem:[%s251 + $0x248] sm:$0xff]
        %v470 = vld [vmem:[%s251 + $0x250] sm:$0xff]
        %v471 = vld [vmem:[%s251 + $0x258] sm:$0xff]
        %v472 = vld [vmem:[%s251 + $0x260] sm:$0xff]
        %v473 = vld [vmem:[%s251 + $0x268] sm:$0xff]
        %v474 = vld [vmem:[%s251 + $0x270] sm:$0xff]
        %v475 = vld [vmem:[%s251 + $0x278] sm:$0xff]
        %v476 = vld [vmem:[%s251 + $0x280] sm:$0xff]
        %v477 = vld [vmem:[%s251 + $0x288] sm:$0xff]
        %v478 = vld [vmem:[%s251 + $0x290] sm:$0xff]
        %v479 = vld [vmem:[%s251 + $0x298] sm:$0xff]
        %v480 = vld [vmem:[%s251 + $0x2a0] sm:$0xff]
        %v481 = vld [vmem:[%s251 + $0x2a8] sm:$0xff]
        %v482 = vld [vmem:[%s251 + $0x2b0] sm:$0xff]
        %v483 = vld [vmem:[%s251 + $0x2b8] sm:$0xff]
        %v484 = vld [vmem:[%s251 + $0x2c0] sm:$0xff]
        %v485 = vld [vmem:[%s251 + $0x2c8] sm:$0xff]
        %v486 = vld [vmem:[%s251 + $0x2d0] sm:$0xff]
        %v487 = vld [vmem:[%s251 + $0x2d8] sm:$0xff]
        %v488 = vld [vmem:[%s251 + $0x2e0] sm:$0xff]
        %v489 = vld [vmem:[%s251 + $0x2e8] sm:$0xff]
        %v490 = vld [vmem:[%s251 + $0x2f0] sm:$0xff]
        %v491 = vld [vmem:[%s251 + $0x2f8] sm:$0xff]
        %v492 = vld [vmem:[%s251 + $0x300] sm:$0xff]
        %v493 = vld [vmem:[%s251 + $0x308] sm:$0xff]
        %v494 = vld [vmem:[%s251 + $0x310] sm:$0xff]
        %v495 = vld [vmem:[%s251 + $0x318] sm:$0xff]
        %v496 = vld [vmem:[%s251 + $0x320] sm:$0xff]
        %v497 = vld [vmem:[%s251 + $0x328] sm:$0xff]
        %v498 = vld [vmem:[%s251 + $0x330] sm:$0xff]
        %v499 = vld [vmem:[%s251 + $0x338] sm:$0xff]
        %v500 = vld [vmem:[%s251 + $0x340] sm:$0xff]
        %v501 = vld [vmem:[%s251 + $0x348] sm:$0xff]
        %v502 = vld [vmem:[%s251 + $0x350] sm:$0xff]
        %v503 = vld [vmem:[%s251 + $0x358] sm:$0xff]
        %v504 = vld [vmem:[%s251 + $0x360] sm:$0xff]
        %v505 = vld [vmem:[%s251 + $0x368] sm:$0xff]
        %v506 = vld [vmem:[%s251 + $0x370] sm:$0xff]
        %v507 = vld [vmem:[%s251 + $0x378] sm:$0xff]
        %v508 = vld [vmem:[%s251 + $0x380] sm:$0xff]
        %v509 = vld [vmem:[%s251 + $0x388] sm:$0xff]
        %v510 = vld [vmem:[%s251 + $0x390] sm:$0xff]
        %v511 = vld [vmem:[%s251 + $0x398] sm:$0xff]
        %v512 = vld [vmem:[%s251 + $0x3a0] sm:$0xff]
        %v513 = vld [vmem:[%s251 + $0x3a8] sm:$0xff]
        %v514 = vld [vmem:[%s251 + $0x3b0] sm:$0xff]
        %v515 = vld [vmem:[%s251 + $0x3b8] sm:$0xff]
        %v516 = vld [vmem:[%s251 + $0x3c0] sm:$0xff]
        %v517 = vld [vmem:[%s251 + $0x3c8] sm:$0xff]
        %v518 = vld [vmem:[%s251 + $0x3d0] sm:$0xff]
        %v519 = vld [vmem:[%s251 + $0x3d8] sm:$0xff]
        %v520 = vld [vmem:[%s251 + $0x3e0] sm:$0xff]
        %v521 = vld [vmem:[%s251 + $0x3e8] sm:$0xff]
        %v522 = vld [vmem:[%s251 + $0x3f0] sm:$0xff]
        %v523 = vld [vmem:[%s251 + $0x3f8] sm:$0xff]
        %v524 = vld [vmem:[%s258] sm:$0xff]
        %v525 = vld [vmem:[%s258 + $0x8] sm:$0xff]
        %v526 = vld [vmem:[%s258 + $0x10] sm:$0xff]
        %v527 = vld [vmem:[%s258 + $0x18] sm:$0xff]
        %v528 = vld [vmem:[%s258 + $0x20] sm:$0xff]
        %v529 = vld [vmem:[%s258 + $0x28] sm:$0xff]
        %v530 = vld [vmem:[%s258 + $0x30] sm:$0xff]
        %v531 = vld [vmem:[%s258 + $0x38] sm:$0xff]
        %v532 = vld [vmem:[%s258 + $0x40] sm:$0xff]
        %v533 = vld [vmem:[%s258 + $0x48] sm:$0xff]
        %v534 = vld [vmem:[%s258 + $0x50] sm:$0xff]
        %v535 = vld [vmem:[%s258 + $0x58] sm:$0xff]
        %v536 = vld [vmem:[%s258 + $0x60] sm:$0xff]
        %v537 = vld [vmem:[%s258 + $0x68] sm:$0xff]
        %v538 = vld [vmem:[%s258 + $0x70] sm:$0xff]
        %v539 = vld [vmem:[%s258 + $0x78] sm:$0xff]
        %v540 = vld [vmem:[%s258 + $0x80] sm:$0xff]
        %v541 = vld [vmem:[%s258 + $0x88] sm:$0xff]
        %v542 = vld [vmem:[%s258 + $0x90] sm:$0xff]
        %v543 = vld [vmem:[%s258 + $0x98] sm:$0xff]
        %v544 = vld [vmem:[%s258 + $0xa0] sm:$0xff]
        %v545 = vld [vmem:[%s258 + $0xa8] sm:$0xff]
        %v546 = vld [vmem:[%s258 + $0xb0] sm:$0xff]
        %v547 = vld [vmem:[%s258 + $0xb8] sm:$0xff]
        %v548 = vld [vmem:[%s258 + $0xc0] sm:$0xff]
        %v549 = vld [vmem:[%s258 + $0xc8] sm:$0xff]
        %v550 = vld [vmem:[%s258 + $0xd0] sm:$0xff]
        %v551 = vld [vmem:[%s258 + $0xd8] sm:$0xff]
        %v552 = vld [vmem:[%s258 + $0xe0] sm:$0xff]
        %v553 = vld [vmem:[%s258 + $0xe8] sm:$0xff]
        %v554 = vld [vmem:[%s258 + $0xf0] sm:$0xff]
        %v555 = vld [vmem:[%s258 + $0xf8] sm:$0xff]
        %v556 = vld [vmem:[%s258 + $0x100] sm:$0xff]
        %v557 = vld [vmem:[%s258 + $0x108] sm:$0xff]
        %v558 = vld [vmem:[%s258 + $0x110] sm:$0xff]
        %v559 = vld [vmem:[%s258 + $0x118] sm:$0xff]
        %v560 = vld [vmem:[%s258 + $0x120] sm:$0xff]
        %v561 = vld [vmem:[%s258 + $0x128] sm:$0xff]
        %v562 = vld [vmem:[%s258 + $0x130] sm:$0xff]
        %v563 = vld [vmem:[%s258 + $0x138] sm:$0xff]
        %v564 = vld [vmem:[%s258 + $0x140] sm:$0xff]
        %v565 = vld [vmem:[%s258 + $0x148] sm:$0xff]
        %v566 = vld [vmem:[%s258 + $0x150] sm:$0xff]
        %v567 = vld [vmem:[%s258 + $0x158] sm:$0xff]
        %v568 = vld [vmem:[%s258 + $0x160] sm:$0xff]
        %v569 = vld [vmem:[%s258 + $0x168] sm:$0xff]
        %v570 = vld [vmem:[%s258 + $0x170] sm:$0xff]
        %v571 = vld [vmem:[%s258 + $0x178] sm:$0xff]
        %v572 = vld [vmem:[%s258 + $0x180] sm:$0xff]
        %v573 = vld [vmem:[%s258 + $0x188] sm:$0xff]
        %v574 = vld [vmem:[%s258 + $0x190] sm:$0xff]
        %v575 = vld [vmem:[%s258 + $0x198] sm:$0xff]
        %v576 = vld [vmem:[%s258 + $0x1a0] sm:$0xff]
        %v577 = vld [vmem:[%s258 + $0x1a8] sm:$0xff]
        %v578 = vld [vmem:[%s258 + $0x1b0] sm:$0xff]
        %v579 = vld [vmem:[%s258 + $0x1b8] sm:$0xff]
        %v580 = vld [vmem:[%s258 + $0x1c0] sm:$0xff]
        %v581 = vld [vmem:[%s258 + $0x1c8] sm:$0xff]
        %v582 = vld [vmem:[%s258 + $0x1d0] sm:$0xff]
        %v583 = vld [vmem:[%s258 + $0x1d8] sm:$0xff]
        %v584 = vld [vmem:[%s258 + $0x1e0] sm:$0xff]
        %v585 = vld [vmem:[%s258 + $0x1e8] sm:$0xff]
        %v586 = vld [vmem:[%s258 + $0x1f0] sm:$0xff]
        %v587 = vld [vmem:[%s258 + $0x1f8] sm:$0xff]
        %v588 = vld [vmem:[%s258 + $0x200] sm:$0xff]
        %v589 = vld [vmem:[%s258 + $0x208] sm:$0xff]
        %v590 = vld [vmem:[%s258 + $0x210] sm:$0xff]
        %v591 = vld [vmem:[%s258 + $0x218] sm:$0xff]
        %v592 = vld [vmem:[%s258 + $0x220] sm:$0xff]
        %v593 = vld [vmem:[%s258 + $0x228] sm:$0xff]
        %v594 = vld [vmem:[%s258 + $0x230] sm:$0xff]
        %v595 = vld [vmem:[%s258 + $0x238] sm:$0xff]
        %v596 = vld [vmem:[%s258 + $0x240] sm:$0xff]
        %v597 = vld [vmem:[%s258 + $0x248] sm:$0xff]
        %v598 = vld [vmem:[%s258 + $0x250] sm:$0xff]
        %v599 = vld [vmem:[%s258 + $0x258] sm:$0xff]
        %v600 = vld [vmem:[%s258 + $0x260] sm:$0xff]
        %v601 = vld [vmem:[%s258 + $0x268] sm:$0xff]
        %v602 = vld [vmem:[%s258 + $0x270] sm:$0xff]
        %v603 = vld [vmem:[%s258 + $0x278] sm:$0xff]
        %v604 = vld [vmem:[%s258 + $0x280] sm:$0xff]
        %v605 = vld [vmem:[%s258 + $0x288] sm:$0xff]
        %v606 = vld [vmem:[%s258 + $0x290] sm:$0xff]
        %v607 = vld [vmem:[%s258 + $0x298] sm:$0xff]
        %v608 = vld [vmem:[%s258 + $0x2a0] sm:$0xff]
        %v609 = vld [vmem:[%s258 + $0x2a8] sm:$0xff]
        %v610 = vld [vmem:[%s258 + $0x2b0] sm:$0xff]
        %v611 = vld [vmem:[%s258 + $0x2b8] sm:$0xff]
        %v612 = vld [vmem:[%s258 + $0x2c0] sm:$0xff]
        %v613 = vld [vmem:[%s258 + $0x2c8] sm:$0xff]
        %v614 = vld [vmem:[%s258 + $0x2d0] sm:$0xff]
        %v615 = vld [vmem:[%s258 + $0x2d8] sm:$0xff]
        %v616 = vld [vmem:[%s258 + $0x2e0] sm:$0xff]
        %v617 = vld [vmem:[%s258 + $0x2e8] sm:$0xff]
        %v618 = vld [vmem:[%s258 + $0x2f0] sm:$0xff]
        %v619 = vld [vmem:[%s258 + $0x2f8] sm:$0xff]
        %v620 = vld [vmem:[%s258 + $0x300] sm:$0xff]
        %v621 = vld [vmem:[%s258 + $0x308] sm:$0xff]
        %v622 = vld [vmem:[%s258 + $0x310] sm:$0xff]
        %v623 = vld [vmem:[%s258 + $0x318] sm:$0xff]
        %v624 = vld [vmem:[%s258 + $0x320] sm:$0xff]
        %v625 = vld [vmem:[%s258 + $0x328] sm:$0xff]
        %v626 = vld [vmem:[%s258 + $0x330] sm:$0xff]
        %v627 = vld [vmem:[%s258 + $0x338] sm:$0xff]
        %v628 = vld [vmem:[%s258 + $0x340] sm:$0xff]
        %v629 = vld [vmem:[%s258 + $0x348] sm:$0xff]
        %v630 = vld [vmem:[%s258 + $0x350] sm:$0xff]
        %v631 = vld [vmem:[%s258 + $0x358] sm:$0xff]
        %v632 = vld [vmem:[%s258 + $0x360] sm:$0xff]
        %v633 = vld [vmem:[%s258 + $0x368] sm:$0xff]
        %v634 = vld [vmem:[%s258 + $0x370] sm:$0xff]
        %v635 = vld [vmem:[%s258 + $0x378] sm:$0xff]
        %v636 = vld [vmem:[%s258 + $0x380] sm:$0xff]
        %v637 = vld [vmem:[%s258 + $0x388] sm:$0xff]
        %v638 = vld [vmem:[%s258 + $0x390] sm:$0xff]
        %v639 = vld [vmem:[%s258 + $0x398] sm:$0xff]
        %v640 = vld [vmem:[%s258 + $0x3a0] sm:$0xff]
        %v641 = vld [vmem:[%s258 + $0x3a8] sm:$0xff]
        %v642 = vld [vmem:[%s258 + $0x3b0] sm:$0xff]
        %v643 = vld [vmem:[%s258 + $0x3b8] sm:$0xff]
        %v644 = vld [vmem:[%s258 + $0x3c0] sm:$0xff]
        %v645 = vld [vmem:[%s258 + $0x3c8] sm:$0xff]
        %v646 = vld [vmem:[%s258 + $0x3d0] sm:$0xff]
        %v647 = vld [vmem:[%s258 + $0x3d8] sm:$0xff]
        %v648 = vld [vmem:[%s258 + $0x3e0] sm:$0xff]
        %v649 = vld [vmem:[%s258 + $0x3e8] sm:$0xff]
        %v650 = vld [vmem:[%s258 + $0x3f0] sm:$0xff]
        %v651 = vld [vmem:[%s258 + $0x3f8] sm:$0xff]
        %vm652 = vcmask 523264
        %v654 = vsel %vm652, %v268, 0
        %v657 = vsel %vm652, %v269, 0
        %v660 = vsel %vm652, %v270, 0
        %v663 = vsel %vm652, %v271, 0
        %v666 = vsel %vm652, %v272, 0
        %v669 = vsel %vm652, %v273, 0
        %v672 = vsel %vm652, %v274, 0
        %v675 = vsel %vm652, %v275, 0
        %v678 = vsel %vm652, %v276, 0
        %v681 = vsel %vm652, %v277, 0
        %v684 = vsel %vm652, %v278, 0
        %v687 = vsel %vm652, %v279, 0
        %v690 = vsel %vm652, %v280, 0
        %v693 = vsel %vm652, %v281, 0
        %v696 = vsel %vm652, %v282, 0
        %v699 = vsel %vm652, %v283, 0
        %v702 = vsel %vm652, %v396, 0
        %v705 = vsel %vm652, %v397, 0
        %v708 = vsel %vm652, %v398, 0
        %v711 = vsel %vm652, %v399, 0
        %v714 = vsel %vm652, %v400, 0
        %v717 = vsel %vm652, %v401, 0
        %v720 = vsel %vm652, %v402, 0
        %v723 = vsel %vm652, %v403, 0
        %v726 = vsel %vm652, %v404, 0
        %v729 = vsel %vm652, %v405, 0
        %v732 = vsel %vm652, %v406, 0
        %v735 = vsel %vm652, %v407, 0
        %v738 = vsel %vm652, %v408, 0
        %v741 = vsel %vm652, %v409, 0
        %v744 = vsel %vm652, %v410, 0
        %v747 = vsel %vm652, %v411, 0
        %749 = vmatpush.xpose.msra.mxu0 %v747
        %750 = vmatpush.xpose.msra.mxu0 %v744
        %751 = vmatpush.xpose.msra.mxu0 %v741
        %752 = vmatpush.xpose.msra.mxu0 %v738
        %753 = vmatpush.xpose.msra.mxu0 %v735
        %754 = vmatpush.xpose.msra.mxu0 %v732
        %755 = vmatpush.xpose.msra.mxu0 %v729
        %756 = vmatpush.xpose.msra.mxu0 %v726
        %757 = vmatpush.xpose.msra.mxu0 %v723
        %758 = vmatpush.xpose.msra.mxu0 %v720
        %759 = vmatpush.xpose.msra.mxu0 %v717
        %760 = vmatpush.xpose.msra.mxu0 %v714
        %761 = vmatpush.xpose.msra.mxu0 %v711
        %762 = vmatpush.xpose.msra.mxu0 %v708
        %763 = vmatpush.xpose.msra.mxu0 %v705
        %764 = vmatpush.xpose.msra.mxu0 %v702
        %765 = vmatmul.f32.gmra.mxu0 %v654
        %v766 = vpop.f32.mrf.mxu0
        %v767 = vadd.f32 0.0, %v766
        %768 = vmatmul.f32.gmra.mxu0 %v657
        %v769 = vpop.f32.mrf.mxu0
        %v770 = vadd.f32 0.0, %v769
        %771 = vmatmul.f32.gmra.mxu0 %v660
        %v772 = vpop.f32.mrf.mxu0
        %v773 = vadd.f32 0.0, %v772
        %774 = vmatmul.f32.gmra.mxu0 %v663
        %v775 = vpop.f32.mrf.mxu0
        %v776 = vadd.f32 0.0, %v775
        %777 = vmatmul.f32.gmra.mxu0 %v666
        %v778 = vpop.f32.mrf.mxu0
        %v779 = vadd.f32 0.0, %v778
        %780 = vmatmul.f32.gmra.mxu0 %v669
        %v781 = vpop.f32.mrf.mxu0
        %v782 = vadd.f32 0.0, %v781
        %783 = vmatmul.f32.gmra.mxu0 %v672
        %v784 = vpop.f32.mrf.mxu0
        %v785 = vadd.f32 0.0, %v784
        %786 = vmatmul.f32.gmra.mxu0 %v675
        %v787 = vpop.f32.mrf.mxu0
        %v788 = vadd.f32 0.0, %v787
        %789 = vmatmul.f32.gmra.mxu0 %v678
        %v790 = vpop.f32.mrf.mxu0
        %v791 = vadd.f32 0.0, %v790
        %792 = vmatmul.f32.gmra.mxu0 %v681
        %v793 = vpop.f32.mrf.mxu0
        %v794 = vadd.f32 0.0, %v793
        %795 = vmatmul.f32.gmra.mxu0 %v684
        %v796 = vpop.f32.mrf.mxu0
        %v797 = vadd.f32 0.0, %v796
        %798 = vmatmul.f32.gmra.mxu0 %v687
        %v799 = vpop.f32.mrf.mxu0
        %v800 = vadd.f32 0.0, %v799
        %801 = vmatmul.f32.gmra.mxu0 %v690
        %v802 = vpop.f32.mrf.mxu0
        %v803 = vadd.f32 0.0, %v802
        %804 = vmatmul.f32.gmra.mxu0 %v693
        %v805 = vpop.f32.mrf.mxu0
        %v806 = vadd.f32 0.0, %v805
        %807 = vmatmul.f32.gmra.mxu0 %v696
        %v808 = vpop.f32.mrf.mxu0
        %v809 = vadd.f32 0.0, %v808
        %810 = vmatmul.f32.gmra.mxu0 %v699
        %v811 = vpop.f32.mrf.mxu0
        %v812 = vadd.f32 0.0, %v811
        %813 = vdwg.mxu0
        %v815 = vsel %vm652, %v284, 0
        %v818 = vsel %vm652, %v285, 0
        %v821 = vsel %vm652, %v286, 0
        %v824 = vsel %vm652, %v287, 0
        %v827 = vsel %vm652, %v288, 0
        %v830 = vsel %vm652, %v289, 0
        %v833 = vsel %vm652, %v290, 0
        %v836 = vsel %vm652, %v291, 0
        %v839 = vsel %vm652, %v292, 0
        %v842 = vsel %vm652, %v293, 0
        %v845 = vsel %vm652, %v294, 0
        %v848 = vsel %vm652, %v295, 0
        %v851 = vsel %vm652, %v296, 0
        %v854 = vsel %vm652, %v297, 0
        %v857 = vsel %vm652, %v298, 0
        %v860 = vsel %vm652, %v299, 0
        %v863 = vsel %vm652, %v412, 0
        %v866 = vsel %vm652, %v413, 0
        %v869 = vsel %vm652, %v414, 0
        %v872 = vsel %vm652, %v415, 0
        %v875 = vsel %vm652, %v416, 0
        %v878 = vsel %vm652, %v417, 0
        %v881 = vsel %vm652, %v418, 0
        %v884 = vsel %vm652, %v419, 0
        %v887 = vsel %vm652, %v420, 0
        %v890 = vsel %vm652, %v421, 0
        %v893 = vsel %vm652, %v422, 0
        %v896 = vsel %vm652, %v423, 0
        %v899 = vsel %vm652, %v424, 0
        %v902 = vsel %vm652, %v425, 0
        %v905 = vsel %vm652, %v426, 0
        %v908 = vsel %vm652, %v427, 0
        %910 = vmatpush.xpose.msra.mxu0 %v908
        %911 = vmatpush.xpose.msra.mxu0 %v905
        %912 = vmatpush.xpose.msra.mxu0 %v902
        %913 = vmatpush.xpose.msra.mxu0 %v899
        %914 = vmatpush.xpose.msra.mxu0 %v896
        %915 = vmatpush.xpose.msra.mxu0 %v893
        %916 = vmatpush.xpose.msra.mxu0 %v890
        %917 = vmatpush.xpose.msra.mxu0 %v887
        %918 = vmatpush.xpose.msra.mxu0 %v884
        %919 = vmatpush.xpose.msra.mxu0 %v881
        %920 = vmatpush.xpose.msra.mxu0 %v878
        %921 = vmatpush.xpose.msra.mxu0 %v875
        %922 = vmatpush.xpose.msra.mxu0 %v872
        %923 = vmatpush.xpose.msra.mxu0 %v869
        %924 = vmatpush.xpose.msra.mxu0 %v866
        %925 = vmatpush.xpose.msra.mxu0 %v863
        %926 = vmatmul.f32.gmra.mxu0 %v815
        %v927 = vpop.f32.mrf.mxu0
        %v928 = vadd.f32 0.0, %v927
        %929 = vmatmul.f32.gmra.mxu0 %v818
        %v930 = vpop.f32.mrf.mxu0
        %v931 = vadd.f32 0.0, %v930
        %932 = vmatmul.f32.gmra.mxu0 %v821
        %v933 = vpop.f32.mrf.mxu0
        %v934 = vadd.f32 0.0, %v933
        %935 = vmatmul.f32.gmra.mxu0 %v824
        %v936 = vpop.f32.mrf.mxu0
        %v937 = vadd.f32 0.0, %v936
        %938 = vmatmul.f32.gmra.mxu0 %v827
        %v939 = vpop.f32.mrf.mxu0
        %v940 = vadd.f32 0.0, %v939
        %941 = vmatmul.f32.gmra.mxu0 %v830
        %v942 = vpop.f32.mrf.mxu0
        %v943 = vadd.f32 0.0, %v942
        %944 = vmatmul.f32.gmra.mxu0 %v833
        %v945 = vpop.f32.mrf.mxu0
        %v946 = vadd.f32 0.0, %v945
        %947 = vmatmul.f32.gmra.mxu0 %v836
        %v948 = vpop.f32.mrf.mxu0
        %v949 = vadd.f32 0.0, %v948
        %950 = vmatmul.f32.gmra.mxu0 %v839
        %v951 = vpop.f32.mrf.mxu0
        %v952 = vadd.f32 0.0, %v951
        %953 = vmatmul.f32.gmra.mxu0 %v842
        %v954 = vpop.f32.mrf.mxu0
        %v955 = vadd.f32 0.0, %v954
        %956 = vmatmul.f32.gmra.mxu0 %v845
        %v957 = vpop.f32.mrf.mxu0
        %v958 = vadd.f32 0.0, %v957
        %959 = vmatmul.f32.gmra.mxu0 %v848
        %v960 = vpop.f32.mrf.mxu0
        %v961 = vadd.f32 0.0, %v960
        %962 = vmatmul.f32.gmra.mxu0 %v851
        %v963 = vpop.f32.mrf.mxu0
        %v964 = vadd.f32 0.0, %v963
        %965 = vmatmul.f32.gmra.mxu0 %v854
        %v966 = vpop.f32.mrf.mxu0
        %v967 = vadd.f32 0.0, %v966
        %968 = vmatmul.f32.gmra.mxu0 %v857
        %v969 = vpop.f32.mrf.mxu0
        %v970 = vadd.f32 0.0, %v969
        %971 = vmatmul.f32.gmra.mxu0 %v860
        %v972 = vpop.f32.mrf.mxu0
        %v973 = vadd.f32 0.0, %v972
        %974 = vdwg.mxu0
        %v976 = vsel %vm652, %v300, 0
        %v979 = vsel %vm652, %v301, 0
        %v982 = vsel %vm652, %v302, 0
        %v985 = vsel %vm652, %v303, 0
        %v988 = vsel %vm652, %v304, 0
        %v991 = vsel %vm652, %v305, 0
        %v994 = vsel %vm652, %v306, 0
        %v997 = vsel %vm652, %v307, 0
        %v1000 = vsel %vm652, %v308, 0
        %v1003 = vsel %vm652, %v309, 0
        %v1006 = vsel %vm652, %v310, 0
        %v1009 = vsel %vm652, %v311, 0
        %v1012 = vsel %vm652, %v312, 0
        %v1015 = vsel %vm652, %v313, 0
        %v1018 = vsel %vm652, %v314, 0
        %v1021 = vsel %vm652, %v315, 0
        %v1024 = vsel %vm652, %v428, 0
        %v1027 = vsel %vm652, %v429, 0
        %v1030 = vsel %vm652, %v430, 0
        %v1033 = vsel %vm652, %v431, 0
        %v1036 = vsel %vm652, %v432, 0
        %v1039 = vsel %vm652, %v433, 0
        %v1042 = vsel %vm652, %v434, 0
        %v1045 = vsel %vm652, %v435, 0
        %v1048 = vsel %vm652, %v436, 0
        %v1051 = vsel %vm652, %v437, 0
        %v1054 = vsel %vm652, %v438, 0
        %v1057 = vsel %vm652, %v439, 0
        %v1060 = vsel %vm652, %v440, 0
        %v1063 = vsel %vm652, %v441, 0
        %v1066 = vsel %vm652, %v442, 0
        %v1069 = vsel %vm652, %v443, 0
        %1071 = vmatpush.xpose.msra.mxu0 %v1069
        %1072 = vmatpush.xpose.msra.mxu0 %v1066
        %1073 = vmatpush.xpose.msra.mxu0 %v1063
        %1074 = vmatpush.xpose.msra.mxu0 %v1060
        %1075 = vmatpush.xpose.msra.mxu0 %v1057
        %1076 = vmatpush.xpose.msra.mxu0 %v1054
        %1077 = vmatpush.xpose.msra.mxu0 %v1051
        %1078 = vmatpush.xpose.msra.mxu0 %v1048
        %1079 = vmatpush.xpose.msra.mxu0 %v1045
        %1080 = vmatpush.xpose.msra.mxu0 %v1042
        %1081 = vmatpush.xpose.msra.mxu0 %v1039
        %1082 = vmatpush.xpose.msra.mxu0 %v1036
        %1083 = vmatpush.xpose.msra.mxu0 %v1033
        %1084 = vmatpush.xpose.msra.mxu0 %v1030
        %1085 = vmatpush.xpose.msra.mxu0 %v1027
        %1086 = vmatpush.xpose.msra.mxu0 %v1024
        %1087 = vmatmul.f32.gmra.mxu0 %v976
        %v1088 = vpop.f32.mrf.mxu0
        %v1089 = vadd.f32 0.0, %v1088
        %1090 = vmatmul.f32.gmra.mxu0 %v979
        %v1091 = vpop.f32.mrf.mxu0
        %v1092 = vadd.f32 0.0, %v1091
        %1093 = vmatmul.f32.gmra.mxu0 %v982
        %v1094 = vpop.f32.mrf.mxu0
        %v1095 = vadd.f32 0.0, %v1094
        %1096 = vmatmul.f32.gmra.mxu0 %v985
        %v1097 = vpop.f32.mrf.mxu0
        %v1098 = vadd.f32 0.0, %v1097
        %1099 = vmatmul.f32.gmra.mxu0 %v988
        %v1100 = vpop.f32.mrf.mxu0
        %v1101 = vadd.f32 0.0, %v1100
        %1102 = vmatmul.f32.gmra.mxu0 %v991
        %v1103 = vpop.f32.mrf.mxu0
        %v1104 = vadd.f32 0.0, %v1103
        %1105 = vmatmul.f32.gmra.mxu0 %v994
        %v1106 = vpop.f32.mrf.mxu0
        %v1107 = vadd.f32 0.0, %v1106
        %1108 = vmatmul.f32.gmra.mxu0 %v997
        %v1109 = vpop.f32.mrf.mxu0
        %v1110 = vadd.f32 0.0, %v1109
        %1111 = vmatmul.f32.gmra.mxu0 %v1000
        %v1112 = vpop.f32.mrf.mxu0
        %v1113 = vadd.f32 0.0, %v1112
        %1114 = vmatmul.f32.gmra.mxu0 %v1003
        %v1115 = vpop.f32.mrf.mxu0
        %v1116 = vadd.f32 0.0, %v1115
        %1117 = vmatmul.f32.gmra.mxu0 %v1006
        %v1118 = vpop.f32.mrf.mxu0
        %v1119 = vadd.f32 0.0, %v1118
        %1120 = vmatmul.f32.gmra.mxu0 %v1009
        %v1121 = vpop.f32.mrf.mxu0
        %v1122 = vadd.f32 0.0, %v1121
        %1123 = vmatmul.f32.gmra.mxu0 %v1012
        %v1124 = vpop.f32.mrf.mxu0
        %v1125 = vadd.f32 0.0, %v1124
        %1126 = vmatmul.f32.gmra.mxu0 %v1015
        %v1127 = vpop.f32.mrf.mxu0
        %v1128 = vadd.f32 0.0, %v1127
        %1129 = vmatmul.f32.gmra.mxu0 %v1018
        %v1130 = vpop.f32.mrf.mxu0
        %v1131 = vadd.f32 0.0, %v1130
        %1132 = vmatmul.f32.gmra.mxu0 %v1021
        %v1133 = vpop.f32.mrf.mxu0
        %v1134 = vadd.f32 0.0, %v1133
        %1135 = vdwg.mxu0
        %v1137 = vsel %vm652, %v316, 0
        %v1140 = vsel %vm652, %v317, 0
        %v1143 = vsel %vm652, %v318, 0
        %v1146 = vsel %vm652, %v319, 0
        %v1149 = vsel %vm652, %v320, 0
        %v1152 = vsel %vm652, %v321, 0
        %v1155 = vsel %vm652, %v322, 0
        %v1158 = vsel %vm652, %v323, 0
        %v1161 = vsel %vm652, %v324, 0
        %v1164 = vsel %vm652, %v325, 0
        %v1167 = vsel %vm652, %v326, 0
        %v1170 = vsel %vm652, %v327, 0
        %v1173 = vsel %vm652, %v328, 0
        %v1176 = vsel %vm652, %v329, 0
        %v1179 = vsel %vm652, %v330, 0
        %v1182 = vsel %vm652, %v331, 0
        %v1185 = vsel %vm652, %v444, 0
        %v1188 = vsel %vm652, %v445, 0
        %v1191 = vsel %vm652, %v446, 0
        %v1194 = vsel %vm652, %v447, 0
        %v1197 = vsel %vm652, %v448, 0
        %v1200 = vsel %vm652, %v449, 0
        %v1203 = vsel %vm652, %v450, 0
        %v1206 = vsel %vm652, %v451, 0
        %v1209 = vsel %vm652, %v452, 0
        %v1212 = vsel %vm652, %v453, 0
        %v1215 = vsel %vm652, %v454, 0
        %v1218 = vsel %vm652, %v455, 0
        %v1221 = vsel %vm652, %v456, 0
        %v1224 = vsel %vm652, %v457, 0
        %v1227 = vsel %vm652, %v458, 0
        %v1230 = vsel %vm652, %v459, 0
        %1232 = vmatpush.xpose.msra.mxu0 %v1230
        %1233 = vmatpush.xpose.msra.mxu0 %v1227
        %1234 = vmatpush.xpose.msra.mxu0 %v1224
        %1235 = vmatpush.xpose.msra.mxu0 %v1221
        %1236 = vmatpush.xpose.msra.mxu0 %v1218
        %1237 = vmatpush.xpose.msra.mxu0 %v1215
        %1238 = vmatpush.xpose.msra.mxu0 %v1212
        %1239 = vmatpush.xpose.msra.mxu0 %v1209
        %1240 = vmatpush.xpose.msra.mxu0 %v1206
        %1241 = vmatpush.xpose.msra.mxu0 %v1203
        %1242 = vmatpush.xpose.msra.mxu0 %v1200
        %1243 = vmatpush.xpose.msra.mxu0 %v1197
        %1244 = vmatpush.xpose.msra.mxu0 %v1194
        %1245 = vmatpush.xpose.msra.mxu0 %v1191
        %1246 = vmatpush.xpose.msra.mxu0 %v1188
        %1247 = vmatpush.xpose.msra.mxu0 %v1185
        %1248 = vmatmul.f32.gmra.mxu0 %v1137
        %v1249 = vpop.f32.mrf.mxu0
        %v1250 = vadd.f32 0.0, %v1249
        %1251 = vmatmul.f32.gmra.mxu0 %v1140
        %v1252 = vpop.f32.mrf.mxu0
        %v1253 = vadd.f32 0.0, %v1252
        %1254 = vmatmul.f32.gmra.mxu0 %v1143
        %v1255 = vpop.f32.mrf.mxu0
        %v1256 = vadd.f32 0.0, %v1255
        %1257 = vmatmul.f32.gmra.mxu0 %v1146
        %v1258 = vpop.f32.mrf.mxu0
        %v1259 = vadd.f32 0.0, %v1258
        %1260 = vmatmul.f32.gmra.mxu0 %v1149
        %v1261 = vpop.f32.mrf.mxu0
        %v1262 = vadd.f32 0.0, %v1261
        %1263 = vmatmul.f32.gmra.mxu0 %v1152
        %v1264 = vpop.f32.mrf.mxu0
        %v1265 = vadd.f32 0.0, %v1264
        %1266 = vmatmul.f32.gmra.mxu0 %v1155
        %v1267 = vpop.f32.mrf.mxu0
        %v1268 = vadd.f32 0.0, %v1267
        %1269 = vmatmul.f32.gmra.mxu0 %v1158
        %v1270 = vpop.f32.mrf.mxu0
        %v1271 = vadd.f32 0.0, %v1270
        %1272 = vmatmul.f32.gmra.mxu0 %v1161
        %v1273 = vpop.f32.mrf.mxu0
        %v1274 = vadd.f32 0.0, %v1273
        %1275 = vmatmul.f32.gmra.mxu0 %v1164
        %v1276 = vpop.f32.mrf.mxu0
        %v1277 = vadd.f32 0.0, %v1276
        %1278 = vmatmul.f32.gmra.mxu0 %v1167
        %v1279 = vpop.f32.mrf.mxu0
        %v1280 = vadd.f32 0.0, %v1279
        %1281 = vmatmul.f32.gmra.mxu0 %v1170
        %v1282 = vpop.f32.mrf.mxu0
        %v1283 = vadd.f32 0.0, %v1282
        %1284 = vmatmul.f32.gmra.mxu0 %v1173
        %v1285 = vpop.f32.mrf.mxu0
        %v1286 = vadd.f32 0.0, %v1285
        %1287 = vmatmul.f32.gmra.mxu0 %v1176
        %v1288 = vpop.f32.mrf.mxu0
        %v1289 = vadd.f32 0.0, %v1288
        %1290 = vmatmul.f32.gmra.mxu0 %v1179
        %v1291 = vpop.f32.mrf.mxu0
        %v1292 = vadd.f32 0.0, %v1291
        %1293 = vmatmul.f32.gmra.mxu0 %v1182
        %v1294 = vpop.f32.mrf.mxu0
        %v1295 = vadd.f32 0.0, %v1294
        %1296 = vdwg.mxu0
        %v1298 = vsel %vm652, %v332, 0
        %v1301 = vsel %vm652, %v333, 0
        %v1304 = vsel %vm652, %v334, 0
        %v1307 = vsel %vm652, %v335, 0
        %v1310 = vsel %vm652, %v336, 0
        %v1313 = vsel %vm652, %v337, 0
        %v1316 = vsel %vm652, %v338, 0
        %v1319 = vsel %vm652, %v339, 0
        %v1322 = vsel %vm652, %v340, 0
        %v1325 = vsel %vm652, %v341, 0
        %v1328 = vsel %vm652, %v342, 0
        %v1331 = vsel %vm652, %v343, 0
        %v1334 = vsel %vm652, %v344, 0
        %v1337 = vsel %vm652, %v345, 0
        %v1340 = vsel %vm652, %v346, 0
        %v1343 = vsel %vm652, %v347, 0
        %v1346 = vsel %vm652, %v460, 0
        %v1349 = vsel %vm652, %v461, 0
        %v1352 = vsel %vm652, %v462, 0
        %v1355 = vsel %vm652, %v463, 0
        %v1358 = vsel %vm652, %v464, 0
        %v1361 = vsel %vm652, %v465, 0
        %v1364 = vsel %vm652, %v466, 0
        %v1367 = vsel %vm652, %v467, 0
        %v1370 = vsel %vm652, %v468, 0
        %v1373 = vsel %vm652, %v469, 0
        %v1376 = vsel %vm652, %v470, 0
        %v1379 = vsel %vm652, %v471, 0
        %v1382 = vsel %vm652, %v472, 0
        %v1385 = vsel %vm652, %v473, 0
        %v1388 = vsel %vm652, %v474, 0
        %v1391 = vsel %vm652, %v475, 0
        %1393 = vmatpush.xpose.msra.mxu0 %v1391
        %1394 = vmatpush.xpose.msra.mxu0 %v1388
        %1395 = vmatpush.xpose.msra.mxu0 %v1385
        %1396 = vmatpush.xpose.msra.mxu0 %v1382
        %1397 = vmatpush.xpose.msra.mxu0 %v1379
        %1398 = vmatpush.xpose.msra.mxu0 %v1376
        %1399 = vmatpush.xpose.msra.mxu0 %v1373
        %1400 = vmatpush.xpose.msra.mxu0 %v1370
        %1401 = vmatpush.xpose.msra.mxu0 %v1367
        %1402 = vmatpush.xpose.msra.mxu0 %v1364
        %1403 = vmatpush.xpose.msra.mxu0 %v1361
        %1404 = vmatpush.xpose.msra.mxu0 %v1358
        %1405 = vmatpush.xpose.msra.mxu0 %v1355
        %1406 = vmatpush.xpose.msra.mxu0 %v1352
        %1407 = vmatpush.xpose.msra.mxu0 %v1349
        %1408 = vmatpush.xpose.msra.mxu0 %v1346
        %1409 = vmatmul.f32.gmra.mxu0 %v1298
        %v1410 = vpop.f32.mrf.mxu0
        %v1411 = vadd.f32 0.0, %v1410
        %1412 = vmatmul.f32.gmra.mxu0 %v1301
        %v1413 = vpop.f32.mrf.mxu0
        %v1414 = vadd.f32 0.0, %v1413
        %1415 = vmatmul.f32.gmra.mxu0 %v1304
        %v1416 = vpop.f32.mrf.mxu0
        %v1417 = vadd.f32 0.0, %v1416
        %1418 = vmatmul.f32.gmra.mxu0 %v1307
        %v1419 = vpop.f32.mrf.mxu0
        %v1420 = vadd.f32 0.0, %v1419
        %1421 = vmatmul.f32.gmra.mxu0 %v1310
        %v1422 = vpop.f32.mrf.mxu0
        %v1423 = vadd.f32 0.0, %v1422
        %1424 = vmatmul.f32.gmra.mxu0 %v1313
        %v1425 = vpop.f32.mrf.mxu0
        %v1426 = vadd.f32 0.0, %v1425
        %1427 = vmatmul.f32.gmra.mxu0 %v1316
        %v1428 = vpop.f32.mrf.mxu0
        %v1429 = vadd.f32 0.0, %v1428
        %1430 = vmatmul.f32.gmra.mxu0 %v1319
        %v1431 = vpop.f32.mrf.mxu0
        %v1432 = vadd.f32 0.0, %v1431
        %1433 = vmatmul.f32.gmra.mxu0 %v1322
        %v1434 = vpop.f32.mrf.mxu0
        %v1435 = vadd.f32 0.0, %v1434
        %1436 = vmatmul.f32.gmra.mxu0 %v1325
        %v1437 = vpop.f32.mrf.mxu0
        %v1438 = vadd.f32 0.0, %v1437
        %1439 = vmatmul.f32.gmra.mxu0 %v1328
        %v1440 = vpop.f32.mrf.mxu0
        %v1441 = vadd.f32 0.0, %v1440
        %1442 = vmatmul.f32.gmra.mxu0 %v1331
        %v1443 = vpop.f32.mrf.mxu0
        %v1444 = vadd.f32 0.0, %v1443
        %1445 = vmatmul.f32.gmra.mxu0 %v1334
        %v1446 = vpop.f32.mrf.mxu0
        %v1447 = vadd.f32 0.0, %v1446
        %1448 = vmatmul.f32.gmra.mxu0 %v1337
        %v1449 = vpop.f32.mrf.mxu0
        %v1450 = vadd.f32 0.0, %v1449
        %1451 = vmatmul.f32.gmra.mxu0 %v1340
        %v1452 = vpop.f32.mrf.mxu0
        %v1453 = vadd.f32 0.0, %v1452
        %1454 = vmatmul.f32.gmra.mxu0 %v1343
        %v1455 = vpop.f32.mrf.mxu0
        %v1456 = vadd.f32 0.0, %v1455
        %1457 = vdwg.mxu0
        %v1459 = vsel %vm652, %v348, 0
        %v1462 = vsel %vm652, %v349, 0
        %v1465 = vsel %vm652, %v350, 0
        %v1468 = vsel %vm652, %v351, 0
        %v1471 = vsel %vm652, %v352, 0
        %v1474 = vsel %vm652, %v353, 0
        %v1477 = vsel %vm652, %v354, 0
        %v1480 = vsel %vm652, %v355, 0
        %v1483 = vsel %vm652, %v356, 0
        %v1486 = vsel %vm652, %v357, 0
        %v1489 = vsel %vm652, %v358, 0
        %v1492 = vsel %vm652, %v359, 0
        %v1495 = vsel %vm652, %v360, 0
        %v1498 = vsel %vm652, %v361, 0
        %v1501 = vsel %vm652, %v362, 0
        %v1504 = vsel %vm652, %v363, 0
        %v1507 = vsel %vm652, %v476, 0
        %v1510 = vsel %vm652, %v477, 0
        %v1513 = vsel %vm652, %v478, 0
        %v1516 = vsel %vm652, %v479, 0
        %v1519 = vsel %vm652, %v480, 0
        %v1522 = vsel %vm652, %v481, 0
        %v1525 = vsel %vm652, %v482, 0
        %v1528 = vsel %vm652, %v483, 0
        %v1531 = vsel %vm652, %v484, 0
        %v1534 = vsel %vm652, %v485, 0
        %v1537 = vsel %vm652, %v486, 0
        %v1540 = vsel %vm652, %v487, 0
        %v1543 = vsel %vm652, %v488, 0
        %v1546 = vsel %vm652, %v489, 0
        %v1549 = vsel %vm652, %v490, 0
        %v1552 = vsel %vm652, %v491, 0
        %1554 = vmatpush.xpose.msra.mxu0 %v1552
        %1555 = vmatpush.xpose.msra.mxu0 %v1549
        %1556 = vmatpush.xpose.msra.mxu0 %v1546
        %1557 = vmatpush.xpose.msra.mxu0 %v1543
        %1558 = vmatpush.xpose.msra.mxu0 %v1540
        %1559 = vmatpush.xpose.msra.mxu0 %v1537
        %1560 = vmatpush.xpose.msra.mxu0 %v1534
        %1561 = vmatpush.xpose.msra.mxu0 %v1531
        %1562 = vmatpush.xpose.msra.mxu0 %v1528
        %1563 = vmatpush.xpose.msra.mxu0 %v1525
        %1564 = vmatpush.xpose.msra.mxu0 %v1522
        %1565 = vmatpush.xpose.msra.mxu0 %v1519
        %1566 = vmatpush.xpose.msra.mxu0 %v1516
        %1567 = vmatpush.xpose.msra.mxu0 %v1513
        %1568 = vmatpush.xpose.msra.mxu0 %v1510
        %1569 = vmatpush.xpose.msra.mxu0 %v1507
        %1570 = vmatmul.f32.gmra.mxu0 %v1459
        %v1571 = vpop.f32.mrf.mxu0
        %v1572 = vadd.f32 0.0, %v1571
        %1573 = vmatmul.f32.gmra.mxu0 %v1462
        %v1574 = vpop.f32.mrf.mxu0
        %v1575 = vadd.f32 0.0, %v1574
        %1576 = vmatmul.f32.gmra.mxu0 %v1465
        %v1577 = vpop.f32.mrf.mxu0
        %v1578 = vadd.f32 0.0, %v1577
        %1579 = vmatmul.f32.gmra.mxu0 %v1468
        %v1580 = vpop.f32.mrf.mxu0
        %v1581 = vadd.f32 0.0, %v1580
        %1582 = vmatmul.f32.gmra.mxu0 %v1471
        %v1583 = vpop.f32.mrf.mxu0
        %v1584 = vadd.f32 0.0, %v1583
        %1585 = vmatmul.f32.gmra.mxu0 %v1474
        %v1586 = vpop.f32.mrf.mxu0
        %v1587 = vadd.f32 0.0, %v1586
        %1588 = vmatmul.f32.gmra.mxu0 %v1477
        %v1589 = vpop.f32.mrf.mxu0
        %v1590 = vadd.f32 0.0, %v1589
        %1591 = vmatmul.f32.gmra.mxu0 %v1480
        %v1592 = vpop.f32.mrf.mxu0
        %v1593 = vadd.f32 0.0, %v1592
        %1594 = vmatmul.f32.gmra.mxu0 %v1483
        %v1595 = vpop.f32.mrf.mxu0
        %v1596 = vadd.f32 0.0, %v1595
        %1597 = vmatmul.f32.gmra.mxu0 %v1486
        %v1598 = vpop.f32.mrf.mxu0
        %v1599 = vadd.f32 0.0, %v1598
        %1600 = vmatmul.f32.gmra.mxu0 %v1489
        %v1601 = vpop.f32.mrf.mxu0
        %v1602 = vadd.f32 0.0, %v1601
        %1603 = vmatmul.f32.gmra.mxu0 %v1492
        %v1604 = vpop.f32.mrf.mxu0
        %v1605 = vadd.f32 0.0, %v1604
        %1606 = vmatmul.f32.gmra.mxu0 %v1495
        %v1607 = vpop.f32.mrf.mxu0
        %v1608 = vadd.f32 0.0, %v1607
        %1609 = vmatmul.f32.gmra.mxu0 %v1498
        %v1610 = vpop.f32.mrf.mxu0
        %v1611 = vadd.f32 0.0, %v1610
        %1612 = vmatmul.f32.gmra.mxu0 %v1501
        %v1613 = vpop.f32.mrf.mxu0
        %v1614 = vadd.f32 0.0, %v1613
        %1615 = vmatmul.f32.gmra.mxu0 %v1504
        %v1616 = vpop.f32.mrf.mxu0
        %v1617 = vadd.f32 0.0, %v1616
        %1618 = vdwg.mxu0
        %v1620 = vsel %vm652, %v364, 0
        %v1623 = vsel %vm652, %v365, 0
        %v1626 = vsel %vm652, %v366, 0
        %v1629 = vsel %vm652, %v367, 0
        %v1632 = vsel %vm652, %v368, 0
        %v1635 = vsel %vm652, %v369, 0
        %v1638 = vsel %vm652, %v370, 0
        %v1641 = vsel %vm652, %v371, 0
        %v1644 = vsel %vm652, %v372, 0
        %v1647 = vsel %vm652, %v373, 0
        %v1650 = vsel %vm652, %v374, 0
        %v1653 = vsel %vm652, %v375, 0
        %v1656 = vsel %vm652, %v376, 0
        %v1659 = vsel %vm652, %v377, 0
        %v1662 = vsel %vm652, %v378, 0
        %v1665 = vsel %vm652, %v379, 0
        %v1668 = vsel %vm652, %v492, 0
        %v1671 = vsel %vm652, %v493, 0
        %v1674 = vsel %vm652, %v494, 0
        %v1677 = vsel %vm652, %v495, 0
        %v1680 = vsel %vm652, %v496, 0
        %v1683 = vsel %vm652, %v497, 0
        %v1686 = vsel %vm652, %v498, 0
        %v1689 = vsel %vm652, %v499, 0
        %v1692 = vsel %vm652, %v500, 0
        %v1695 = vsel %vm652, %v501, 0
        %v1698 = vsel %vm652, %v502, 0
        %v1701 = vsel %vm652, %v503, 0
        %v1704 = vsel %vm652, %v504, 0
        %v1707 = vsel %vm652, %v505, 0
        %v1710 = vsel %vm652, %v506, 0
        %v1713 = vsel %vm652, %v507, 0
        %1715 = vmatpush.xpose.msra.mxu0 %v1713
        %1716 = vmatpush.xpose.msra.mxu0 %v1710
        %1717 = vmatpush.xpose.msra.mxu0 %v1707
        %1718 = vmatpush.xpose.msra.mxu0 %v1704
        %1719 = vmatpush.xpose.msra.mxu0 %v1701
        %1720 = vmatpush.xpose.msra.mxu0 %v1698
        %1721 = vmatpush.xpose.msra.mxu0 %v1695
        %1722 = vmatpush.xpose.msra.mxu0 %v1692
        %1723 = vmatpush.xpose.msra.mxu0 %v1689
        %1724 = vmatpush.xpose.msra.mxu0 %v1686
        %1725 = vmatpush.xpose.msra.mxu0 %v1683
        %1726 = vmatpush.xpose.msra.mxu0 %v1680
        %1727 = vmatpush.xpose.msra.mxu0 %v1677
        %1728 = vmatpush.xpose.msra.mxu0 %v1674
        %1729 = vmatpush.xpose.msra.mxu0 %v1671
        %1730 = vmatpush.xpose.msra.mxu0 %v1668
        %1731 = vmatmul.f32.gmra.mxu0 %v1620
        %v1732 = vpop.f32.mrf.mxu0
        %v1733 = vadd.f32 0.0, %v1732
        %1734 = vmatmul.f32.gmra.mxu0 %v1623
        %v1735 = vpop.f32.mrf.mxu0
        %v1736 = vadd.f32 0.0, %v1735
        %1737 = vmatmul.f32.gmra.mxu0 %v1626
        %v1738 = vpop.f32.mrf.mxu0
        %v1739 = vadd.f32 0.0, %v1738
        %1740 = vmatmul.f32.gmra.mxu0 %v1629
        %v1741 = vpop.f32.mrf.mxu0
        %v1742 = vadd.f32 0.0, %v1741
        %1743 = vmatmul.f32.gmra.mxu0 %v1632
        %v1744 = vpop.f32.mrf.mxu0
        %v1745 = vadd.f32 0.0, %v1744
        %1746 = vmatmul.f32.gmra.mxu0 %v1635
        %v1747 = vpop.f32.mrf.mxu0
        %v1748 = vadd.f32 0.0, %v1747
        %1749 = vmatmul.f32.gmra.mxu0 %v1638
        %v1750 = vpop.f32.mrf.mxu0
        %v1751 = vadd.f32 0.0, %v1750
        %1752 = vmatmul.f32.gmra.mxu0 %v1641
        %v1753 = vpop.f32.mrf.mxu0
        %v1754 = vadd.f32 0.0, %v1753
        %1755 = vmatmul.f32.gmra.mxu0 %v1644
        %v1756 = vpop.f32.mrf.mxu0
        %v1757 = vadd.f32 0.0, %v1756
        %1758 = vmatmul.f32.gmra.mxu0 %v1647
        %v1759 = vpop.f32.mrf.mxu0
        %v1760 = vadd.f32 0.0, %v1759
        %1761 = vmatmul.f32.gmra.mxu0 %v1650
        %v1762 = vpop.f32.mrf.mxu0
        %v1763 = vadd.f32 0.0, %v1762
        %1764 = vmatmul.f32.gmra.mxu0 %v1653
        %v1765 = vpop.f32.mrf.mxu0
        %v1766 = vadd.f32 0.0, %v1765
        %1767 = vmatmul.f32.gmra.mxu0 %v1656
        %v1768 = vpop.f32.mrf.mxu0
        %v1769 = vadd.f32 0.0, %v1768
        %1770 = vmatmul.f32.gmra.mxu0 %v1659
        %v1771 = vpop.f32.mrf.mxu0
        %v1772 = vadd.f32 0.0, %v1771
        %1773 = vmatmul.f32.gmra.mxu0 %v1662
        %v1774 = vpop.f32.mrf.mxu0
        %v1775 = vadd.f32 0.0, %v1774
        %1776 = vmatmul.f32.gmra.mxu0 %v1665
        %v1777 = vpop.f32.mrf.mxu0
        %v1778 = vadd.f32 0.0, %v1777
        %1779 = vdwg.mxu0
        %v1781 = vsel %vm652, %v380, 0
        %v1784 = vsel %vm652, %v381, 0
        %v1787 = vsel %vm652, %v382, 0
        %v1790 = vsel %vm652, %v383, 0
        %v1793 = vsel %vm652, %v384, 0
        %v1796 = vsel %vm652, %v385, 0
        %v1799 = vsel %vm652, %v386, 0
        %v1802 = vsel %vm652, %v387, 0
        %v1805 = vsel %vm652, %v388, 0
        %v1808 = vsel %vm652, %v389, 0
        %v1811 = vsel %vm652, %v390, 0
        %v1814 = vsel %vm652, %v391, 0
        %v1817 = vsel %vm652, %v392, 0
        %v1820 = vsel %vm652, %v393, 0
        %v1823 = vsel %vm652, %v394, 0
        %v1826 = vsel %vm652, %v395, 0
        %v1829 = vsel %vm652, %v508, 0
        %v1832 = vsel %vm652, %v509, 0
        %v1835 = vsel %vm652, %v510, 0
        %v1838 = vsel %vm652, %v511, 0
        %v1841 = vsel %vm652, %v512, 0
        %v1844 = vsel %vm652, %v513, 0
        %v1847 = vsel %vm652, %v514, 0
        %v1850 = vsel %vm652, %v515, 0
        %v1853 = vsel %vm652, %v516, 0
        %v1856 = vsel %vm652, %v517, 0
        %v1859 = vsel %vm652, %v518, 0
        %v1862 = vsel %vm652, %v519, 0
        %v1865 = vsel %vm652, %v520, 0
        %v1868 = vsel %vm652, %v521, 0
        %v1871 = vsel %vm652, %v522, 0
        %v1874 = vsel %vm652, %v523, 0
        %1876 = vmatpush.xpose.msra.mxu0 %v1874
        %1877 = vmatpush.xpose.msra.mxu0 %v1871
        %1878 = vmatpush.xpose.msra.mxu0 %v1868
        %1879 = vmatpush.xpose.msra.mxu0 %v1865
        %1880 = vmatpush.xpose.msra.mxu0 %v1862
        %1881 = vmatpush.xpose.msra.mxu0 %v1859
        %1882 = vmatpush.xpose.msra.mxu0 %v1856
        %1883 = vmatpush.xpose.msra.mxu0 %v1853
        %1884 = vmatpush.xpose.msra.mxu0 %v1850
        %1885 = vmatpush.xpose.msra.mxu0 %v1847
        %1886 = vmatpush.xpose.msra.mxu0 %v1844
        %1887 = vmatpush.xpose.msra.mxu0 %v1841
        %1888 = vmatpush.xpose.msra.mxu0 %v1838
        %1889 = vmatpush.xpose.msra.mxu0 %v1835
        %1890 = vmatpush.xpose.msra.mxu0 %v1832
        %1891 = vmatpush.xpose.msra.mxu0 %v1829
        %1892 = vmatmul.f32.gmra.mxu0 %v1781
        %v1893 = vpop.f32.mrf.mxu0
        %v1894 = vadd.f32 0.0, %v1893
        %1895 = vmatmul.f32.gmra.mxu0 %v1784
        %v1896 = vpop.f32.mrf.mxu0
        %v1897 = vadd.f32 0.0, %v1896
        %1898 = vmatmul.f32.gmra.mxu0 %v1787
        %v1899 = vpop.f32.mrf.mxu0
        %v1900 = vadd.f32 0.0, %v1899
        %1901 = vmatmul.f32.gmra.mxu0 %v1790
        %v1902 = vpop.f32.mrf.mxu0
        %v1903 = vadd.f32 0.0, %v1902
        %1904 = vmatmul.f32.gmra.mxu0 %v1793
        %v1905 = vpop.f32.mrf.mxu0
        %v1906 = vadd.f32 0.0, %v1905
        %1907 = vmatmul.f32.gmra.mxu0 %v1796
        %v1908 = vpop.f32.mrf.mxu0
        %v1909 = vadd.f32 0.0, %v1908
        %1910 = vmatmul.f32.gmra.mxu0 %v1799
        %v1911 = vpop.f32.mrf.mxu0
        %v1912 = vadd.f32 0.0, %v1911
        %1913 = vmatmul.f32.gmra.mxu0 %v1802
        %v1914 = vpop.f32.mrf.mxu0
        %v1915 = vadd.f32 0.0, %v1914
        %1916 = vmatmul.f32.gmra.mxu0 %v1805
        %v1917 = vpop.f32.mrf.mxu0
        %v1918 = vadd.f32 0.0, %v1917
        %1919 = vmatmul.f32.gmra.mxu0 %v1808
        %v1920 = vpop.f32.mrf.mxu0
        %v1921 = vadd.f32 0.0, %v1920
        %1922 = vmatmul.f32.gmra.mxu0 %v1811
        %v1923 = vpop.f32.mrf.mxu0
        %v1924 = vadd.f32 0.0, %v1923
        %1925 = vmatmul.f32.gmra.mxu0 %v1814
        %v1926 = vpop.f32.mrf.mxu0
        %v1927 = vadd.f32 0.0, %v1926
        %1928 = vmatmul.f32.gmra.mxu0 %v1817
        %v1929 = vpop.f32.mrf.mxu0
        %v1930 = vadd.f32 0.0, %v1929
        %1931 = vmatmul.f32.gmra.mxu0 %v1820
        %v1932 = vpop.f32.mrf.mxu0
        %v1933 = vadd.f32 0.0, %v1932
        %1934 = vmatmul.f32.gmra.mxu0 %v1823
        %v1935 = vpop.f32.mrf.mxu0
        %v1936 = vadd.f32 0.0, %v1935
        %1937 = vmatmul.f32.gmra.mxu0 %v1826
        %v1938 = vpop.f32.mrf.mxu0
        %v1939 = vadd.f32 0.0, %v1938
        %1940 = vdwg.mxu0
        %v1941 = vmul.f32 %v767, 0.125
        %v1942 = vmul.f32 %v770, 0.125
        %v1943 = vmul.f32 %v773, 0.125
        %v1944 = vmul.f32 %v776, 0.125
        %v1945 = vmul.f32 %v779, 0.125
        %v1946 = vmul.f32 %v782, 0.125
        %v1947 = vmul.f32 %v785, 0.125
        %v1948 = vmul.f32 %v788, 0.125
        %v1949 = vmul.f32 %v791, 0.125
        %v1950 = vmul.f32 %v794, 0.125
        %v1951 = vmul.f32 %v797, 0.125
        %v1952 = vmul.f32 %v800, 0.125
        %v1953 = vmul.f32 %v803, 0.125
        %v1954 = vmul.f32 %v806, 0.125
        %v1955 = vmul.f32 %v809, 0.125
        %v1956 = vmul.f32 %v812, 0.125
        %v1957 = vmul.f32 %v928, 0.125
        %v1958 = vmul.f32 %v931, 0.125
        %v1959 = vmul.f32 %v934, 0.125
        %v1960 = vmul.f32 %v937, 0.125
        %v1961 = vmul.f32 %v940, 0.125
        %v1962 = vmul.f32 %v943, 0.125
        %v1963 = vmul.f32 %v946, 0.125
        %v1964 = vmul.f32 %v949, 0.125
        %v1965 = vmul.f32 %v952, 0.125
        %v1966 = vmul.f32 %v955, 0.125
        %v1967 = vmul.f32 %v958, 0.125
        %v1968 = vmul.f32 %v961, 0.125
        %v1969 = vmul.f32 %v964, 0.125
        %v1970 = vmul.f32 %v967, 0.125
        %v1971 = vmul.f32 %v970, 0.125
        %v1972 = vmul.f32 %v973, 0.125
        %v1973 = vmul.f32 %v1089, 0.125
        %v1974 = vmul.f32 %v1092, 0.125
        %v1975 = vmul.f32 %v1095, 0.125
        %v1976 = vmul.f32 %v1098, 0.125
        %v1977 = vmul.f32 %v1101, 0.125
        %v1978 = vmul.f32 %v1104, 0.125
        %v1979 = vmul.f32 %v1107, 0.125
        %v1980 = vmul.f32 %v1110, 0.125
        %v1981 = vmul.f32 %v1113, 0.125
        %v1982 = vmul.f32 %v1116, 0.125
        %v1983 = vmul.f32 %v1119, 0.125
        %v1984 = vmul.f32 %v1122, 0.125
        %v1985 = vmul.f32 %v1125, 0.125
        %v1986 = vmul.f32 %v1128, 0.125
        %v1987 = vmul.f32 %v1131, 0.125
        %v1988 = vmul.f32 %v1134, 0.125
        %v1989 = vmul.f32 %v1250, 0.125
        %v1990 = vmul.f32 %v1253, 0.125
        %v1991 = vmul.f32 %v1256, 0.125
        %v1992 = vmul.f32 %v1259, 0.125
        %v1993 = vmul.f32 %v1262, 0.125
        %v1994 = vmul.f32 %v1265, 0.125
        %v1995 = vmul.f32 %v1268, 0.125
        %v1996 = vmul.f32 %v1271, 0.125
        %v1997 = vmul.f32 %v1274, 0.125
        %v1998 = vmul.f32 %v1277, 0.125
        %v1999 = vmul.f32 %v1280, 0.125
        %v2000 = vmul.f32 %v1283, 0.125
        %v2001 = vmul.f32 %v1286, 0.125
        %v2002 = vmul.f32 %v1289, 0.125
        %v2003 = vmul.f32 %v1292, 0.125
        %v2004 = vmul.f32 %v1295, 0.125
        %v2005 = vmul.f32 %v1411, 0.125
        %v2006 = vmul.f32 %v1414, 0.125
        %v2007 = vmul.f32 %v1417, 0.125
        %v2008 = vmul.f32 %v1420, 0.125
        %v2009 = vmul.f32 %v1423, 0.125
        %v2010 = vmul.f32 %v1426, 0.125
        %v2011 = vmul.f32 %v1429, 0.125
        %v2012 = vmul.f32 %v1432, 0.125
        %v2013 = vmul.f32 %v1435, 0.125
        %v2014 = vmul.f32 %v1438, 0.125
        %v2015 = vmul.f32 %v1441, 0.125
        %v2016 = vmul.f32 %v1444, 0.125
        %v2017 = vmul.f32 %v1447, 0.125
        %v2018 = vmul.f32 %v1450, 0.125
        %v2019 = vmul.f32 %v1453, 0.125
        %v2020 = vmul.f32 %v1456, 0.125
        %v2021 = vmul.f32 %v1572, 0.125
        %v2022 = vmul.f32 %v1575, 0.125
        %v2023 = vmul.f32 %v1578, 0.125
        %v2024 = vmul.f32 %v1581, 0.125
        %v2025 = vmul.f32 %v1584, 0.125
        %v2026 = vmul.f32 %v1587, 0.125
        %v2027 = vmul.f32 %v1590, 0.125
        %v2028 = vmul.f32 %v1593, 0.125
        %v2029 = vmul.f32 %v1596, 0.125
        %v2030 = vmul.f32 %v1599, 0.125
        %v2031 = vmul.f32 %v1602, 0.125
        %v2032 = vmul.f32 %v1605, 0.125
        %v2033 = vmul.f32 %v1608, 0.125
        %v2034 = vmul.f32 %v1611, 0.125
        %v2035 = vmul.f32 %v1614, 0.125
        %v2036 = vmul.f32 %v1617, 0.125
        %v2037 = vmul.f32 %v1733, 0.125
        %v2038 = vmul.f32 %v1736, 0.125
        %v2039 = vmul.f32 %v1739, 0.125
        %v2040 = vmul.f32 %v1742, 0.125
        %v2041 = vmul.f32 %v1745, 0.125
        %v2042 = vmul.f32 %v1748, 0.125
        %v2043 = vmul.f32 %v1751, 0.125
        %v2044 = vmul.f32 %v1754, 0.125
        %v2045 = vmul.f32 %v1757, 0.125
        %v2046 = vmul.f32 %v1760, 0.125
        %v2047 = vmul.f32 %v1763, 0.125
        %v2048 = vmul.f32 %v1766, 0.125
        %v2049 = vmul.f32 %v1769, 0.125
        %v2050 = vmul.f32 %v1772, 0.125
        %v2051 = vmul.f32 %v1775, 0.125
        %v2052 = vmul.f32 %v1778, 0.125
        %v2053 = vmul.f32 %v1894, 0.125
        %v2054 = vmul.f32 %v1897, 0.125
        %v2055 = vmul.f32 %v1900, 0.125
        %v2056 = vmul.f32 %v1903, 0.125
        %v2057 = vmul.f32 %v1906, 0.125
        %v2058 = vmul.f32 %v1909, 0.125
        %v2059 = vmul.f32 %v1912, 0.125
        %v2060 = vmul.f32 %v1915, 0.125
        %v2061 = vmul.f32 %v1918, 0.125
        %v2062 = vmul.f32 %v1921, 0.125
        %v2063 = vmul.f32 %v1924, 0.125
        %v2064 = vmul.f32 %v1927, 0.125
        %v2065 = vmul.f32 %v1930, 0.125
        %v2066 = vmul.f32 %v1933, 0.125
        %v2067 = vmul.f32 %v1936, 0.125
        %v2068 = vmul.f32 %v1939, 0.125
        %2069 = vmax.xlane.f32.xlu0 %v1941
        %v2070 = vpop.xlane.xlu0 %2069
        %2071 = vmax.xlane.f32.xlu0 %v1942
        %v2072 = vpop.xlane.xlu0 %2071
        %2073 = vmax.xlane.f32.xlu0 %v1943
        %v2074 = vpop.xlane.xlu0 %2073
        %2075 = vmax.xlane.f32.xlu0 %v1944
        %v2076 = vpop.xlane.xlu0 %2075
        %2077 = vmax.xlane.f32.xlu0 %v1945
        %v2078 = vpop.xlane.xlu0 %2077
        %2079 = vmax.xlane.f32.xlu0 %v1946
        %v2080 = vpop.xlane.xlu0 %2079
        %2081 = vmax.xlane.f32.xlu0 %v1947
        %v2082 = vpop.xlane.xlu0 %2081
        %2083 = vmax.xlane.f32.xlu0 %v1948
        %v2084 = vpop.xlane.xlu0 %2083
        %2085 = vmax.xlane.f32.xlu0 %v1949
        %v2086 = vpop.xlane.xlu0 %2085
        %2087 = vmax.xlane.f32.xlu0 %v1950
        %v2088 = vpop.xlane.xlu0 %2087
        %2089 = vmax.xlane.f32.xlu0 %v1951
        %v2090 = vpop.xlane.xlu0 %2089
        %2091 = vmax.xlane.f32.xlu0 %v1952
        %v2092 = vpop.xlane.xlu0 %2091
        %2093 = vmax.xlane.f32.xlu0 %v1953
        %v2094 = vpop.xlane.xlu0 %2093
        %2095 = vmax.xlane.f32.xlu0 %v1954
        %v2096 = vpop.xlane.xlu0 %2095
        %2097 = vmax.xlane.f32.xlu0 %v1955
        %v2098 = vpop.xlane.xlu0 %2097
        %2099 = vmax.xlane.f32.xlu0 %v1956
        %v2100 = vpop.xlane.xlu0 %2099
        %2101 = vmax.xlane.f32.xlu0 %v1957
        %v2102 = vpop.xlane.xlu0 %2101
        %2103 = vmax.xlane.f32.xlu0 %v1958
        %v2104 = vpop.xlane.xlu0 %2103
        %2105 = vmax.xlane.f32.xlu0 %v1959
        %v2106 = vpop.xlane.xlu0 %2105
        %2107 = vmax.xlane.f32.xlu0 %v1960
        %v2108 = vpop.xlane.xlu0 %2107
        %2109 = vmax.xlane.f32.xlu0 %v1961
        %v2110 = vpop.xlane.xlu0 %2109
        %2111 = vmax.xlane.f32.xlu0 %v1962
        %v2112 = vpop.xlane.xlu0 %2111
        %2113 = vmax.xlane.f32.xlu0 %v1963
        %v2114 = vpop.xlane.xlu0 %2113
        %2115 = vmax.xlane.f32.xlu0 %v1964
        %v2116 = vpop.xlane.xlu0 %2115
        %2117 = vmax.xlane.f32.xlu0 %v1965
        %v2118 = vpop.xlane.xlu0 %2117
        %2119 = vmax.xlane.f32.xlu0 %v1966
        %v2120 = vpop.xlane.xlu0 %2119
        %2121 = vmax.xlane.f32.xlu0 %v1967
        %v2122 = vpop.xlane.xlu0 %2121
        %2123 = vmax.xlane.f32.xlu0 %v1968
        %v2124 = vpop.xlane.xlu0 %2123
        %2125 = vmax.xlane.f32.xlu0 %v1969
        %v2126 = vpop.xlane.xlu0 %2125
        %2127 = vmax.xlane.f32.xlu0 %v1970
        %v2128 = vpop.xlane.xlu0 %2127
        %2129 = vmax.xlane.f32.xlu0 %v1971
        %v2130 = vpop.xlane.xlu0 %2129
        %2131 = vmax.xlane.f32.xlu0 %v1972
        %v2132 = vpop.xlane.xlu0 %2131
        %2133 = vmax.xlane.f32.xlu0 %v1973
        %v2134 = vpop.xlane.xlu0 %2133
        %2135 = vmax.xlane.f32.xlu0 %v1974
        %v2136 = vpop.xlane.xlu0 %2135
        %2137 = vmax.xlane.f32.xlu0 %v1975
        %v2138 = vpop.xlane.xlu0 %2137
        %2139 = vmax.xlane.f32.xlu0 %v1976
        %v2140 = vpop.xlane.xlu0 %2139
        %2141 = vmax.xlane.f32.xlu0 %v1977
        %v2142 = vpop.xlane.xlu0 %2141
        %2143 = vmax.xlane.f32.xlu0 %v1978
        %v2144 = vpop.xlane.xlu0 %2143
        %2145 = vmax.xlane.f32.xlu0 %v1979
        %v2146 = vpop.xlane.xlu0 %2145
        %2147 = vmax.xlane.f32.xlu0 %v1980
        %v2148 = vpop.xlane.xlu0 %2147
        %2149 = vmax.xlane.f32.xlu0 %v1981
        %v2150 = vpop.xlane.xlu0 %2149
        %2151 = vmax.xlane.f32.xlu0 %v1982
        %v2152 = vpop.xlane.xlu0 %2151
        %2153 = vmax.xlane.f32.xlu0 %v1983
        %v2154 = vpop.xlane.xlu0 %2153
        %2155 = vmax.xlane.f32.xlu0 %v1984
        %v2156 = vpop.xlane.xlu0 %2155
        %2157 = vmax.xlane.f32.xlu0 %v1985
        %v2158 = vpop.xlane.xlu0 %2157
        %2159 = vmax.xlane.f32.xlu0 %v1986
        %v2160 = vpop.xlane.xlu0 %2159
        %2161 = vmax.xlane.f32.xlu0 %v1987
        %v2162 = vpop.xlane.xlu0 %2161
        %2163 = vmax.xlane.f32.xlu0 %v1988
        %v2164 = vpop.xlane.xlu0 %2163
        %2165 = vmax.xlane.f32.xlu0 %v1989
        %v2166 = vpop.xlane.xlu0 %2165
        %2167 = vmax.xlane.f32.xlu0 %v1990
        %v2168 = vpop.xlane.xlu0 %2167
        %2169 = vmax.xlane.f32.xlu0 %v1991
        %v2170 = vpop.xlane.xlu0 %2169
        %2171 = vmax.xlane.f32.xlu0 %v1992
        %v2172 = vpop.xlane.xlu0 %2171
        %2173 = vmax.xlane.f32.xlu0 %v1993
        %v2174 = vpop.xlane.xlu0 %2173
        %2175 = vmax.xlane.f32.xlu0 %v1994
        %v2176 = vpop.xlane.xlu0 %2175
        %2177 = vmax.xlane.f32.xlu0 %v1995
        %v2178 = vpop.xlane.xlu0 %2177
        %2179 = vmax.xlane.f32.xlu0 %v1996
        %v2180 = vpop.xlane.xlu0 %2179
        %2181 = vmax.xlane.f32.xlu0 %v1997
        %v2182 = vpop.xlane.xlu0 %2181
        %2183 = vmax.xlane.f32.xlu0 %v1998
        %v2184 = vpop.xlane.xlu0 %2183
        %2185 = vmax.xlane.f32.xlu0 %v1999
        %v2186 = vpop.xlane.xlu0 %2185
        %2187 = vmax.xlane.f32.xlu0 %v2000
        %v2188 = vpop.xlane.xlu0 %2187
        %2189 = vmax.xlane.f32.xlu0 %v2001
        %v2190 = vpop.xlane.xlu0 %2189
        %2191 = vmax.xlane.f32.xlu0 %v2002
        %v2192 = vpop.xlane.xlu0 %2191
        %2193 = vmax.xlane.f32.xlu0 %v2003
        %v2194 = vpop.xlane.xlu0 %2193
        %2195 = vmax.xlane.f32.xlu0 %v2004
        %v2196 = vpop.xlane.xlu0 %2195
        %2197 = vmax.xlane.f32.xlu0 %v2005
        %v2198 = vpop.xlane.xlu0 %2197
        %2199 = vmax.xlane.f32.xlu0 %v2006
        %v2200 = vpop.xlane.xlu0 %2199
        %2201 = vmax.xlane.f32.xlu0 %v2007
        %v2202 = vpop.xlane.xlu0 %2201
        %2203 = vmax.xlane.f32.xlu0 %v2008
        %v2204 = vpop.xlane.xlu0 %2203
        %2205 = vmax.xlane.f32.xlu0 %v2009
        %v2206 = vpop.xlane.xlu0 %2205
        %2207 = vmax.xlane.f32.xlu0 %v2010
        %v2208 = vpop.xlane.xlu0 %2207
        %2209 = vmax.xlane.f32.xlu0 %v2011
        %v2210 = vpop.xlane.xlu0 %2209
        %2211 = vmax.xlane.f32.xlu0 %v2012
        %v2212 = vpop.xlane.xlu0 %2211
        %2213 = vmax.xlane.f32.xlu0 %v2013
        %v2214 = vpop.xlane.xlu0 %2213
        %2215 = vmax.xlane.f32.xlu0 %v2014
        %v2216 = vpop.xlane.xlu0 %2215
        %2217 = vmax.xlane.f32.xlu0 %v2015
        %v2218 = vpop.xlane.xlu0 %2217
        %2219 = vmax.xlane.f32.xlu0 %v2016
        %v2220 = vpop.xlane.xlu0 %2219
        %2221 = vmax.xlane.f32.xlu0 %v2017
        %v2222 = vpop.xlane.xlu0 %2221
        %2223 = vmax.xlane.f32.xlu0 %v2018
        %v2224 = vpop.xlane.xlu0 %2223
        %2225 = vmax.xlane.f32.xlu0 %v2019
        %v2226 = vpop.xlane.xlu0 %2225
        %2227 = vmax.xlane.f32.xlu0 %v2020
        %v2228 = vpop.xlane.xlu0 %2227
        %2229 = vmax.xlane.f32.xlu0 %v2021
        %v2230 = vpop.xlane.xlu0 %2229
        %2231 = vmax.xlane.f32.xlu0 %v2022
        %v2232 = vpop.xlane.xlu0 %2231
        %2233 = vmax.xlane.f32.xlu0 %v2023
        %v2234 = vpop.xlane.xlu0 %2233
        %2235 = vmax.xlane.f32.xlu0 %v2024
        %v2236 = vpop.xlane.xlu0 %2235
        %2237 = vmax.xlane.f32.xlu0 %v2025
        %v2238 = vpop.xlane.xlu0 %2237
        %2239 = vmax.xlane.f32.xlu0 %v2026
        %v2240 = vpop.xlane.xlu0 %2239
        %2241 = vmax.xlane.f32.xlu0 %v2027
        %v2242 = vpop.xlane.xlu0 %2241
        %2243 = vmax.xlane.f32.xlu0 %v2028
        %v2244 = vpop.xlane.xlu0 %2243
        %2245 = vmax.xlane.f32.xlu0 %v2029
        %v2246 = vpop.xlane.xlu0 %2245
        %2247 = vmax.xlane.f32.xlu0 %v2030
        %v2248 = vpop.xlane.xlu0 %2247
        %2249 = vmax.xlane.f32.xlu0 %v2031
        %v2250 = vpop.xlane.xlu0 %2249
        %2251 = vmax.xlane.f32.xlu0 %v2032
        %v2252 = vpop.xlane.xlu0 %2251
        %2253 = vmax.xlane.f32.xlu0 %v2033
        %v2254 = vpop.xlane.xlu0 %2253
        %2255 = vmax.xlane.f32.xlu0 %v2034
        %v2256 = vpop.xlane.xlu0 %2255
        %2257 = vmax.xlane.f32.xlu0 %v2035
        %v2258 = vpop.xlane.xlu0 %2257
        %2259 = vmax.xlane.f32.xlu0 %v2036
        %v2260 = vpop.xlane.xlu0 %2259
        %2261 = vmax.xlane.f32.xlu0 %v2037
        %v2262 = vpop.xlane.xlu0 %2261
        %2263 = vmax.xlane.f32.xlu0 %v2038
        %v2264 = vpop.xlane.xlu0 %2263
        %2265 = vmax.xlane.f32.xlu0 %v2039
        %v2266 = vpop.xlane.xlu0 %2265
        %2267 = vmax.xlane.f32.xlu0 %v2040
        %v2268 = vpop.xlane.xlu0 %2267
        %2269 = vmax.xlane.f32.xlu0 %v2041
        %v2270 = vpop.xlane.xlu0 %2269
        %2271 = vmax.xlane.f32.xlu0 %v2042
        %v2272 = vpop.xlane.xlu0 %2271
        %2273 = vmax.xlane.f32.xlu0 %v2043
        %v2274 = vpop.xlane.xlu0 %2273
        %2275 = vmax.xlane.f32.xlu0 %v2044
        %v2276 = vpop.xlane.xlu0 %2275
        %2277 = vmax.xlane.f32.xlu0 %v2045
        %v2278 = vpop.xlane.xlu0 %2277
        %2279 = vmax.xlane.f32.xlu0 %v2046
        %v2280 = vpop.xlane.xlu0 %2279
        %2281 = vmax.xlane.f32.xlu0 %v2047
        %v2282 = vpop.xlane.xlu0 %2281
        %2283 = vmax.xlane.f32.xlu0 %v2048
        %v2284 = vpop.xlane.xlu0 %2283
        %2285 = vmax.xlane.f32.xlu0 %v2049
        %v2286 = vpop.xlane.xlu0 %2285
        %2287 = vmax.xlane.f32.xlu0 %v2050
        %v2288 = vpop.xlane.xlu0 %2287
        %2289 = vmax.xlane.f32.xlu0 %v2051
        %v2290 = vpop.xlane.xlu0 %2289
        %2291 = vmax.xlane.f32.xlu0 %v2052
        %v2292 = vpop.xlane.xlu0 %2291
        %2293 = vmax.xlane.f32.xlu0 %v2053
        %v2294 = vpop.xlane.xlu0 %2293
        %2295 = vmax.xlane.f32.xlu0 %v2054
        %v2296 = vpop.xlane.xlu0 %2295
        %2297 = vmax.xlane.f32.xlu0 %v2055
        %v2298 = vpop.xlane.xlu0 %2297
        %2299 = vmax.xlane.f32.xlu0 %v2056
        %v2300 = vpop.xlane.xlu0 %2299
        %2301 = vmax.xlane.f32.xlu0 %v2057
        %v2302 = vpop.xlane.xlu0 %2301
        %2303 = vmax.xlane.f32.xlu0 %v2058
        %v2304 = vpop.xlane.xlu0 %2303
        %2305 = vmax.xlane.f32.xlu0 %v2059
        %v2306 = vpop.xlane.xlu0 %2305
        %2307 = vmax.xlane.f32.xlu0 %v2060
        %v2308 = vpop.xlane.xlu0 %2307
        %2309 = vmax.xlane.f32.xlu0 %v2061
        %v2310 = vpop.xlane.xlu0 %2309
        %2311 = vmax.xlane.f32.xlu0 %v2062
        %v2312 = vpop.xlane.xlu0 %2311
        %2313 = vmax.xlane.f32.xlu0 %v2063
        %v2314 = vpop.xlane.xlu0 %2313
        %2315 = vmax.xlane.f32.xlu0 %v2064
        %v2316 = vpop.xlane.xlu0 %2315
        %2317 = vmax.xlane.f32.xlu0 %v2065
        %v2318 = vpop.xlane.xlu0 %2317
        %2319 = vmax.xlane.f32.xlu0 %v2066
        %v2320 = vpop.xlane.xlu0 %2319
        %2321 = vmax.xlane.f32.xlu0 %v2067
        %v2322 = vpop.xlane.xlu0 %2321
        %2323 = vmax.xlane.f32.xlu0 %v2068
        %v2324 = vpop.xlane.xlu0 %2323
        %v2325 = vsub.f32 %v1941, %v2070
        %v2326 = vsub.f32 %v1942, %v2072
        %v2327 = vsub.f32 %v1943, %v2074
        %v2328 = vsub.f32 %v1944, %v2076
        %v2329 = vsub.f32 %v1945, %v2078
        %v2330 = vsub.f32 %v1946, %v2080
        %v2331 = vsub.f32 %v1947, %v2082
        %v2332 = vsub.f32 %v1948, %v2084
        %v2333 = vsub.f32 %v1949, %v2086
        %v2334 = vsub.f32 %v1950, %v2088
        %v2335 = vsub.f32 %v1951, %v2090
        %v2336 = vsub.f32 %v1952, %v2092
        %v2337 = vsub.f32 %v1953, %v2094
        %v2338 = vsub.f32 %v1954, %v2096
        %v2339 = vsub.f32 %v1955, %v2098
        %v2340 = vsub.f32 %v1956, %v2100
        %v2341 = vsub.f32 %v1957, %v2102
        %v2342 = vsub.f32 %v1958, %v2104
        %v2343 = vsub.f32 %v1959, %v2106
        %v2344 = vsub.f32 %v1960, %v2108
        %v2345 = vsub.f32 %v1961, %v2110
        %v2346 = vsub.f32 %v1962, %v2112
        %v2347 = vsub.f32 %v1963, %v2114
        %v2348 = vsub.f32 %v1964, %v2116
        %v2349 = vsub.f32 %v1965, %v2118
        %v2350 = vsub.f32 %v1966, %v2120
        %v2351 = vsub.f32 %v1967, %v2122
        %v2352 = vsub.f32 %v1968, %v2124
        %v2353 = vsub.f32 %v1969, %v2126
        %v2354 = vsub.f32 %v1970, %v2128
        %v2355 = vsub.f32 %v1971, %v2130
        %v2356 = vsub.f32 %v1972, %v2132
        %v2357 = vsub.f32 %v1973, %v2134
        %v2358 = vsub.f32 %v1974, %v2136
        %v2359 = vsub.f32 %v1975, %v2138
        %v2360 = vsub.f32 %v1976, %v2140
        %v2361 = vsub.f32 %v1977, %v2142
        %v2362 = vsub.f32 %v1978, %v2144
        %v2363 = vsub.f32 %v1979, %v2146
        %v2364 = vsub.f32 %v1980, %v2148
        %v2365 = vsub.f32 %v1981, %v2150
        %v2366 = vsub.f32 %v1982, %v2152
        %v2367 = vsub.f32 %v1983, %v2154
        %v2368 = vsub.f32 %v1984, %v2156
        %v2369 = vsub.f32 %v1985, %v2158
        %v2370 = vsub.f32 %v1986, %v2160
        %v2371 = vsub.f32 %v1987, %v2162
        %v2372 = vsub.f32 %v1988, %v2164
        %v2373 = vsub.f32 %v1989, %v2166
        %v2374 = vsub.f32 %v1990, %v2168
        %v2375 = vsub.f32 %v1991, %v2170
        %v2376 = vsub.f32 %v1992, %v2172
        %v2377 = vsub.f32 %v1993, %v2174
        %v2378 = vsub.f32 %v1994, %v2176
        %v2379 = vsub.f32 %v1995, %v2178
        %v2380 = vsub.f32 %v1996, %v2180
        %v2381 = vsub.f32 %v1997, %v2182
        %v2382 = vsub.f32 %v1998, %v2184
        %v2383 = vsub.f32 %v1999, %v2186
        %v2384 = vsub.f32 %v2000, %v2188
        %v2385 = vsub.f32 %v2001, %v2190
        %v2386 = vsub.f32 %v2002, %v2192
        %v2387 = vsub.f32 %v2003, %v2194
        %v2388 = vsub.f32 %v2004, %v2196
        %v2389 = vsub.f32 %v2005, %v2198
        %v2390 = vsub.f32 %v2006, %v2200
        %v2391 = vsub.f32 %v2007, %v2202
        %v2392 = vsub.f32 %v2008, %v2204
        %v2393 = vsub.f32 %v2009, %v2206
        %v2394 = vsub.f32 %v2010, %v2208
        %v2395 = vsub.f32 %v2011, %v2210
        %v2396 = vsub.f32 %v2012, %v2212
        %v2397 = vsub.f32 %v2013, %v2214
        %v2398 = vsub.f32 %v2014, %v2216
        %v2399 = vsub.f32 %v2015, %v2218
        %v2400 = vsub.f32 %v2016, %v2220
        %v2401 = vsub.f32 %v2017, %v2222
        %v2402 = vsub.f32 %v2018, %v2224
        %v2403 = vsub.f32 %v2019, %v2226
        %v2404 = vsub.f32 %v2020, %v2228
        %v2405 = vsub.f32 %v2021, %v2230
        %v2406 = vsub.f32 %v2022, %v2232
        %v2407 = vsub.f32 %v2023, %v2234
        %v2408 = vsub.f32 %v2024, %v2236
        %v2409 = vsub.f32 %v2025, %v2238
        %v2410 = vsub.f32 %v2026, %v2240
        %v2411 = vsub.f32 %v2027, %v2242
        %v2412 = vsub.f32 %v2028, %v2244
        %v2413 = vsub.f32 %v2029, %v2246
        %v2414 = vsub.f32 %v2030, %v2248
        %v2415 = vsub.f32 %v2031, %v2250
        %v2416 = vsub.f32 %v2032, %v2252
        %v2417 = vsub.f32 %v2033, %v2254
        %v2418 = vsub.f32 %v2034, %v2256
        %v2419 = vsub.f32 %v2035, %v2258
        %v2420 = vsub.f32 %v2036, %v2260
        %v2421 = vsub.f32 %v2037, %v2262
        %v2422 = vsub.f32 %v2038, %v2264
        %v2423 = vsub.f32 %v2039, %v2266
        %v2424 = vsub.f32 %v2040, %v2268
        %v2425 = vsub.f32 %v2041, %v2270
        %v2426 = vsub.f32 %v2042, %v2272
        %v2427 = vsub.f32 %v2043, %v2274
        %v2428 = vsub.f32 %v2044, %v2276
        %v2429 = vsub.f32 %v2045, %v2278
        %v2430 = vsub.f32 %v2046, %v2280
        %v2431 = vsub.f32 %v2047, %v2282
        %v2432 = vsub.f32 %v2048, %v2284
        %v2433 = vsub.f32 %v2049, %v2286
        %v2434 = vsub.f32 %v2050, %v2288
        %v2435 = vsub.f32 %v2051, %v2290
        %v2436 = vsub.f32 %v2052, %v2292
        %v2437 = vsub.f32 %v2053, %v2294
        %v2438 = vsub.f32 %v2054, %v2296
        %v2439 = vsub.f32 %v2055, %v2298
        %v2440 = vsub.f32 %v2056, %v2300
        %v2441 = vsub.f32 %v2057, %v2302
        %v2442 = vsub.f32 %v2058, %v2304
        %v2443 = vsub.f32 %v2059, %v2306
        %v2444 = vsub.f32 %v2060, %v2308
        %v2445 = vsub.f32 %v2061, %v2310
        %v2446 = vsub.f32 %v2062, %v2312
        %v2447 = vsub.f32 %v2063, %v2314
        %v2448 = vsub.f32 %v2064, %v2316
        %v2449 = vsub.f32 %v2065, %v2318
        %v2450 = vsub.f32 %v2066, %v2320
        %v2451 = vsub.f32 %v2067, %v2322
        %v2452 = vsub.f32 %v2068, %v2324
        %v2453 = vmul.f32 %v2325, 1.442695
        %v2454 = vpow.pop %v2453
        %v2455 = vmul.f32 %v2326, 1.442695
        %v2456 = vpow.pop %v2455
        %v2457 = vmul.f32 %v2327, 1.442695
        %v2458 = vpow.pop %v2457
        %v2459 = vmul.f32 %v2328, 1.442695
        %v2460 = vpow.pop %v2459
        %v2461 = vmul.f32 %v2329, 1.442695
        %v2462 = vpow.pop %v2461
        %v2463 = vmul.f32 %v2330, 1.442695
        %v2464 = vpow.pop %v2463
        %v2465 = vmul.f32 %v2331, 1.442695
        %v2466 = vpow.pop %v2465
        %v2467 = vmul.f32 %v2332, 1.442695
        %v2468 = vpow.pop %v2467
        %v2469 = vmul.f32 %v2333, 1.442695
        %v2470 = vpow.pop %v2469
        %v2471 = vmul.f32 %v2334, 1.442695
        %v2472 = vpow.pop %v2471
        %v2473 = vmul.f32 %v2335, 1.442695
        %v2474 = vpow.pop %v2473
        %v2475 = vmul.f32 %v2336, 1.442695
        %v2476 = vpow.pop %v2475
        %v2477 = vmul.f32 %v2337, 1.442695
        %v2478 = vpow.pop %v2477
        %v2479 = vmul.f32 %v2338, 1.442695
        %v2480 = vpow.pop %v2479
        %v2481 = vmul.f32 %v2339, 1.442695
        %v2482 = vpow.pop %v2481
        %v2483 = vmul.f32 %v2340, 1.442695
        %v2484 = vpow.pop %v2483
        %v2485 = vmul.f32 %v2341, 1.442695
        %v2486 = vpow.pop %v2485
        %v2487 = vmul.f32 %v2342, 1.442695
        %v2488 = vpow.pop %v2487
        %v2489 = vmul.f32 %v2343, 1.442695
        %v2490 = vpow.pop %v2489
        %v2491 = vmul.f32 %v2344, 1.442695
        %v2492 = vpow.pop %v2491
        %v2493 = vmul.f32 %v2345, 1.442695
        %v2494 = vpow.pop %v2493
        %v2495 = vmul.f32 %v2346, 1.442695
        %v2496 = vpow.pop %v2495
        %v2497 = vmul.f32 %v2347, 1.442695
        %v2498 = vpow.pop %v2497
        %v2499 = vmul.f32 %v2348, 1.442695
        %v2500 = vpow.pop %v2499
        %v2501 = vmul.f32 %v2349, 1.442695
        %v2502 = vpow.pop %v2501
        %v2503 = vmul.f32 %v2350, 1.442695
        %v2504 = vpow.pop %v2503
        %v2505 = vmul.f32 %v2351, 1.442695
        %v2506 = vpow.pop %v2505
        %v2507 = vmul.f32 %v2352, 1.442695
        %v2508 = vpow.pop %v2507
        %v2509 = vmul.f32 %v2353, 1.442695
        %v2510 = vpow.pop %v2509
        %v2511 = vmul.f32 %v2354, 1.442695
        %v2512 = vpow.pop %v2511
        %v2513 = vmul.f32 %v2355, 1.442695
        %v2514 = vpow.pop %v2513
        %v2515 = vmul.f32 %v2356, 1.442695
        %v2516 = vpow.pop %v2515
        %v2517 = vmul.f32 %v2357, 1.442695
        %v2518 = vpow.pop %v2517
        %v2519 = vmul.f32 %v2358, 1.442695
        %v2520 = vpow.pop %v2519
        %v2521 = vmul.f32 %v2359, 1.442695
        %v2522 = vpow.pop %v2521
        %v2523 = vmul.f32 %v2360, 1.442695
        %v2524 = vpow.pop %v2523
        %v2525 = vmul.f32 %v2361, 1.442695
        %v2526 = vpow.pop %v2525
        %v2527 = vmul.f32 %v2362, 1.442695
        %v2528 = vpow.pop %v2527
        %v2529 = vmul.f32 %v2363, 1.442695
        %v2530 = vpow.pop %v2529
        %v2531 = vmul.f32 %v2364, 1.442695
        %v2532 = vpow.pop %v2531
        %v2533 = vmul.f32 %v2365, 1.442695
        %v2534 = vpow.pop %v2533
        %v2535 = vmul.f32 %v2366, 1.442695
        %v2536 = vpow.pop %v2535
        %v2537 = vmul.f32 %v2367, 1.442695
        %v2538 = vpow.pop %v2537
        %v2539 = vmul.f32 %v2368, 1.442695
        %v2540 = vpow.pop %v2539
        %v2541 = vmul.f32 %v2369, 1.442695
        %v2542 = vpow.pop %v2541
        %v2543 = vmul.f32 %v2370, 1.442695
        %v2544 = vpow.pop %v2543
        %v2545 = vmul.f32 %v2371, 1.442695
        %v2546 = vpow.pop %v2545
        %v2547 = vmul.f32 %v2372, 1.442695
        %v2548 = vpow.pop %v2547
        %v2549 = vmul.f32 %v2373, 1.442695
        %v2550 = vpow.pop %v2549
        %v2551 = vmul.f32 %v2374, 1.442695
        %v2552 = vpow.pop %v2551
        %v2553 = vmul.f32 %v2375, 1.442695
        %v2554 = vpow.pop %v2553
        %v2555 = vmul.f32 %v2376, 1.442695
        %v2556 = vpow.pop %v2555
        %v2557 = vmul.f32 %v2377, 1.442695
        %v2558 = vpow.pop %v2557
        %v2559 = vmul.f32 %v2378, 1.442695
        %v2560 = vpow.pop %v2559
        %v2561 = vmul.f32 %v2379, 1.442695
        %v2562 = vpow.pop %v2561
        %v2563 = vmul.f32 %v2380, 1.442695
        %v2564 = vpow.pop %v2563
        %v2565 = vmul.f32 %v2381, 1.442695
        %v2566 = vpow.pop %v2565
        %v2567 = vmul.f32 %v2382, 1.442695
        %v2568 = vpow.pop %v2567
        %v2569 = vmul.f32 %v2383, 1.442695
        %v2570 = vpow.pop %v2569
        %v2571 = vmul.f32 %v2384, 1.442695
        %v2572 = vpow.pop %v2571
        %v2573 = vmul.f32 %v2385, 1.442695
        %v2574 = vpow.pop %v2573
        %v2575 = vmul.f32 %v2386, 1.442695
        %v2576 = vpow.pop %v2575
        %v2577 = vmul.f32 %v2387, 1.442695
        %v2578 = vpow.pop %v2577
        %v2579 = vmul.f32 %v2388, 1.442695
        %v2580 = vpow.pop %v2579
        %v2581 = vmul.f32 %v2389, 1.442695
        %v2582 = vpow.pop %v2581
        %v2583 = vmul.f32 %v2390, 1.442695
        %v2584 = vpow.pop %v2583
        %v2585 = vmul.f32 %v2391, 1.442695
        %v2586 = vpow.pop %v2585
        %v2587 = vmul.f32 %v2392, 1.442695
        %v2588 = vpow.pop %v2587
        %v2589 = vmul.f32 %v2393, 1.442695
        %v2590 = vpow.pop %v2589
        %v2591 = vmul.f32 %v2394, 1.442695
        %v2592 = vpow.pop %v2591
        %v2593 = vmul.f32 %v2395, 1.442695
        %v2594 = vpow.pop %v2593
        %v2595 = vmul.f32 %v2396, 1.442695
        %v2596 = vpow.pop %v2595
        %v2597 = vmul.f32 %v2397, 1.442695
        %v2598 = vpow.pop %v2597
        %v2599 = vmul.f32 %v2398, 1.442695
        %v2600 = vpow.pop %v2599
        %v2601 = vmul.f32 %v2399, 1.442695
        %v2602 = vpow.pop %v2601
        %v2603 = vmul.f32 %v2400, 1.442695
        %v2604 = vpow.pop %v2603
        %v2605 = vmul.f32 %v2401, 1.442695
        %v2606 = vpow.pop %v2605
        %v2607 = vmul.f32 %v2402, 1.442695
        %v2608 = vpow.pop %v2607
        %v2609 = vmul.f32 %v2403, 1.442695
        %v2610 = vpow.pop %v2609
        %v2611 = vmul.f32 %v2404, 1.442695
        %v2612 = vpow.pop %v2611
        %v2613 = vmul.f32 %v2405, 1.442695
        %v2614 = vpow.pop %v2613
        %v2615 = vmul.f32 %v2406, 1.442695
        %v2616 = vpow.pop %v2615
        %v2617 = vmul.f32 %v2407, 1.442695
        %v2618 = vpow.pop %v2617
        %v2619 = vmul.f32 %v2408, 1.442695
        %v2620 = vpow.pop %v2619
        %v2621 = vmul.f32 %v2409, 1.442695
        %v2622 = vpow.pop %v2621
        %v2623 = vmul.f32 %v2410, 1.442695
        %v2624 = vpow.pop %v2623
        %v2625 = vmul.f32 %v2411, 1.442695
        %v2626 = vpow.pop %v2625
        %v2627 = vmul.f32 %v2412, 1.442695
        %v2628 = vpow.pop %v2627
        %v2629 = vmul.f32 %v2413, 1.442695
        %v2630 = vpow.pop %v2629
        %v2631 = vmul.f32 %v2414, 1.442695
        %v2632 = vpow.pop %v2631
        %v2633 = vmul.f32 %v2415, 1.442695
        %v2634 = vpow.pop %v2633
        %v2635 = vmul.f32 %v2416, 1.442695
        %v2636 = vpow.pop %v2635
        %v2637 = vmul.f32 %v2417, 1.442695
        %v2638 = vpow.pop %v2637
        %v2639 = vmul.f32 %v2418, 1.442695
        %v2640 = vpow.pop %v2639
        %v2641 = vmul.f32 %v2419, 1.442695
        %v2642 = vpow.pop %v2641
        %v2643 = vmul.f32 %v2420, 1.442695
        %v2644 = vpow.pop %v2643
        %v2645 = vmul.f32 %v2421, 1.442695
        %v2646 = vpow.pop %v2645
        %v2647 = vmul.f32 %v2422, 1.442695
        %v2648 = vpow.pop %v2647
        %v2649 = vmul.f32 %v2423, 1.442695
        %v2650 = vpow.pop %v2649
        %v2651 = vmul.f32 %v2424, 1.442695
        %v2652 = vpow.pop %v2651
        %v2653 = vmul.f32 %v2425, 1.442695
        %v2654 = vpow.pop %v2653
        %v2655 = vmul.f32 %v2426, 1.442695
        %v2656 = vpow.pop %v2655
        %v2657 = vmul.f32 %v2427, 1.442695
        %v2658 = vpow.pop %v2657
        %v2659 = vmul.f32 %v2428, 1.442695
        %v2660 = vpow.pop %v2659
        %v2661 = vmul.f32 %v2429, 1.442695
        %v2662 = vpow.pop %v2661
        %v2663 = vmul.f32 %v2430, 1.442695
        %v2664 = vpow.pop %v2663
        %v2665 = vmul.f32 %v2431, 1.442695
        %v2666 = vpow.pop %v2665
        %v2667 = vmul.f32 %v2432, 1.442695
        %v2668 = vpow.pop %v2667
        %v2669 = vmul.f32 %v2433, 1.442695
        %v2670 = vpow.pop %v2669
        %v2671 = vmul.f32 %v2434, 1.442695
        %v2672 = vpow.pop %v2671
        %v2673 = vmul.f32 %v2435, 1.442695
        %v2674 = vpow.pop %v2673
        %v2675 = vmul.f32 %v2436, 1.442695
        %v2676 = vpow.pop %v2675
        %v2677 = vmul.f32 %v2437, 1.442695
        %v2678 = vpow.pop %v2677
        %v2679 = vmul.f32 %v2438, 1.442695
        %v2680 = vpow.pop %v2679
        %v2681 = vmul.f32 %v2439, 1.442695
        %v2682 = vpow.pop %v2681
        %v2683 = vmul.f32 %v2440, 1.442695
        %v2684 = vpow.pop %v2683
        %v2685 = vmul.f32 %v2441, 1.442695
        %v2686 = vpow.pop %v2685
        %v2687 = vmul.f32 %v2442, 1.442695
        %v2688 = vpow.pop %v2687
        %v2689 = vmul.f32 %v2443, 1.442695
        %v2690 = vpow.pop %v2689
        %v2691 = vmul.f32 %v2444, 1.442695
        %v2692 = vpow.pop %v2691
        %v2693 = vmul.f32 %v2445, 1.442695
        %v2694 = vpow.pop %v2693
        %v2695 = vmul.f32 %v2446, 1.442695
        %v2696 = vpow.pop %v2695
        %v2697 = vmul.f32 %v2447, 1.442695
        %v2698 = vpow.pop %v2697
        %v2699 = vmul.f32 %v2448, 1.442695
        %v2700 = vpow.pop %v2699
        %v2701 = vmul.f32 %v2449, 1.442695
        %v2702 = vpow.pop %v2701
        %v2703 = vmul.f32 %v2450, 1.442695
        %v2704 = vpow.pop %v2703
        %v2705 = vmul.f32 %v2451, 1.442695
        %v2706 = vpow.pop %v2705
        %v2707 = vmul.f32 %v2452, 1.442695
        %v2708 = vpow.pop %v2707
        %2709 = vadd.xlane.f32.xlu0 %v2454
        %v2710 = vpop.xlane.xlu0 %2709
        %2711 = vadd.xlane.f32.xlu0 %v2456
        %v2712 = vpop.xlane.xlu0 %2711
        %2713 = vadd.xlane.f32.xlu0 %v2458
        %v2714 = vpop.xlane.xlu0 %2713
        %2715 = vadd.xlane.f32.xlu0 %v2460
        %v2716 = vpop.xlane.xlu0 %2715
        %2717 = vadd.xlane.f32.xlu0 %v2462
        %v2718 = vpop.xlane.xlu0 %2717
        %2719 = vadd.xlane.f32.xlu0 %v2464
        %v2720 = vpop.xlane.xlu0 %2719
        %2721 = vadd.xlane.f32.xlu0 %v2466
        %v2722 = vpop.xlane.xlu0 %2721
        %2723 = vadd.xlane.f32.xlu0 %v2468
        %v2724 = vpop.xlane.xlu0 %2723
        %2725 = vadd.xlane.f32.xlu0 %v2470
        %v2726 = vpop.xlane.xlu0 %2725
        %2727 = vadd.xlane.f32.xlu0 %v2472
        %v2728 = vpop.xlane.xlu0 %2727
        %2729 = vadd.xlane.f32.xlu0 %v2474
        %v2730 = vpop.xlane.xlu0 %2729
        %2731 = vadd.xlane.f32.xlu0 %v2476
        %v2732 = vpop.xlane.xlu0 %2731
        %2733 = vadd.xlane.f32.xlu0 %v2478
        %v2734 = vpop.xlane.xlu0 %2733
        %2735 = vadd.xlane.f32.xlu0 %v2480
        %v2736 = vpop.xlane.xlu0 %2735
        %2737 = vadd.xlane.f32.xlu0 %v2482
        %v2738 = vpop.xlane.xlu0 %2737
        %2739 = vadd.xlane.f32.xlu0 %v2484
        %v2740 = vpop.xlane.xlu0 %2739
        %2741 = vadd.xlane.f32.xlu0 %v2486
        %v2742 = vpop.xlane.xlu0 %2741
        %2743 = vadd.xlane.f32.xlu0 %v2488
        %v2744 = vpop.xlane.xlu0 %2743
        %2745 = vadd.xlane.f32.xlu0 %v2490
        %v2746 = vpop.xlane.xlu0 %2745
        %2747 = vadd.xlane.f32.xlu0 %v2492
        %v2748 = vpop.xlane.xlu0 %2747
        %2749 = vadd.xlane.f32.xlu0 %v2494
        %v2750 = vpop.xlane.xlu0 %2749
        %2751 = vadd.xlane.f32.xlu0 %v2496
        %v2752 = vpop.xlane.xlu0 %2751
        %2753 = vadd.xlane.f32.xlu0 %v2498
        %v2754 = vpop.xlane.xlu0 %2753
        %2755 = vadd.xlane.f32.xlu0 %v2500
        %v2756 = vpop.xlane.xlu0 %2755
        %2757 = vadd.xlane.f32.xlu0 %v2502
        %v2758 = vpop.xlane.xlu0 %2757
        %2759 = vadd.xlane.f32.xlu0 %v2504
        %v2760 = vpop.xlane.xlu0 %2759
        %2761 = vadd.xlane.f32.xlu0 %v2506
        %v2762 = vpop.xlane.xlu0 %2761
        %2763 = vadd.xlane.f32.xlu0 %v2508
        %v2764 = vpop.xlane.xlu0 %2763
        %2765 = vadd.xlane.f32.xlu0 %v2510
        %v2766 = vpop.xlane.xlu0 %2765
        %2767 = vadd.xlane.f32.xlu0 %v2512
        %v2768 = vpop.xlane.xlu0 %2767
        %2769 = vadd.xlane.f32.xlu0 %v2514
        %v2770 = vpop.xlane.xlu0 %2769
        %2771 = vadd.xlane.f32.xlu0 %v2516
        %v2772 = vpop.xlane.xlu0 %2771
        %2773 = vadd.xlane.f32.xlu0 %v2518
        %v2774 = vpop.xlane.xlu0 %2773
        %2775 = vadd.xlane.f32.xlu0 %v2520
        %v2776 = vpop.xlane.xlu0 %2775
        %2777 = vadd.xlane.f32.xlu0 %v2522
        %v2778 = vpop.xlane.xlu0 %2777
        %2779 = vadd.xlane.f32.xlu0 %v2524
        %v2780 = vpop.xlane.xlu0 %2779
        %2781 = vadd.xlane.f32.xlu0 %v2526
        %v2782 = vpop.xlane.xlu0 %2781
        %2783 = vadd.xlane.f32.xlu0 %v2528
        %v2784 = vpop.xlane.xlu0 %2783
        %2785 = vadd.xlane.f32.xlu0 %v2530
        %v2786 = vpop.xlane.xlu0 %2785
        %2787 = vadd.xlane.f32.xlu0 %v2532
        %v2788 = vpop.xlane.xlu0 %2787
        %2789 = vadd.xlane.f32.xlu0 %v2534
        %v2790 = vpop.xlane.xlu0 %2789
        %2791 = vadd.xlane.f32.xlu0 %v2536
        %v2792 = vpop.xlane.xlu0 %2791
        %2793 = vadd.xlane.f32.xlu0 %v2538
        %v2794 = vpop.xlane.xlu0 %2793
        %2795 = vadd.xlane.f32.xlu0 %v2540
        %v2796 = vpop.xlane.xlu0 %2795
        %2797 = vadd.xlane.f32.xlu0 %v2542
        %v2798 = vpop.xlane.xlu0 %2797
        %2799 = vadd.xlane.f32.xlu0 %v2544
        %v2800 = vpop.xlane.xlu0 %2799
        %2801 = vadd.xlane.f32.xlu0 %v2546
        %v2802 = vpop.xlane.xlu0 %2801
        %2803 = vadd.xlane.f32.xlu0 %v2548
        %v2804 = vpop.xlane.xlu0 %2803
        %2805 = vadd.xlane.f32.xlu0 %v2550
        %v2806 = vpop.xlane.xlu0 %2805
        %2807 = vadd.xlane.f32.xlu0 %v2552
        %v2808 = vpop.xlane.xlu0 %2807
        %2809 = vadd.xlane.f32.xlu0 %v2554
        %v2810 = vpop.xlane.xlu0 %2809
        %2811 = vadd.xlane.f32.xlu0 %v2556
        %v2812 = vpop.xlane.xlu0 %2811
        %2813 = vadd.xlane.f32.xlu0 %v2558
        %v2814 = vpop.xlane.xlu0 %2813
        %2815 = vadd.xlane.f32.xlu0 %v2560
        %v2816 = vpop.xlane.xlu0 %2815
        %2817 = vadd.xlane.f32.xlu0 %v2562
        %v2818 = vpop.xlane.xlu0 %2817
        %2819 = vadd.xlane.f32.xlu0 %v2564
        %v2820 = vpop.xlane.xlu0 %2819
        %2821 = vadd.xlane.f32.xlu0 %v2566
        %v2822 = vpop.xlane.xlu0 %2821
        %2823 = vadd.xlane.f32.xlu0 %v2568
        %v2824 = vpop.xlane.xlu0 %2823
        %2825 = vadd.xlane.f32.xlu0 %v2570
        %v2826 = vpop.xlane.xlu0 %2825
        %2827 = vadd.xlane.f32.xlu0 %v2572
        %v2828 = vpop.xlane.xlu0 %2827
        %2829 = vadd.xlane.f32.xlu0 %v2574
        %v2830 = vpop.xlane.xlu0 %2829
        %2831 = vadd.xlane.f32.xlu0 %v2576
        %v2832 = vpop.xlane.xlu0 %2831
        %2833 = vadd.xlane.f32.xlu0 %v2578
        %v2834 = vpop.xlane.xlu0 %2833
        %2835 = vadd.xlane.f32.xlu0 %v2580
        %v2836 = vpop.xlane.xlu0 %2835
        %2837 = vadd.xlane.f32.xlu0 %v2582
        %v2838 = vpop.xlane.xlu0 %2837
        %2839 = vadd.xlane.f32.xlu0 %v2584
        %v2840 = vpop.xlane.xlu0 %2839
        %2841 = vadd.xlane.f32.xlu0 %v2586
        %v2842 = vpop.xlane.xlu0 %2841
        %2843 = vadd.xlane.f32.xlu0 %v2588
        %v2844 = vpop.xlane.xlu0 %2843
        %2845 = vadd.xlane.f32.xlu0 %v2590
        %v2846 = vpop.xlane.xlu0 %2845
        %2847 = vadd.xlane.f32.xlu0 %v2592
        %v2848 = vpop.xlane.xlu0 %2847
        %2849 = vadd.xlane.f32.xlu0 %v2594
        %v2850 = vpop.xlane.xlu0 %2849
        %2851 = vadd.xlane.f32.xlu0 %v2596
        %v2852 = vpop.xlane.xlu0 %2851
        %2853 = vadd.xlane.f32.xlu0 %v2598
        %v2854 = vpop.xlane.xlu0 %2853
        %2855 = vadd.xlane.f32.xlu0 %v2600
        %v2856 = vpop.xlane.xlu0 %2855
        %2857 = vadd.xlane.f32.xlu0 %v2602
        %v2858 = vpop.xlane.xlu0 %2857
        %2859 = vadd.xlane.f32.xlu0 %v2604
        %v2860 = vpop.xlane.xlu0 %2859
        %2861 = vadd.xlane.f32.xlu0 %v2606
        %v2862 = vpop.xlane.xlu0 %2861
        %2863 = vadd.xlane.f32.xlu0 %v2608
        %v2864 = vpop.xlane.xlu0 %2863
        %2865 = vadd.xlane.f32.xlu0 %v2610
        %v2866 = vpop.xlane.xlu0 %2865
        %2867 = vadd.xlane.f32.xlu0 %v2612
        %v2868 = vpop.xlane.xlu0 %2867
        %2869 = vadd.xlane.f32.xlu0 %v2614
        %v2870 = vpop.xlane.xlu0 %2869
        %2871 = vadd.xlane.f32.xlu0 %v2616
        %v2872 = vpop.xlane.xlu0 %2871
        %2873 = vadd.xlane.f32.xlu0 %v2618
        %v2874 = vpop.xlane.xlu0 %2873
        %2875 = vadd.xlane.f32.xlu0 %v2620
        %v2876 = vpop.xlane.xlu0 %2875
        %2877 = vadd.xlane.f32.xlu0 %v2622
        %v2878 = vpop.xlane.xlu0 %2877
        %2879 = vadd.xlane.f32.xlu0 %v2624
        %v2880 = vpop.xlane.xlu0 %2879
        %2881 = vadd.xlane.f32.xlu0 %v2626
        %v2882 = vpop.xlane.xlu0 %2881
        %2883 = vadd.xlane.f32.xlu0 %v2628
        %v2884 = vpop.xlane.xlu0 %2883
        %2885 = vadd.xlane.f32.xlu0 %v2630
        %v2886 = vpop.xlane.xlu0 %2885
        %2887 = vadd.xlane.f32.xlu0 %v2632
        %v2888 = vpop.xlane.xlu0 %2887
        %2889 = vadd.xlane.f32.xlu0 %v2634
        %v2890 = vpop.xlane.xlu0 %2889
        %2891 = vadd.xlane.f32.xlu0 %v2636
        %v2892 = vpop.xlane.xlu0 %2891
        %2893 = vadd.xlane.f32.xlu0 %v2638
        %v2894 = vpop.xlane.xlu0 %2893
        %2895 = vadd.xlane.f32.xlu0 %v2640
        %v2896 = vpop.xlane.xlu0 %2895
        %2897 = vadd.xlane.f32.xlu0 %v2642
        %v2898 = vpop.xlane.xlu0 %2897
        %2899 = vadd.xlane.f32.xlu0 %v2644
        %v2900 = vpop.xlane.xlu0 %2899
        %2901 = vadd.xlane.f32.xlu0 %v2646
        %v2902 = vpop.xlane.xlu0 %2901
        %2903 = vadd.xlane.f32.xlu0 %v2648
        %v2904 = vpop.xlane.xlu0 %2903
        %2905 = vadd.xlane.f32.xlu0 %v2650
        %v2906 = vpop.xlane.xlu0 %2905
        %2907 = vadd.xlane.f32.xlu0 %v2652
        %v2908 = vpop.xlane.xlu0 %2907
        %2909 = vadd.xlane.f32.xlu0 %v2654
        %v2910 = vpop.xlane.xlu0 %2909
        %2911 = vadd.xlane.f32.xlu0 %v2656
        %v2912 = vpop.xlane.xlu0 %2911
        %2913 = vadd.xlane.f32.xlu0 %v2658
        %v2914 = vpop.xlane.xlu0 %2913
        %2915 = vadd.xlane.f32.xlu0 %v2660
        %v2916 = vpop.xlane.xlu0 %2915
        %2917 = vadd.xlane.f32.xlu0 %v2662
        %v2918 = vpop.xlane.xlu0 %2917
        %2919 = vadd.xlane.f32.xlu0 %v2664
        %v2920 = vpop.xlane.xlu0 %2919
        %2921 = vadd.xlane.f32.xlu0 %v2666
        %v2922 = vpop.xlane.xlu0 %2921
        %2923 = vadd.xlane.f32.xlu0 %v2668
        %v2924 = vpop.xlane.xlu0 %2923
        %2925 = vadd.xlane.f32.xlu0 %v2670
        %v2926 = vpop.xlane.xlu0 %2925
        %2927 = vadd.xlane.f32.xlu0 %v2672
        %v2928 = vpop.xlane.xlu0 %2927
        %2929 = vadd.xlane.f32.xlu0 %v2674
        %v2930 = vpop.xlane.xlu0 %2929
        %2931 = vadd.xlane.f32.xlu0 %v2676
        %v2932 = vpop.xlane.xlu0 %2931
        %2933 = vadd.xlane.f32.xlu0 %v2678
        %v2934 = vpop.xlane.xlu0 %2933
        %2935 = vadd.xlane.f32.xlu0 %v2680
        %v2936 = vpop.xlane.xlu0 %2935
        %2937 = vadd.xlane.f32.xlu0 %v2682
        %v2938 = vpop.xlane.xlu0 %2937
        %2939 = vadd.xlane.f32.xlu0 %v2684
        %v2940 = vpop.xlane.xlu0 %2939
        %2941 = vadd.xlane.f32.xlu0 %v2686
        %v2942 = vpop.xlane.xlu0 %2941
        %2943 = vadd.xlane.f32.xlu0 %v2688
        %v2944 = vpop.xlane.xlu0 %2943
        %2945 = vadd.xlane.f32.xlu0 %v2690
        %v2946 = vpop.xlane.xlu0 %2945
        %2947 = vadd.xlane.f32.xlu0 %v2692
        %v2948 = vpop.xlane.xlu0 %2947
        %2949 = vadd.xlane.f32.xlu0 %v2694
        %v2950 = vpop.xlane.xlu0 %2949
        %2951 = vadd.xlane.f32.xlu0 %v2696
        %v2952 = vpop.xlane.xlu0 %2951
        %2953 = vadd.xlane.f32.xlu0 %v2698
        %v2954 = vpop.xlane.xlu0 %2953
        %2955 = vadd.xlane.f32.xlu0 %v2700
        %v2956 = vpop.xlane.xlu0 %2955
        %2957 = vadd.xlane.f32.xlu0 %v2702
        %v2958 = vpop.xlane.xlu0 %2957
        %2959 = vadd.xlane.f32.xlu0 %v2704
        %v2960 = vpop.xlane.xlu0 %2959
        %2961 = vadd.xlane.f32.xlu0 %v2706
        %v2962 = vpop.xlane.xlu0 %2961
        %2963 = vadd.xlane.f32.xlu0 %v2708
        %v2964 = vpop.xlane.xlu0 %2963
        %v2965 = vrcp.pop %v2710
        %v2966 = vrcp.pop %v2712
        %v2967 = vrcp.pop %v2714
        %v2968 = vrcp.pop %v2716
        %v2969 = vrcp.pop %v2718
        %v2970 = vrcp.pop %v2720
        %v2971 = vrcp.pop %v2722
        %v2972 = vrcp.pop %v2724
        %v2973 = vrcp.pop %v2726
        %v2974 = vrcp.pop %v2728
        %v2975 = vrcp.pop %v2730
        %v2976 = vrcp.pop %v2732
        %v2977 = vrcp.pop %v2734
        %v2978 = vrcp.pop %v2736
        %v2979 = vrcp.pop %v2738
        %v2980 = vrcp.pop %v2740
        %v2981 = vrcp.pop %v2742
        %v2982 = vrcp.pop %v2744
        %v2983 = vrcp.pop %v2746
        %v2984 = vrcp.pop %v2748
        %v2985 = vrcp.pop %v2750
        %v2986 = vrcp.pop %v2752
        %v2987 = vrcp.pop %v2754
        %v2988 = vrcp.pop %v2756
        %v2989 = vrcp.pop %v2758
        %v2990 = vrcp.pop %v2760
        %v2991 = vrcp.pop %v2762
        %v2992 = vrcp.pop %v2764
        %v2993 = vrcp.pop %v2766
        %v2994 = vrcp.pop %v2768
        %v2995 = vrcp.pop %v2770
        %v2996 = vrcp.pop %v2772
        %v2997 = vrcp.pop %v2774
        %v2998 = vrcp.pop %v2776
        %v2999 = vrcp.pop %v2778
        %v3000 = vrcp.pop %v2780
        %v3001 = vrcp.pop %v2782
        %v3002 = vrcp.pop %v2784
        %v3003 = vrcp.pop %v2786
        %v3004 = vrcp.pop %v2788
        %v3005 = vrcp.pop %v2790
        %v3006 = vrcp.pop %v2792
        %v3007 = vrcp.pop %v2794
        %v3008 = vrcp.pop %v2796
        %v3009 = vrcp.pop %v2798
        %v3010 = vrcp.pop %v2800
        %v3011 = vrcp.pop %v2802
        %v3012 = vrcp.pop %v2804
        %v3013 = vrcp.pop %v2806
        %v3014 = vrcp.pop %v2808
        %v3015 = vrcp.pop %v2810
        %v3016 = vrcp.pop %v2812
        %v3017 = vrcp.pop %v2814
        %v3018 = vrcp.pop %v2816
        %v3019 = vrcp.pop %v2818
        %v3020 = vrcp.pop %v2820
        %v3021 = vrcp.pop %v2822
        %v3022 = vrcp.pop %v2824
        %v3023 = vrcp.pop %v2826
        %v3024 = vrcp.pop %v2828
        %v3025 = vrcp.pop %v2830
        %v3026 = vrcp.pop %v2832
        %v3027 = vrcp.pop %v2834
        %v3028 = vrcp.pop %v2836
        %v3029 = vrcp.pop %v2838
        %v3030 = vrcp.pop %v2840
        %v3031 = vrcp.pop %v2842
        %v3032 = vrcp.pop %v2844
        %v3033 = vrcp.pop %v2846
        %v3034 = vrcp.pop %v2848
        %v3035 = vrcp.pop %v2850
        %v3036 = vrcp.pop %v2852
        %v3037 = vrcp.pop %v2854
        %v3038 = vrcp.pop %v2856
        %v3039 = vrcp.pop %v2858
        %v3040 = vrcp.pop %v2860
        %v3041 = vrcp.pop %v2862
        %v3042 = vrcp.pop %v2864
        %v3043 = vrcp.pop %v2866
        %v3044 = vrcp.pop %v2868
        %v3045 = vrcp.pop %v2870
        %v3046 = vrcp.pop %v2872
        %v3047 = vrcp.pop %v2874
        %v3048 = vrcp.pop %v2876
        %v3049 = vrcp.pop %v2878
        %v3050 = vrcp.pop %v2880
        %v3051 = vrcp.pop %v2882
        %v3052 = vrcp.pop %v2884
        %v3053 = vrcp.pop %v2886
        %v3054 = vrcp.pop %v2888
        %v3055 = vrcp.pop %v2890
        %v3056 = vrcp.pop %v2892
        %v3057 = vrcp.pop %v2894
        %v3058 = vrcp.pop %v2896
        %v3059 = vrcp.pop %v2898
        %v3060 = vrcp.pop %v2900
        %v3061 = vrcp.pop %v2902
        %v3062 = vrcp.pop %v2904
        %v3063 = vrcp.pop %v2906
        %v3064 = vrcp.pop %v2908
        %v3065 = vrcp.pop %v2910
        %v3066 = vrcp.pop %v2912
        %v3067 = vrcp.pop %v2914
        %v3068 = vrcp.pop %v2916
        %v3069 = vrcp.pop %v2918
        %v3070 = vrcp.pop %v2920
        %v3071 = vrcp.pop %v2922
        %v3072 = vrcp.pop %v2924
        %v3073 = vrcp.pop %v2926
        %v3074 = vrcp.pop %v2928
        %v3075 = vrcp.pop %v2930
        %v3076 = vrcp.pop %v2932
        %v3077 = vrcp.pop %v2934
        %v3078 = vrcp.pop %v2936
        %v3079 = vrcp.pop %v2938
        %v3080 = vrcp.pop %v2940
        %v3081 = vrcp.pop %v2942
        %v3082 = vrcp.pop %v2944
        %v3083 = vrcp.pop %v2946
        %v3084 = vrcp.pop %v2948
        %v3085 = vrcp.pop %v2950
        %v3086 = vrcp.pop %v2952
        %v3087 = vrcp.pop %v2954
        %v3088 = vrcp.pop %v2956
        %v3089 = vrcp.pop %v2958
        %v3090 = vrcp.pop %v2960
        %v3091 = vrcp.pop %v2962
        %v3092 = vrcp.pop %v2964
        %v3093 = vmul.f32 %v2454, %v2965
        %v3094 = vmul.f32 %v2456, %v2966
        %v3095 = vmul.f32 %v2458, %v2967
        %v3096 = vmul.f32 %v2460, %v2968
        %v3097 = vmul.f32 %v2462, %v2969
        %v3098 = vmul.f32 %v2464, %v2970
        %v3099 = vmul.f32 %v2466, %v2971
        %v3100 = vmul.f32 %v2468, %v2972
        %v3101 = vmul.f32 %v2470, %v2973
        %v3102 = vmul.f32 %v2472, %v2974
        %v3103 = vmul.f32 %v2474, %v2975
        %v3104 = vmul.f32 %v2476, %v2976
        %v3105 = vmul.f32 %v2478, %v2977
        %v3106 = vmul.f32 %v2480, %v2978
        %v3107 = vmul.f32 %v2482, %v2979
        %v3108 = vmul.f32 %v2484, %v2980
        %v3109 = vmul.f32 %v2486, %v2981
        %v3110 = vmul.f32 %v2488, %v2982
        %v3111 = vmul.f32 %v2490, %v2983
        %v3112 = vmul.f32 %v2492, %v2984
        %v3113 = vmul.f32 %v2494, %v2985
        %v3114 = vmul.f32 %v2496, %v2986
        %v3115 = vmul.f32 %v2498, %v2987
        %v3116 = vmul.f32 %v2500, %v2988
        %v3117 = vmul.f32 %v2502, %v2989
        %v3118 = vmul.f32 %v2504, %v2990
        %v3119 = vmul.f32 %v2506, %v2991
        %v3120 = vmul.f32 %v2508, %v2992
        %v3121 = vmul.f32 %v2510, %v2993
        %v3122 = vmul.f32 %v2512, %v2994
        %v3123 = vmul.f32 %v2514, %v2995
        %v3124 = vmul.f32 %v2516, %v2996
        %v3125 = vmul.f32 %v2518, %v2997
        %v3126 = vmul.f32 %v2520, %v2998
        %v3127 = vmul.f32 %v2522, %v2999
        %v3128 = vmul.f32 %v2524, %v3000
        %v3129 = vmul.f32 %v2526, %v3001
        %v3130 = vmul.f32 %v2528, %v3002
        %v3131 = vmul.f32 %v2530, %v3003
        %v3132 = vmul.f32 %v2532, %v3004
        %v3133 = vmul.f32 %v2534, %v3005
        %v3134 = vmul.f32 %v2536, %v3006
        %v3135 = vmul.f32 %v2538, %v3007
        %v3136 = vmul.f32 %v2540, %v3008
        %v3137 = vmul.f32 %v2542, %v3009
        %v3138 = vmul.f32 %v2544, %v3010
        %v3139 = vmul.f32 %v2546, %v3011
        %v3140 = vmul.f32 %v2548, %v3012
        %v3141 = vmul.f32 %v2550, %v3013
        %v3142 = vmul.f32 %v2552, %v3014
        %v3143 = vmul.f32 %v2554, %v3015
        %v3144 = vmul.f32 %v2556, %v3016
        %v3145 = vmul.f32 %v2558, %v3017
        %v3146 = vmul.f32 %v2560, %v3018
        %v3147 = vmul.f32 %v2562, %v3019
        %v3148 = vmul.f32 %v2564, %v3020
        %v3149 = vmul.f32 %v2566, %v3021
        %v3150 = vmul.f32 %v2568, %v3022
        %v3151 = vmul.f32 %v2570, %v3023
        %v3152 = vmul.f32 %v2572, %v3024
        %v3153 = vmul.f32 %v2574, %v3025
        %v3154 = vmul.f32 %v2576, %v3026
        %v3155 = vmul.f32 %v2578, %v3027
        %v3156 = vmul.f32 %v2580, %v3028
        %v3157 = vmul.f32 %v2582, %v3029
        %v3158 = vmul.f32 %v2584, %v3030
        %v3159 = vmul.f32 %v2586, %v3031
        %v3160 = vmul.f32 %v2588, %v3032
        %v3161 = vmul.f32 %v2590, %v3033
        %v3162 = vmul.f32 %v2592, %v3034
        %v3163 = vmul.f32 %v2594, %v3035
        %v3164 = vmul.f32 %v2596, %v3036
        %v3165 = vmul.f32 %v2598, %v3037
        %v3166 = vmul.f32 %v2600, %v3038
        %v3167 = vmul.f32 %v2602, %v3039
        %v3168 = vmul.f32 %v2604, %v3040
        %v3169 = vmul.f32 %v2606, %v3041
        %v3170 = vmul.f32 %v2608, %v3042
        %v3171 = vmul.f32 %v2610, %v3043
        %v3172 = vmul.f32 %v2612, %v3044
        %v3173 = vmul.f32 %v2614, %v3045
        %v3174 = vmul.f32 %v2616, %v3046
        %v3175 = vmul.f32 %v2618, %v3047
        %v3176 = vmul.f32 %v2620, %v3048
        %v3177 = vmul.f32 %v2622, %v3049
        %v3178 = vmul.f32 %v2624, %v3050
        %v3179 = vmul.f32 %v2626, %v3051
        %v3180 = vmul.f32 %v2628, %v3052
        %v3181 = vmul.f32 %v2630, %v3053
        %v3182 = vmul.f32 %v2632, %v3054
        %v3183 = vmul.f32 %v2634, %v3055
        %v3184 = vmul.f32 %v2636, %v3056
        %v3185 = vmul.f32 %v2638, %v3057
        %v3186 = vmul.f32 %v2640, %v3058
        %v3187 = vmul.f32 %v2642, %v3059
        %v3188 = vmul.f32 %v2644, %v3060
        %v3189 = vmul.f32 %v2646, %v3061
        %v3190 = vmul.f32 %v2648, %v3062
        %v3191 = vmul.f32 %v2650, %v3063
        %v3192 = vmul.f32 %v2652, %v3064
        %v3193 = vmul.f32 %v2654, %v3065
        %v3194 = vmul.f32 %v2656, %v3066
        %v3195 = vmul.f32 %v2658, %v3067
        %v3196 = vmul.f32 %v2660, %v3068
        %v3197 = vmul.f32 %v2662, %v3069
        %v3198 = vmul.f32 %v2664, %v3070
        %v3199 = vmul.f32 %v2666, %v3071
        %v3200 = vmul.f32 %v2668, %v3072
        %v3201 = vmul.f32 %v2670, %v3073
        %v3202 = vmul.f32 %v2672, %v3074
        %v3203 = vmul.f32 %v2674, %v3075
        %v3204 = vmul.f32 %v2676, %v3076
        %v3205 = vmul.f32 %v2678, %v3077
        %v3206 = vmul.f32 %v2680, %v3078
        %v3207 = vmul.f32 %v2682, %v3079
        %v3208 = vmul.f32 %v2684, %v3080
        %v3209 = vmul.f32 %v2686, %v3081
        %v3210 = vmul.f32 %v2688, %v3082
        %v3211 = vmul.f32 %v2690, %v3083
        %v3212 = vmul.f32 %v2692, %v3084
        %v3213 = vmul.f32 %v2694, %v3085
        %v3214 = vmul.f32 %v2696, %v3086
        %v3215 = vmul.f32 %v2698, %v3087
        %v3216 = vmul.f32 %v2700, %v3088
        %v3217 = vmul.f32 %v2702, %v3089
        %v3218 = vmul.f32 %v2704, %v3090
        %v3219 = vmul.f32 %v2706, %v3091
        %v3220 = vmul.f32 %v2708, %v3092
        %3221 = vst [vmem:[%s238] sm:$0xff] %v3093
        %3222 = vst [vmem:[%s238 + $0x8] sm:$0xff] %v3094
        %3223 = vst [vmem:[%s238 + $0x10] sm:$0xff] %v3095
        %3224 = vst [vmem:[%s238 + $0x18] sm:$0xff] %v3096
        %3225 = vst [vmem:[%s238 + $0x20] sm:$0xff] %v3097
        %3226 = vst [vmem:[%s238 + $0x28] sm:$0xff] %v3098
        %3227 = vst [vmem:[%s238 + $0x30] sm:$0xff] %v3099
        %3228 = vst [vmem:[%s238 + $0x38] sm:$0xff] %v3100
        %3229 = vst [vmem:[%s238 + $0x40] sm:$0xff] %v3101
        %3230 = vst [vmem:[%s238 + $0x48] sm:$0xff] %v3102
        %3231 = vst [vmem:[%s238 + $0x50] sm:$0xff] %v3103
        %3232 = vst [vmem:[%s238 + $0x58] sm:$0xff] %v3104
        %3233 = vst [vmem:[%s238 + $0x60] sm:$0xff] %v3105
        %3234 = vst [vmem:[%s238 + $0x68] sm:$0xff] %v3106
        %3235 = vst [vmem:[%s238 + $0x70] sm:$0xff] %v3107
        %3236 = vst [vmem:[%s238 + $0x78] sm:$0xff] %v3108
        %3237 = vst [vmem:[%s238 + $0x80] sm:$0xff] %v3109
        %3238 = vst [vmem:[%s238 + $0x88] sm:$0xff] %v3110
        %3239 = vst [vmem:[%s238 + $0x90] sm:$0xff] %v3111
        %3240 = vst [vmem:[%s238 + $0x98] sm:$0xff] %v3112
        %3241 = vst [vmem:[%s238 + $0xa0] sm:$0xff] %v3113
        %3242 = vst [vmem:[%s238 + $0xa8] sm:$0xff] %v3114
        %3243 = vst [vmem:[%s238 + $0xb0] sm:$0xff] %v3115
        %3244 = vst [vmem:[%s238 + $0xb8] sm:$0xff] %v3116
        %3245 = vst [vmem:[%s238 + $0xc0] sm:$0xff] %v3117
        %3246 = vst [vmem:[%s238 + $0xc8] sm:$0xff] %v3118
        %3247 = vst [vmem:[%s238 + $0xd0] sm:$0xff] %v3119
        %3248 = vst [vmem:[%s238 + $0xd8] sm:$0xff] %v3120
        %3249 = vst [vmem:[%s238 + $0xe0] sm:$0xff] %v3121
        %3250 = vst [vmem:[%s238 + $0xe8] sm:$0xff] %v3122
        %3251 = vst [vmem:[%s238 + $0xf0] sm:$0xff] %v3123
        %3252 = vst [vmem:[%s238 + $0xf8] sm:$0xff] %v3124
        %3253 = vst [vmem:[%s238 + $0x100] sm:$0xff] %v3125
        %3254 = vst [vmem:[%s238 + $0x108] sm:$0xff] %v3126
        %3255 = vst [vmem:[%s238 + $0x110] sm:$0xff] %v3127
        %3256 = vst [vmem:[%s238 + $0x118] sm:$0xff] %v3128
        %3257 = vst [vmem:[%s238 + $0x120] sm:$0xff] %v3129
        %3258 = vst [vmem:[%s238 + $0x128] sm:$0xff] %v3130
        %3259 = vst [vmem:[%s238 + $0x130] sm:$0xff] %v3131
        %3260 = vst [vmem:[%s238 + $0x138] sm:$0xff] %v3132
        %3261 = vst [vmem:[%s238 + $0x140] sm:$0xff] %v3133
        %3262 = vst [vmem:[%s238 + $0x148] sm:$0xff] %v3134
        %3263 = vst [vmem:[%s238 + $0x150] sm:$0xff] %v3135
        %3264 = vst [vmem:[%s238 + $0x158] sm:$0xff] %v3136
        %3265 = vst [vmem:[%s238 + $0x160] sm:$0xff] %v3137
        %3266 = vst [vmem:[%s238 + $0x168] sm:$0xff] %v3138
        %3267 = vst [vmem:[%s238 + $0x170] sm:$0xff] %v3139
        %3268 = vst [vmem:[%s238 + $0x178] sm:$0xff] %v3140
        %3269 = vst [vmem:[%s238 + $0x180] sm:$0xff] %v3141
        %3270 = vst [vmem:[%s238 + $0x188] sm:$0xff] %v3142
        %3271 = vst [vmem:[%s238 + $0x190] sm:$0xff] %v3143
        %3272 = vst [vmem:[%s238 + $0x198] sm:$0xff] %v3144
        %3273 = vst [vmem:[%s238 + $0x1a0] sm:$0xff] %v3145
        %3274 = vst [vmem:[%s238 + $0x1a8] sm:$0xff] %v3146
        %3275 = vst [vmem:[%s238 + $0x1b0] sm:$0xff] %v3147
        %3276 = vst [vmem:[%s238 + $0x1b8] sm:$0xff] %v3148
        %3277 = vst [vmem:[%s238 + $0x1c0] sm:$0xff] %v3149
        %3278 = vst [vmem:[%s238 + $0x1c8] sm:$0xff] %v3150
        %3279 = vst [vmem:[%s238 + $0x1d0] sm:$0xff] %v3151
        %3280 = vst [vmem:[%s238 + $0x1d8] sm:$0xff] %v3152
        %3281 = vst [vmem:[%s238 + $0x1e0] sm:$0xff] %v3153
        %3282 = vst [vmem:[%s238 + $0x1e8] sm:$0xff] %v3154
        %3283 = vst [vmem:[%s238 + $0x1f0] sm:$0xff] %v3155
        %3284 = vst [vmem:[%s238 + $0x1f8] sm:$0xff] %v3156
        %3285 = vst [vmem:[%s238 + $0x200] sm:$0xff] %v3157
        %3286 = vst [vmem:[%s238 + $0x208] sm:$0xff] %v3158
        %3287 = vst [vmem:[%s238 + $0x210] sm:$0xff] %v3159
        %3288 = vst [vmem:[%s238 + $0x218] sm:$0xff] %v3160
        %3289 = vst [vmem:[%s238 + $0x220] sm:$0xff] %v3161
        %3290 = vst [vmem:[%s238 + $0x228] sm:$0xff] %v3162
        %3291 = vst [vmem:[%s238 + $0x230] sm:$0xff] %v3163
        %3292 = vst [vmem:[%s238 + $0x238] sm:$0xff] %v3164
        %3293 = vst [vmem:[%s238 + $0x240] sm:$0xff] %v3165
        %3294 = vst [vmem:[%s238 + $0x248] sm:$0xff] %v3166
        %3295 = vst [vmem:[%s238 + $0x250] sm:$0xff] %v3167
        %3296 = vst [vmem:[%s238 + $0x258] sm:$0xff] %v3168
        %3297 = vst [vmem:[%s238 + $0x260] sm:$0xff] %v3169
        %3298 = vst [vmem:[%s238 + $0x268] sm:$0xff] %v3170
        %3299 = vst [vmem:[%s238 + $0x270] sm:$0xff] %v3171
        %3300 = vst [vmem:[%s238 + $0x278] sm:$0xff] %v3172
        %3301 = vst [vmem:[%s238 + $0x280] sm:$0xff] %v3173
        %3302 = vst [vmem:[%s238 + $0x288] sm:$0xff] %v3174
        %3303 = vst [vmem:[%s238 + $0x290] sm:$0xff] %v3175
        %3304 = vst [vmem:[%s238 + $0x298] sm:$0xff] %v3176
        %3305 = vst [vmem:[%s238 + $0x2a0] sm:$0xff] %v3177
        %3306 = vst [vmem:[%s238 + $0x2a8] sm:$0xff] %v3178
        %3307 = vst [vmem:[%s238 + $0x2b0] sm:$0xff] %v3179
        %3308 = vst [vmem:[%s238 + $0x2b8] sm:$0xff] %v3180
        %3309 = vst [vmem:[%s238 + $0x2c0] sm:$0xff] %v3181
        %3310 = vst [vmem:[%s238 + $0x2c8] sm:$0xff] %v3182
        %3311 = vst [vmem:[%s238 + $0x2d0] sm:$0xff] %v3183
        %3312 = vst [vmem:[%s238 + $0x2d8] sm:$0xff] %v3184
        %3313 = vst [vmem:[%s238 + $0x2e0] sm:$0xff] %v3185
        %3314 = vst [vmem:[%s238 + $0x2e8] sm:$0xff] %v3186
        %3315 = vst [vmem:[%s238 + $0x2f0] sm:$0xff] %v3187
        %3316 = vst [vmem:[%s238 + $0x2f8] sm:$0xff] %v3188
        %3317 = vst [vmem:[%s238 + $0x300] sm:$0xff] %v3189
        %3318 = vst [vmem:[%s238 + $0x308] sm:$0xff] %v3190
        %3319 = vst [vmem:[%s238 + $0x310] sm:$0xff] %v3191
        %3320 = vst [vmem:[%s238 + $0x318] sm:$0xff] %v3192
        %3321 = vst [vmem:[%s238 + $0x320] sm:$0xff] %v3193
        %3322 = vst [vmem:[%s238 + $0x328] sm:$0xff] %v3194
        %3323 = vst [vmem:[%s238 + $0x330] sm:$0xff] %v3195
        %3324 = vst [vmem:[%s238 + $0x338] sm:$0xff] %v3196
        %3325 = vst [vmem:[%s238 + $0x340] sm:$0xff] %v3197
        %3326 = vst [vmem:[%s238 + $0x348] sm:$0xff] %v3198
        %3327 = vst [vmem:[%s238 + $0x350] sm:$0xff] %v3199
        %3328 = vst [vmem:[%s238 + $0x358] sm:$0xff] %v3200
        %3329 = vst [vmem:[%s238 + $0x360] sm:$0xff] %v3201
        %3330 = vst [vmem:[%s238 + $0x368] sm:$0xff] %v3202
        %3331 = vst [vmem:[%s238 + $0x370] sm:$0xff] %v3203
        %3332 = vst [vmem:[%s238 + $0x378] sm:$0xff] %v3204
        %3333 = vst [vmem:[%s238 + $0x380] sm:$0xff] %v3205
        %3334 = vst [vmem:[%s238 + $0x388] sm:$0xff] %v3206
        %3335 = vst [vmem:[%s238 + $0x390] sm:$0xff] %v3207
        %3336 = vst [vmem:[%s238 + $0x398] sm:$0xff] %v3208
        %3337 = vst [vmem:[%s238 + $0x3a0] sm:$0xff] %v3209
        %3338 = vst [vmem:[%s238 + $0x3a8] sm:$0xff] %v3210
        %3339 = vst [vmem:[%s238 + $0x3b0] sm:$0xff] %v3211
        %3340 = vst [vmem:[%s238 + $0x3b8] sm:$0xff] %v3212
        %3341 = vst [vmem:[%s238 + $0x3c0] sm:$0xff] %v3213
        %3342 = vst [vmem:[%s238 + $0x3c8] sm:$0xff] %v3214
        %3343 = vst [vmem:[%s238 + $0x3d0] sm:$0xff] %v3215
        %3344 = vst [vmem:[%s238 + $0x3d8] sm:$0xff] %v3216
        %3345 = vst [vmem:[%s238 + $0x3e0] sm:$0xff] %v3217
        %3346 = vst [vmem:[%s238 + $0x3e8] sm:$0xff] %v3218
        %3347 = vst [vmem:[%s238 + $0x3f0] sm:$0xff] %v3219
        %3348 = vst [vmem:[%s238 + $0x3f8] sm:$0xff] %v3220
        %3349 = vmatpush.msra.mxu0 %v539
        %3350 = vmatpush.msra.mxu0 %v538
        %3351 = vmatpush.msra.mxu0 %v537
        %3352 = vmatpush.msra.mxu0 %v536
        %3353 = vmatpush.msra.mxu0 %v535
        %3354 = vmatpush.msra.mxu0 %v534
        %3355 = vmatpush.msra.mxu0 %v533
        %3356 = vmatpush.msra.mxu0 %v532
        %3357 = vmatpush.msra.mxu0 %v531
        %3358 = vmatpush.msra.mxu0 %v530
        %3359 = vmatpush.msra.mxu0 %v529
        %3360 = vmatpush.msra.mxu0 %v528
        %3361 = vmatpush.msra.mxu0 %v527
        %3362 = vmatpush.msra.mxu0 %v526
        %3363 = vmatpush.msra.mxu0 %v525
        %3364 = vmatpush.msra.mxu0 %v524
        %3365 = vmatmul.f32.gmra.mxu0 %v3093
        %v3366 = vpop.f32.mrf.mxu0
        %v3367 = vadd.f32 0.0, %v3366
        %3368 = vmatmul.f32.gmra.mxu0 %v3094
        %v3369 = vpop.f32.mrf.mxu0
        %v3370 = vadd.f32 0.0, %v3369
        %3371 = vmatmul.f32.gmra.mxu0 %v3095
        %v3372 = vpop.f32.mrf.mxu0
        %v3373 = vadd.f32 0.0, %v3372
        %3374 = vmatmul.f32.gmra.mxu0 %v3096
        %v3375 = vpop.f32.mrf.mxu0
        %v3376 = vadd.f32 0.0, %v3375
        %3377 = vmatmul.f32.gmra.mxu0 %v3097
        %v3378 = vpop.f32.mrf.mxu0
        %v3379 = vadd.f32 0.0, %v3378
        %3380 = vmatmul.f32.gmra.mxu0 %v3098
        %v3381 = vpop.f32.mrf.mxu0
        %v3382 = vadd.f32 0.0, %v3381
        %3383 = vmatmul.f32.gmra.mxu0 %v3099
        %v3384 = vpop.f32.mrf.mxu0
        %v3385 = vadd.f32 0.0, %v3384
        %3386 = vmatmul.f32.gmra.mxu0 %v3100
        %v3387 = vpop.f32.mrf.mxu0
        %v3388 = vadd.f32 0.0, %v3387
        %3389 = vmatmul.f32.gmra.mxu0 %v3101
        %v3390 = vpop.f32.mrf.mxu0
        %v3391 = vadd.f32 0.0, %v3390
        %3392 = vmatmul.f32.gmra.mxu0 %v3102
        %v3393 = vpop.f32.mrf.mxu0
        %v3394 = vadd.f32 0.0, %v3393
        %3395 = vmatmul.f32.gmra.mxu0 %v3103
        %v3396 = vpop.f32.mrf.mxu0
        %v3397 = vadd.f32 0.0, %v3396
        %3398 = vmatmul.f32.gmra.mxu0 %v3104
        %v3399 = vpop.f32.mrf.mxu0
        %v3400 = vadd.f32 0.0, %v3399
        %3401 = vmatmul.f32.gmra.mxu0 %v3105
        %v3402 = vpop.f32.mrf.mxu0
        %v3403 = vadd.f32 0.0, %v3402
        %3404 = vmatmul.f32.gmra.mxu0 %v3106
        %v3405 = vpop.f32.mrf.mxu0
        %v3406 = vadd.f32 0.0, %v3405
        %3407 = vmatmul.f32.gmra.mxu0 %v3107
        %v3408 = vpop.f32.mrf.mxu0
        %v3409 = vadd.f32 0.0, %v3408
        %3410 = vmatmul.f32.gmra.mxu0 %v3108
        %v3411 = vpop.f32.mrf.mxu0
        %v3412 = vadd.f32 0.0, %v3411
        %3413 = vdwg.mxu0
        %3414 = vmatpush.msra.mxu0 %v555
        %3415 = vmatpush.msra.mxu0 %v554
        %3416 = vmatpush.msra.mxu0 %v553
        %3417 = vmatpush.msra.mxu0 %v552
        %3418 = vmatpush.msra.mxu0 %v551
        %3419 = vmatpush.msra.mxu0 %v550
        %3420 = vmatpush.msra.mxu0 %v549
        %3421 = vmatpush.msra.mxu0 %v548
        %3422 = vmatpush.msra.mxu0 %v547
        %3423 = vmatpush.msra.mxu0 %v546
        %3424 = vmatpush.msra.mxu0 %v545
        %3425 = vmatpush.msra.mxu0 %v544
        %3426 = vmatpush.msra.mxu0 %v543
        %3427 = vmatpush.msra.mxu0 %v542
        %3428 = vmatpush.msra.mxu0 %v541
        %3429 = vmatpush.msra.mxu0 %v540
        %3430 = vmatmul.f32.gmra.mxu0 %v3109
        %v3431 = vpop.f32.mrf.mxu0
        %v3432 = vadd.f32 0.0, %v3431
        %3433 = vmatmul.f32.gmra.mxu0 %v3110
        %v3434 = vpop.f32.mrf.mxu0
        %v3435 = vadd.f32 0.0, %v3434
        %3436 = vmatmul.f32.gmra.mxu0 %v3111
        %v3437 = vpop.f32.mrf.mxu0
        %v3438 = vadd.f32 0.0, %v3437
        %3439 = vmatmul.f32.gmra.mxu0 %v3112
        %v3440 = vpop.f32.mrf.mxu0
        %v3441 = vadd.f32 0.0, %v3440
        %3442 = vmatmul.f32.gmra.mxu0 %v3113
        %v3443 = vpop.f32.mrf.mxu0
        %v3444 = vadd.f32 0.0, %v3443
        %3445 = vmatmul.f32.gmra.mxu0 %v3114
        %v3446 = vpop.f32.mrf.mxu0
        %v3447 = vadd.f32 0.0, %v3446
        %3448 = vmatmul.f32.gmra.mxu0 %v3115
        %v3449 = vpop.f32.mrf.mxu0
        %v3450 = vadd.f32 0.0, %v3449
        %3451 = vmatmul.f32.gmra.mxu0 %v3116
        %v3452 = vpop.f32.mrf.mxu0
        %v3453 = vadd.f32 0.0, %v3452
        %3454 = vmatmul.f32.gmra.mxu0 %v3117
        %v3455 = vpop.f32.mrf.mxu0
        %v3456 = vadd.f32 0.0, %v3455
        %3457 = vmatmul.f32.gmra.mxu0 %v3118
        %v3458 = vpop.f32.mrf.mxu0
        %v3459 = vadd.f32 0.0, %v3458
        %3460 = vmatmul.f32.gmra.mxu0 %v3119
        %v3461 = vpop.f32.mrf.mxu0
        %v3462 = vadd.f32 0.0, %v3461
        %3463 = vmatmul.f32.gmra.mxu0 %v3120
        %v3464 = vpop.f32.mrf.mxu0
        %v3465 = vadd.f32 0.0, %v3464
        %3466 = vmatmul.f32.gmra.mxu0 %v3121
        %v3467 = vpop.f32.mrf.mxu0
        %v3468 = vadd.f32 0.0, %v3467
        %3469 = vmatmul.f32.gmra.mxu0 %v3122
        %v3470 = vpop.f32.mrf.mxu0
        %v3471 = vadd.f32 0.0, %v3470
        %3472 = vmatmul.f32.gmra.mxu0 %v3123
        %v3473 = vpop.f32.mrf.mxu0
        %v3474 = vadd.f32 0.0, %v3473
        %3475 = vmatmul.f32.gmra.mxu0 %v3124
        %v3476 = vpop.f32.mrf.mxu0
        %v3477 = vadd.f32 0.0, %v3476
        %3478 = vdwg.mxu0
        %3479 = vmatpush.msra.mxu0 %v571
        %3480 = vmatpush.msra.mxu0 %v570
        %3481 = vmatpush.msra.mxu0 %v569
        %3482 = vmatpush.msra.mxu0 %v568
        %3483 = vmatpush.msra.mxu0 %v567
        %3484 = vmatpush.msra.mxu0 %v566
        %3485 = vmatpush.msra.mxu0 %v565
        %3486 = vmatpush.msra.mxu0 %v564
        %3487 = vmatpush.msra.mxu0 %v563
        %3488 = vmatpush.msra.mxu0 %v562
        %3489 = vmatpush.msra.mxu0 %v561
        %3490 = vmatpush.msra.mxu0 %v560
        %3491 = vmatpush.msra.mxu0 %v559
        %3492 = vmatpush.msra.mxu0 %v558
        %3493 = vmatpush.msra.mxu0 %v557
        %3494 = vmatpush.msra.mxu0 %v556
        %3495 = vmatmul.f32.gmra.mxu0 %v3125
        %v3496 = vpop.f32.mrf.mxu0
        %v3497 = vadd.f32 0.0, %v3496
        %3498 = vmatmul.f32.gmra.mxu0 %v3126
        %v3499 = vpop.f32.mrf.mxu0
        %v3500 = vadd.f32 0.0, %v3499
        %3501 = vmatmul.f32.gmra.mxu0 %v3127
        %v3502 = vpop.f32.mrf.mxu0
        %v3503 = vadd.f32 0.0, %v3502
        %3504 = vmatmul.f32.gmra.mxu0 %v3128
        %v3505 = vpop.f32.mrf.mxu0
        %v3506 = vadd.f32 0.0, %v3505
        %3507 = vmatmul.f32.gmra.mxu0 %v3129
        %v3508 = vpop.f32.mrf.mxu0
        %v3509 = vadd.f32 0.0, %v3508
        %3510 = vmatmul.f32.gmra.mxu0 %v3130
        %v3511 = vpop.f32.mrf.mxu0
        %v3512 = vadd.f32 0.0, %v3511
        %3513 = vmatmul.f32.gmra.mxu0 %v3131
        %v3514 = vpop.f32.mrf.mxu0
        %v3515 = vadd.f32 0.0, %v3514
        %3516 = vmatmul.f32.gmra.mxu0 %v3132
        %v3517 = vpop.f32.mrf.mxu0
        %v3518 = vadd.f32 0.0, %v3517
        %3519 = vmatmul.f32.gmra.mxu0 %v3133
        %v3520 = vpop.f32.mrf.mxu0
        %v3521 = vadd.f32 0.0, %v3520
        %3522 = vmatmul.f32.gmra.mxu0 %v3134
        %v3523 = vpop.f32.mrf.mxu0
        %v3524 = vadd.f32 0.0, %v3523
        %3525 = vmatmul.f32.gmra.mxu0 %v3135
        %v3526 = vpop.f32.mrf.mxu0
        %v3527 = vadd.f32 0.0, %v3526
        %3528 = vmatmul.f32.gmra.mxu0 %v3136
        %v3529 = vpop.f32.mrf.mxu0
        %v3530 = vadd.f32 0.0, %v3529
        %3531 = vmatmul.f32.gmra.mxu0 %v3137
        %v3532 = vpop.f32.mrf.mxu0
        %v3533 = vadd.f32 0.0, %v3532
        %3534 = vmatmul.f32.gmra.mxu0 %v3138
        %v3535 = vpop.f32.mrf.mxu0
        %v3536 = vadd.f32 0.0, %v3535
        %3537 = vmatmul.f32.gmra.mxu0 %v3139
        %v3538 = vpop.f32.mrf.mxu0
        %v3539 = vadd.f32 0.0, %v3538
        %3540 = vmatmul.f32.gmra.mxu0 %v3140
        %v3541 = vpop.f32.mrf.mxu0
        %v3542 = vadd.f32 0.0, %v3541
        %3543 = vdwg.mxu0
        %3544 = vmatpush.msra.mxu0 %v587
        %3545 = vmatpush.msra.mxu0 %v586
        %3546 = vmatpush.msra.mxu0 %v585
        %3547 = vmatpush.msra.mxu0 %v584
        %3548 = vmatpush.msra.mxu0 %v583
        %3549 = vmatpush.msra.mxu0 %v582
        %3550 = vmatpush.msra.mxu0 %v581
        %3551 = vmatpush.msra.mxu0 %v580
        %3552 = vmatpush.msra.mxu0 %v579
        %3553 = vmatpush.msra.mxu0 %v578
        %3554 = vmatpush.msra.mxu0 %v577
        %3555 = vmatpush.msra.mxu0 %v576
        %3556 = vmatpush.msra.mxu0 %v575
        %3557 = vmatpush.msra.mxu0 %v574
        %3558 = vmatpush.msra.mxu0 %v573
        %3559 = vmatpush.msra.mxu0 %v572
        %3560 = vmatmul.f32.gmra.mxu0 %v3141
        %v3561 = vpop.f32.mrf.mxu0
        %v3562 = vadd.f32 0.0, %v3561
        %3563 = vmatmul.f32.gmra.mxu0 %v3142
        %v3564 = vpop.f32.mrf.mxu0
        %v3565 = vadd.f32 0.0, %v3564
        %3566 = vmatmul.f32.gmra.mxu0 %v3143
        %v3567 = vpop.f32.mrf.mxu0
        %v3568 = vadd.f32 0.0, %v3567
        %3569 = vmatmul.f32.gmra.mxu0 %v3144
        %v3570 = vpop.f32.mrf.mxu0
        %v3571 = vadd.f32 0.0, %v3570
        %3572 = vmatmul.f32.gmra.mxu0 %v3145
        %v3573 = vpop.f32.mrf.mxu0
        %v3574 = vadd.f32 0.0, %v3573
        %3575 = vmatmul.f32.gmra.mxu0 %v3146
        %v3576 = vpop.f32.mrf.mxu0
        %v3577 = vadd.f32 0.0, %v3576
        %3578 = vmatmul.f32.gmra.mxu0 %v3147
        %v3579 = vpop.f32.mrf.mxu0
        %v3580 = vadd.f32 0.0, %v3579
        %3581 = vmatmul.f32.gmra.mxu0 %v3148
        %v3582 = vpop.f32.mrf.mxu0
        %v3583 = vadd.f32 0.0, %v3582
        %3584 = vmatmul.f32.gmra.mxu0 %v3149
        %v3585 = vpop.f32.mrf.mxu0
        %v3586 = vadd.f32 0.0, %v3585
        %3587 = vmatmul.f32.gmra.mxu0 %v3150
        %v3588 = vpop.f32.mrf.mxu0
        %v3589 = vadd.f32 0.0, %v3588
        %3590 = vmatmul.f32.gmra.mxu0 %v3151
        %v3591 = vpop.f32.mrf.mxu0
        %v3592 = vadd.f32 0.0, %v3591
        %3593 = vmatmul.f32.gmra.mxu0 %v3152
        %v3594 = vpop.f32.mrf.mxu0
        %v3595 = vadd.f32 0.0, %v3594
        %3596 = vmatmul.f32.gmra.mxu0 %v3153
        %v3597 = vpop.f32.mrf.mxu0
        %v3598 = vadd.f32 0.0, %v3597
        %3599 = vmatmul.f32.gmra.mxu0 %v3154
        %v3600 = vpop.f32.mrf.mxu0
        %v3601 = vadd.f32 0.0, %v3600
        %3602 = vmatmul.f32.gmra.mxu0 %v3155
        %v3603 = vpop.f32.mrf.mxu0
        %v3604 = vadd.f32 0.0, %v3603
        %3605 = vmatmul.f32.gmra.mxu0 %v3156
        %v3606 = vpop.f32.mrf.mxu0
        %v3607 = vadd.f32 0.0, %v3606
        %3608 = vdwg.mxu0
        %3609 = vmatpush.msra.mxu0 %v603
        %3610 = vmatpush.msra.mxu0 %v602
        %3611 = vmatpush.msra.mxu0 %v601
        %3612 = vmatpush.msra.mxu0 %v600
        %3613 = vmatpush.msra.mxu0 %v599
        %3614 = vmatpush.msra.mxu0 %v598
        %3615 = vmatpush.msra.mxu0 %v597
        %3616 = vmatpush.msra.mxu0 %v596
        %3617 = vmatpush.msra.mxu0 %v595
        %3618 = vmatpush.msra.mxu0 %v594
        %3619 = vmatpush.msra.mxu0 %v593
        %3620 = vmatpush.msra.mxu0 %v592
        %3621 = vmatpush.msra.mxu0 %v591
        %3622 = vmatpush.msra.mxu0 %v590
        %3623 = vmatpush.msra.mxu0 %v589
        %3624 = vmatpush.msra.mxu0 %v588
        %3625 = vmatmul.f32.gmra.mxu0 %v3157
        %v3626 = vpop.f32.mrf.mxu0
        %v3627 = vadd.f32 0.0, %v3626
        %3628 = vmatmul.f32.gmra.mxu0 %v3158
        %v3629 = vpop.f32.mrf.mxu0
        %v3630 = vadd.f32 0.0, %v3629
        %3631 = vmatmul.f32.gmra.mxu0 %v3159
        %v3632 = vpop.f32.mrf.mxu0
        %v3633 = vadd.f32 0.0, %v3632
        %3634 = vmatmul.f32.gmra.mxu0 %v3160
        %v3635 = vpop.f32.mrf.mxu0
        %v3636 = vadd.f32 0.0, %v3635
        %3637 = vmatmul.f32.gmra.mxu0 %v3161
        %v3638 = vpop.f32.mrf.mxu0
        %v3639 = vadd.f32 0.0, %v3638
        %3640 = vmatmul.f32.gmra.mxu0 %v3162
        %v3641 = vpop.f32.mrf.mxu0
        %v3642 = vadd.f32 0.0, %v3641
        %3643 = vmatmul.f32.gmra.mxu0 %v3163
        %v3644 = vpop.f32.mrf.mxu0
        %v3645 = vadd.f32 0.0, %v3644
        %3646 = vmatmul.f32.gmra.mxu0 %v3164
        %v3647 = vpop.f32.mrf.mxu0
        %v3648 = vadd.f32 0.0, %v3647
        %3649 = vmatmul.f32.gmra.mxu0 %v3165
        %v3650 = vpop.f32.mrf.mxu0
        %v3651 = vadd.f32 0.0, %v3650
        %3652 = vmatmul.f32.gmra.mxu0 %v3166
        %v3653 = vpop.f32.mrf.mxu0
        %v3654 = vadd.f32 0.0, %v3653
        %3655 = vmatmul.f32.gmra.mxu0 %v3167
        %v3656 = vpop.f32.mrf.mxu0
        %v3657 = vadd.f32 0.0, %v3656
        %3658 = vmatmul.f32.gmra.mxu0 %v3168
        %v3659 = vpop.f32.mrf.mxu0
        %v3660 = vadd.f32 0.0, %v3659
        %3661 = vmatmul.f32.gmra.mxu0 %v3169
        %v3662 = vpop.f32.mrf.mxu0
        %v3663 = vadd.f32 0.0, %v3662
        %3664 = vmatmul.f32.gmra.mxu0 %v3170
        %v3665 = vpop.f32.mrf.mxu0
        %v3666 = vadd.f32 0.0, %v3665
        %3667 = vmatmul.f32.gmra.mxu0 %v3171
        %v3668 = vpop.f32.mrf.mxu0
        %v3669 = vadd.f32 0.0, %v3668
        %3670 = vmatmul.f32.gmra.mxu0 %v3172
        %v3671 = vpop.f32.mrf.mxu0
        %v3672 = vadd.f32 0.0, %v3671
        %3673 = vdwg.mxu0
        %3674 = vmatpush.msra.mxu0 %v619
        %3675 = vmatpush.msra.mxu0 %v618
        %3676 = vmatpush.msra.mxu0 %v617
        %3677 = vmatpush.msra.mxu0 %v616
        %3678 = vmatpush.msra.mxu0 %v615
        %3679 = vmatpush.msra.mxu0 %v614
        %3680 = vmatpush.msra.mxu0 %v613
        %3681 = vmatpush.msra.mxu0 %v612
        %3682 = vmatpush.msra.mxu0 %v611
        %3683 = vmatpush.msra.mxu0 %v610
        %3684 = vmatpush.msra.mxu0 %v609
        %3685 = vmatpush.msra.mxu0 %v608
        %3686 = vmatpush.msra.mxu0 %v607
        %3687 = vmatpush.msra.mxu0 %v606
        %3688 = vmatpush.msra.mxu0 %v605
        %3689 = vmatpush.msra.mxu0 %v604
        %3690 = vmatmul.f32.gmra.mxu0 %v3173
        %v3691 = vpop.f32.mrf.mxu0
        %v3692 = vadd.f32 0.0, %v3691
        %3693 = vmatmul.f32.gmra.mxu0 %v3174
        %v3694 = vpop.f32.mrf.mxu0
        %v3695 = vadd.f32 0.0, %v3694
        %3696 = vmatmul.f32.gmra.mxu0 %v3175
        %v3697 = vpop.f32.mrf.mxu0
        %v3698 = vadd.f32 0.0, %v3697
        %3699 = vmatmul.f32.gmra.mxu0 %v3176
        %v3700 = vpop.f32.mrf.mxu0
        %v3701 = vadd.f32 0.0, %v3700
        %3702 = vmatmul.f32.gmra.mxu0 %v3177
        %v3703 = vpop.f32.mrf.mxu0
        %v3704 = vadd.f32 0.0, %v3703
        %3705 = vmatmul.f32.gmra.mxu0 %v3178
        %v3706 = vpop.f32.mrf.mxu0
        %v3707 = vadd.f32 0.0, %v3706
        %3708 = vmatmul.f32.gmra.mxu0 %v3179
        %v3709 = vpop.f32.mrf.mxu0
        %v3710 = vadd.f32 0.0, %v3709
        %3711 = vmatmul.f32.gmra.mxu0 %v3180
        %v3712 = vpop.f32.mrf.mxu0
        %v3713 = vadd.f32 0.0, %v3712
        %3714 = vmatmul.f32.gmra.mxu0 %v3181
        %v3715 = vpop.f32.mrf.mxu0
        %v3716 = vadd.f32 0.0, %v3715
        %3717 = vmatmul.f32.gmra.mxu0 %v3182
        %v3718 = vpop.f32.mrf.mxu0
        %v3719 = vadd.f32 0.0, %v3718
        %3720 = vmatmul.f32.gmra.mxu0 %v3183
        %v3721 = vpop.f32.mrf.mxu0
        %v3722 = vadd.f32 0.0, %v3721
        %3723 = vmatmul.f32.gmra.mxu0 %v3184
        %v3724 = vpop.f32.mrf.mxu0
        %v3725 = vadd.f32 0.0, %v3724
        %3726 = vmatmul.f32.gmra.mxu0 %v3185
        %v3727 = vpop.f32.mrf.mxu0
        %v3728 = vadd.f32 0.0, %v3727
        %3729 = vmatmul.f32.gmra.mxu0 %v3186
        %v3730 = vpop.f32.mrf.mxu0
        %v3731 = vadd.f32 0.0, %v3730
        %3732 = vmatmul.f32.gmra.mxu0 %v3187
        %v3733 = vpop.f32.mrf.mxu0
        %v3734 = vadd.f32 0.0, %v3733
        %3735 = vmatmul.f32.gmra.mxu0 %v3188
        %v3736 = vpop.f32.mrf.mxu0
        %v3737 = vadd.f32 0.0, %v3736
        %3738 = vdwg.mxu0
        %3739 = vmatpush.msra.mxu0 %v635
        %3740 = vmatpush.msra.mxu0 %v634
        %3741 = vmatpush.msra.mxu0 %v633
        %3742 = vmatpush.msra.mxu0 %v632
        %3743 = vmatpush.msra.mxu0 %v631
        %3744 = vmatpush.msra.mxu0 %v630
        %3745 = vmatpush.msra.mxu0 %v629
        %3746 = vmatpush.msra.mxu0 %v628
        %3747 = vmatpush.msra.mxu0 %v627
        %3748 = vmatpush.msra.mxu0 %v626
        %3749 = vmatpush.msra.mxu0 %v625
        %3750 = vmatpush.msra.mxu0 %v624
        %3751 = vmatpush.msra.mxu0 %v623
        %3752 = vmatpush.msra.mxu0 %v622
        %3753 = vmatpush.msra.mxu0 %v621
        %3754 = vmatpush.msra.mxu0 %v620
        %3755 = vmatmul.f32.gmra.mxu0 %v3189
        %v3756 = vpop.f32.mrf.mxu0
        %v3757 = vadd.f32 0.0, %v3756
        %3758 = vmatmul.f32.gmra.mxu0 %v3190
        %v3759 = vpop.f32.mrf.mxu0
        %v3760 = vadd.f32 0.0, %v3759
        %3761 = vmatmul.f32.gmra.mxu0 %v3191
        %v3762 = vpop.f32.mrf.mxu0
        %v3763 = vadd.f32 0.0, %v3762
        %3764 = vmatmul.f32.gmra.mxu0 %v3192
        %v3765 = vpop.f32.mrf.mxu0
        %v3766 = vadd.f32 0.0, %v3765
        %3767 = vmatmul.f32.gmra.mxu0 %v3193
        %v3768 = vpop.f32.mrf.mxu0
        %v3769 = vadd.f32 0.0, %v3768
        %3770 = vmatmul.f32.gmra.mxu0 %v3194
        %v3771 = vpop.f32.mrf.mxu0
        %v3772 = vadd.f32 0.0, %v3771
        %3773 = vmatmul.f32.gmra.mxu0 %v3195
        %v3774 = vpop.f32.mrf.mxu0
        %v3775 = vadd.f32 0.0, %v3774
        %3776 = vmatmul.f32.gmra.mxu0 %v3196
        %v3777 = vpop.f32.mrf.mxu0
        %v3778 = vadd.f32 0.0, %v3777
        %3779 = vmatmul.f32.gmra.mxu0 %v3197
        %v3780 = vpop.f32.mrf.mxu0
        %v3781 = vadd.f32 0.0, %v3780
        %3782 = vmatmul.f32.gmra.mxu0 %v3198
        %v3783 = vpop.f32.mrf.mxu0
        %v3784 = vadd.f32 0.0, %v3783
        %3785 = vmatmul.f32.gmra.mxu0 %v3199
        %v3786 = vpop.f32.mrf.mxu0
        %v3787 = vadd.f32 0.0, %v3786
        %3788 = vmatmul.f32.gmra.mxu0 %v3200
        %v3789 = vpop.f32.mrf.mxu0
        %v3790 = vadd.f32 0.0, %v3789
        %3791 = vmatmul.f32.gmra.mxu0 %v3201
        %v3792 = vpop.f32.mrf.mxu0
        %v3793 = vadd.f32 0.0, %v3792
        %3794 = vmatmul.f32.gmra.mxu0 %v3202
        %v3795 = vpop.f32.mrf.mxu0
        %v3796 = vadd.f32 0.0, %v3795
        %3797 = vmatmul.f32.gmra.mxu0 %v3203
        %v3798 = vpop.f32.mrf.mxu0
        %v3799 = vadd.f32 0.0, %v3798
        %3800 = vmatmul.f32.gmra.mxu0 %v3204
        %v3801 = vpop.f32.mrf.mxu0
        %v3802 = vadd.f32 0.0, %v3801
        %3803 = vdwg.mxu0
        %3804 = vmatpush.msra.mxu0 %v651
        %3805 = vmatpush.msra.mxu0 %v650
        %3806 = vmatpush.msra.mxu0 %v649
        %3807 = vmatpush.msra.mxu0 %v648
        %3808 = vmatpush.msra.mxu0 %v647
        %3809 = vmatpush.msra.mxu0 %v646
        %3810 = vmatpush.msra.mxu0 %v645
        %3811 = vmatpush.msra.mxu0 %v644
        %3812 = vmatpush.msra.mxu0 %v643
        %3813 = vmatpush.msra.mxu0 %v642
        %3814 = vmatpush.msra.mxu0 %v641
        %3815 = vmatpush.msra.mxu0 %v640
        %3816 = vmatpush.msra.mxu0 %v639
        %3817 = vmatpush.msra.mxu0 %v638
        %3818 = vmatpush.msra.mxu0 %v637
        %3819 = vmatpush.msra.mxu0 %v636
        %3820 = vmatmul.f32.gmra.mxu0 %v3205
        %v3821 = vpop.f32.mrf.mxu0
        %v3822 = vadd.f32 0.0, %v3821
        %3823 = vmatmul.f32.gmra.mxu0 %v3206
        %v3824 = vpop.f32.mrf.mxu0
        %v3825 = vadd.f32 0.0, %v3824
        %3826 = vmatmul.f32.gmra.mxu0 %v3207
        %v3827 = vpop.f32.mrf.mxu0
        %v3828 = vadd.f32 0.0, %v3827
        %3829 = vmatmul.f32.gmra.mxu0 %v3208
        %v3830 = vpop.f32.mrf.mxu0
        %v3831 = vadd.f32 0.0, %v3830
        %3832 = vmatmul.f32.gmra.mxu0 %v3209
        %v3833 = vpop.f32.mrf.mxu0
        %v3834 = vadd.f32 0.0, %v3833
        %3835 = vmatmul.f32.gmra.mxu0 %v3210
        %v3836 = vpop.f32.mrf.mxu0
        %v3837 = vadd.f32 0.0, %v3836
        %3838 = vmatmul.f32.gmra.mxu0 %v3211
        %v3839 = vpop.f32.mrf.mxu0
        %v3840 = vadd.f32 0.0, %v3839
        %3841 = vmatmul.f32.gmra.mxu0 %v3212
        %v3842 = vpop.f32.mrf.mxu0
        %v3843 = vadd.f32 0.0, %v3842
        %3844 = vmatmul.f32.gmra.mxu0 %v3213
        %v3845 = vpop.f32.mrf.mxu0
        %v3846 = vadd.f32 0.0, %v3845
        %3847 = vmatmul.f32.gmra.mxu0 %v3214
        %v3848 = vpop.f32.mrf.mxu0
        %v3849 = vadd.f32 0.0, %v3848
        %3850 = vmatmul.f32.gmra.mxu0 %v3215
        %v3851 = vpop.f32.mrf.mxu0
        %v3852 = vadd.f32 0.0, %v3851
        %3853 = vmatmul.f32.gmra.mxu0 %v3216
        %v3854 = vpop.f32.mrf.mxu0
        %v3855 = vadd.f32 0.0, %v3854
        %3856 = vmatmul.f32.gmra.mxu0 %v3217
        %v3857 = vpop.f32.mrf.mxu0
        %v3858 = vadd.f32 0.0, %v3857
        %3859 = vmatmul.f32.gmra.mxu0 %v3218
        %v3860 = vpop.f32.mrf.mxu0
        %v3861 = vadd.f32 0.0, %v3860
        %3862 = vmatmul.f32.gmra.mxu0 %v3219
        %v3863 = vpop.f32.mrf.mxu0
        %v3864 = vadd.f32 0.0, %v3863
        %3865 = vmatmul.f32.gmra.mxu0 %v3220
        %v3866 = vpop.f32.mrf.mxu0
        %v3867 = vadd.f32 0.0, %v3866
        %3868 = vdwg.mxu0
        %3869 = vst.msk [vmem:[%s265] sm:$0xff] %vm652, %v3367
        %3870 = vst.msk [vmem:[%s265 + $0x8] sm:$0xff] %vm652, %v3370
        %3871 = vst.msk [vmem:[%s265 + $0x10] sm:$0xff] %vm652, %v3373
        %3872 = vst.msk [vmem:[%s265 + $0x18] sm:$0xff] %vm652, %v3376
        %3873 = vst.msk [vmem:[%s265 + $0x20] sm:$0xff] %vm652, %v3379
        %3874 = vst.msk [vmem:[%s265 + $0x28] sm:$0xff] %vm652, %v3382
        %3875 = vst.msk [vmem:[%s265 + $0x30] sm:$0xff] %vm652, %v3385
        %3876 = vst.msk [vmem:[%s265 + $0x38] sm:$0xff] %vm652, %v3388
        %3877 = vst.msk [vmem:[%s265 + $0x40] sm:$0xff] %vm652, %v3391
        %3878 = vst.msk [vmem:[%s265 + $0x48] sm:$0xff] %vm652, %v3394
        %3879 = vst.msk [vmem:[%s265 + $0x50] sm:$0xff] %vm652, %v3397
        %3880 = vst.msk [vmem:[%s265 + $0x58] sm:$0xff] %vm652, %v3400
        %3881 = vst.msk [vmem:[%s265 + $0x60] sm:$0xff] %vm652, %v3403
        %3882 = vst.msk [vmem:[%s265 + $0x68] sm:$0xff] %vm652, %v3406
        %3883 = vst.msk [vmem:[%s265 + $0x70] sm:$0xff] %vm652, %v3409
        %3884 = vst.msk [vmem:[%s265 + $0x78] sm:$0xff] %vm652, %v3412
        %3885 = vst.msk [vmem:[%s265 + $0x80] sm:$0xff] %vm652, %v3432
        %3886 = vst.msk [vmem:[%s265 + $0x88] sm:$0xff] %vm652, %v3435
        %3887 = vst.msk [vmem:[%s265 + $0x90] sm:$0xff] %vm652, %v3438
        %3888 = vst.msk [vmem:[%s265 + $0x98] sm:$0xff] %vm652, %v3441
        %3889 = vst.msk [vmem:[%s265 + $0xa0] sm:$0xff] %vm652, %v3444
        %3890 = vst.msk [vmem:[%s265 + $0xa8] sm:$0xff] %vm652, %v3447
        %3891 = vst.msk [vmem:[%s265 + $0xb0] sm:$0xff] %vm652, %v3450
        %3892 = vst.msk [vmem:[%s265 + $0xb8] sm:$0xff] %vm652, %v3453
        %3893 = vst.msk [vmem:[%s265 + $0xc0] sm:$0xff] %vm652, %v3456
        %3894 = vst.msk [vmem:[%s265 + $0xc8] sm:$0xff] %vm652, %v3459
        %3895 = vst.msk [vmem:[%s265 + $0xd0] sm:$0xff] %vm652, %v3462
        %3896 = vst.msk [vmem:[%s265 + $0xd8] sm:$0xff] %vm652, %v3465
        %3897 = vst.msk [vmem:[%s265 + $0xe0] sm:$0xff] %vm652, %v3468
        %3898 = vst.msk [vmem:[%s265 + $0xe8] sm:$0xff] %vm652, %v3471
        %3899 = vst.msk [vmem:[%s265 + $0xf0] sm:$0xff] %vm652, %v3474
        %3900 = vst.msk [vmem:[%s265 + $0xf8] sm:$0xff] %vm652, %v3477
        %3901 = vst.msk [vmem:[%s265 + $0x100] sm:$0xff] %vm652, %v3497
        %3902 = vst.msk [vmem:[%s265 + $0x108] sm:$0xff] %vm652, %v3500
        %3903 = vst.msk [vmem:[%s265 + $0x110] sm:$0xff] %vm652, %v3503
        %3904 = vst.msk [vmem:[%s265 + $0x118] sm:$0xff] %vm652, %v3506
        %3905 = vst.msk [vmem:[%s265 + $0x120] sm:$0xff] %vm652, %v3509
        %3906 = vst.msk [vmem:[%s265 + $0x128] sm:$0xff] %vm652, %v3512
        %3907 = vst.msk [vmem:[%s265 + $0x130] sm:$0xff] %vm652, %v3515
        %3908 = vst.msk [vmem:[%s265 + $0x138] sm:$0xff] %vm652, %v3518
        %3909 = vst.msk [vmem:[%s265 + $0x140] sm:$0xff] %vm652, %v3521
        %3910 = vst.msk [vmem:[%s265 + $0x148] sm:$0xff] %vm652, %v3524
        %3911 = vst.msk [vmem:[%s265 + $0x150] sm:$0xff] %vm652, %v3527
        %3912 = vst.msk [vmem:[%s265 + $0x158] sm:$0xff] %vm652, %v3530
        %3913 = vst.msk [vmem:[%s265 + $0x160] sm:$0xff] %vm652, %v3533
        %3914 = vst.msk [vmem:[%s265 + $0x168] sm:$0xff] %vm652, %v3536
        %3915 = vst.msk [vmem:[%s265 + $0x170] sm:$0xff] %vm652, %v3539
        %3916 = vst.msk [vmem:[%s265 + $0x178] sm:$0xff] %vm652, %v3542
        %3917 = vst.msk [vmem:[%s265 + $0x180] sm:$0xff] %vm652, %v3562
        %3918 = vst.msk [vmem:[%s265 + $0x188] sm:$0xff] %vm652, %v3565
        %3919 = vst.msk [vmem:[%s265 + $0x190] sm:$0xff] %vm652, %v3568
        %3920 = vst.msk [vmem:[%s265 + $0x198] sm:$0xff] %vm652, %v3571
        %3921 = vst.msk [vmem:[%s265 + $0x1a0] sm:$0xff] %vm652, %v3574
        %3922 = vst.msk [vmem:[%s265 + $0x1a8] sm:$0xff] %vm652, %v3577
        %3923 = vst.msk [vmem:[%s265 + $0x1b0] sm:$0xff] %vm652, %v3580
        %3924 = vst.msk [vmem:[%s265 + $0x1b8] sm:$0xff] %vm652, %v3583
        %3925 = vst.msk [vmem:[%s265 + $0x1c0] sm:$0xff] %vm652, %v3586
        %3926 = vst.msk [vmem:[%s265 + $0x1c8] sm:$0xff] %vm652, %v3589
        %3927 = vst.msk [vmem:[%s265 + $0x1d0] sm:$0xff] %vm652, %v3592
        %3928 = vst.msk [vmem:[%s265 + $0x1d8] sm:$0xff] %vm652, %v3595
        %3929 = vst.msk [vmem:[%s265 + $0x1e0] sm:$0xff] %vm652, %v3598
        %3930 = vst.msk [vmem:[%s265 + $0x1e8] sm:$0xff] %vm652, %v3601
        %3931 = vst.msk [vmem:[%s265 + $0x1f0] sm:$0xff] %vm652, %v3604
        %3932 = vst.msk [vmem:[%s265 + $0x1f8] sm:$0xff] %vm652, %v3607
        %3933 = vst.msk [vmem:[%s265 + $0x200] sm:$0xff] %vm652, %v3627
        %3934 = vst.msk [vmem:[%s265 + $0x208] sm:$0xff] %vm652, %v3630
        %3935 = vst.msk [vmem:[%s265 + $0x210] sm:$0xff] %vm652, %v3633
        %3936 = vst.msk [vmem:[%s265 + $0x218] sm:$0xff] %vm652, %v3636
        %3937 = vst.msk [vmem:[%s265 + $0x220] sm:$0xff] %vm652, %v3639
        %3938 = vst.msk [vmem:[%s265 + $0x228] sm:$0xff] %vm652, %v3642
        %3939 = vst.msk [vmem:[%s265 + $0x230] sm:$0xff] %vm652, %v3645
        %3940 = vst.msk [vmem:[%s265 + $0x238] sm:$0xff] %vm652, %v3648
        %3941 = vst.msk [vmem:[%s265 + $0x240] sm:$0xff] %vm652, %v3651
        %3942 = vst.msk [vmem:[%s265 + $0x248] sm:$0xff] %vm652, %v3654
        %3943 = vst.msk [vmem:[%s265 + $0x250] sm:$0xff] %vm652, %v3657
        %3944 = vst.msk [vmem:[%s265 + $0x258] sm:$0xff] %vm652, %v3660
        %3945 = vst.msk [vmem:[%s265 + $0x260] sm:$0xff] %vm652, %v3663
        %3946 = vst.msk [vmem:[%s265 + $0x268] sm:$0xff] %vm652, %v3666
        %3947 = vst.msk [vmem:[%s265 + $0x270] sm:$0xff] %vm652, %v3669
        %3948 = vst.msk [vmem:[%s265 + $0x278] sm:$0xff] %vm652, %v3672
        %3949 = vst.msk [vmem:[%s265 + $0x280] sm:$0xff] %vm652, %v3692
        %3950 = vst.msk [vmem:[%s265 + $0x288] sm:$0xff] %vm652, %v3695
        %3951 = vst.msk [vmem:[%s265 + $0x290] sm:$0xff] %vm652, %v3698
        %3952 = vst.msk [vmem:[%s265 + $0x298] sm:$0xff] %vm652, %v3701
        %3953 = vst.msk [vmem:[%s265 + $0x2a0] sm:$0xff] %vm652, %v3704
        %3954 = vst.msk [vmem:[%s265 + $0x2a8] sm:$0xff] %vm652, %v3707
        %3955 = vst.msk [vmem:[%s265 + $0x2b0] sm:$0xff] %vm652, %v3710
        %3956 = vst.msk [vmem:[%s265 + $0x2b8] sm:$0xff] %vm652, %v3713
        %3957 = vst.msk [vmem:[%s265 + $0x2c0] sm:$0xff] %vm652, %v3716
        %3958 = vst.msk [vmem:[%s265 + $0x2c8] sm:$0xff] %vm652, %v3719
        %3959 = vst.msk [vmem:[%s265 + $0x2d0] sm:$0xff] %vm652, %v3722
        %3960 = vst.msk [vmem:[%s265 + $0x2d8] sm:$0xff] %vm652, %v3725
        %3961 = vst.msk [vmem:[%s265 + $0x2e0] sm:$0xff] %vm652, %v3728
        %3962 = vst.msk [vmem:[%s265 + $0x2e8] sm:$0xff] %vm652, %v3731
        %3963 = vst.msk [vmem:[%s265 + $0x2f0] sm:$0xff] %vm652, %v3734
        %3964 = vst.msk [vmem:[%s265 + $0x2f8] sm:$0xff] %vm652, %v3737
        %3965 = vst.msk [vmem:[%s265 + $0x300] sm:$0xff] %vm652, %v3757
        %3966 = vst.msk [vmem:[%s265 + $0x308] sm:$0xff] %vm652, %v3760
        %3967 = vst.msk [vmem:[%s265 + $0x310] sm:$0xff] %vm652, %v3763
        %3968 = vst.msk [vmem:[%s265 + $0x318] sm:$0xff] %vm652, %v3766
        %3969 = vst.msk [vmem:[%s265 + $0x320] sm:$0xff] %vm652, %v3769
        %3970 = vst.msk [vmem:[%s265 + $0x328] sm:$0xff] %vm652, %v3772
        %3971 = vst.msk [vmem:[%s265 + $0x330] sm:$0xff] %vm652, %v3775
        %3972 = vst.msk [vmem:[%s265 + $0x338] sm:$0xff] %vm652, %v3778
        %3973 = vst.msk [vmem:[%s265 + $0x340] sm:$0xff] %vm652, %v3781
        %3974 = vst.msk [vmem:[%s265 + $0x348] sm:$0xff] %vm652, %v3784
        %3975 = vst.msk [vmem:[%s265 + $0x350] sm:$0xff] %vm652, %v3787
        %3976 = vst.msk [vmem:[%s265 + $0x358] sm:$0xff] %vm652, %v3790
        %3977 = vst.msk [vmem:[%s265 + $0x360] sm:$0xff] %vm652, %v3793
        %3978 = vst.msk [vmem:[%s265 + $0x368] sm:$0xff] %vm652, %v3796
        %3979 = vst.msk [vmem:[%s265 + $0x370] sm:$0xff] %vm652, %v3799
        %3980 = vst.msk [vmem:[%s265 + $0x378] sm:$0xff] %vm652, %v3802
        %3981 = vst.msk [vmem:[%s265 + $0x380] sm:$0xff] %vm652, %v3822
        %3982 = vst.msk [vmem:[%s265 + $0x388] sm:$0xff] %vm652, %v3825
        %3983 = vst.msk [vmem:[%s265 + $0x390] sm:$0xff] %vm652, %v3828
        %3984 = vst.msk [vmem:[%s265 + $0x398] sm:$0xff] %vm652, %v3831
        %3985 = vst.msk [vmem:[%s265 + $0x3a0] sm:$0xff] %vm652, %v3834
        %3986 = vst.msk [vmem:[%s265 + $0x3a8] sm:$0xff] %vm652, %v3837
        %3987 = vst.msk [vmem:[%s265 + $0x3b0] sm:$0xff] %vm652, %v3840
        %3988 = vst.msk [vmem:[%s265 + $0x3b8] sm:$0xff] %vm652, %v3843
        %3989 = vst.msk [vmem:[%s265 + $0x3c0] sm:$0xff] %vm652, %v3846
        %3990 = vst.msk [vmem:[%s265 + $0x3c8] sm:$0xff] %vm652, %v3849
        %3991 = vst.msk [vmem:[%s265 + $0x3d0] sm:$0xff] %vm652, %v3852
        %3992 = vst.msk [vmem:[%s265 + $0x3d8] sm:$0xff] %vm652, %v3855
        %3993 = vst.msk [vmem:[%s265 + $0x3e0] sm:$0xff] %vm652, %v3858
        %3994 = vst.msk [vmem:[%s265 + $0x3e8] sm:$0xff] %vm652, %v3861
        %3995 = vst.msk [vmem:[%s265 + $0x3f0] sm:$0xff] %vm652, %v3864
        %3996 = vst.msk [vmem:[%s265 + $0x3f8] sm:$0xff] %vm652, %v3867
        %s3997 = smul.u32 8, %s19
        %p3998 = scmp.lt.s32.totalorder %s3997, 15
        %s3999 = scalar_select %p3998, %s3997, 15
        %s4000 = smul.addr %s3999, 16
        %s4001 = smul.addr %s4000, 8
        %s4002 = scalar_lea.vmem %s3, %s4001
        %s4003 = sand.u32 %s131, 1
        %s4004 = scalar_lea.sflag [#allocation3], %s4003
        %s4005 = sand.u32 %s131, 1
        %s4006 = smul.addr %s4005, 1024
        %s4007 = scalar_lea.vmem [#allocation2], %s4006
        // Predicated region
        $region33: #{scaled_dot_product_attention.1} parent=31 // pred_check
          %p4008 = pneg %p115
        $region34: #{scaled_dot_product_attention.1} parent=31 // pred_check_branch
          %4010 = sbr.rel (%p4008) target = $region36
        $region35: #{scaled_dot_product_attention.1} parent=31 // pred_region
          %s4011 = smul.u32 8, %s19
        $region36: #{scaled_dot_product_attention.1} parent=31 // pred_fallthru
          _
        // Predicated region
        $region37: #{scaled_dot_product_attention.1} parent=31 // pred_check
          %p4012 = pneg %p141
        $region38: #{scaled_dot_product_attention.1} parent=31 // pred_check_branch
          %4014 = sbr.rel (%p4012) target = $region40
        $region39: #{scaled_dot_product_attention.1} parent=31 // pred_region
          %s4015 = smul.u32 8, %s19
          %4017 = vsyncadd %s4004, 0
          %s4018 = smul.addr %s4015, 16
          %s4019 = smul.addr %s4018, 8
          %s4020 = scalar_lea.hbm %s4, %s4019
          %s4021 = sshll.u32 %s4007, 4
          %s4022 = int_to_ptr.vmem [resolvable:$true] %s4021
          %s4023 = sshll.u32 %s4020, 4
          %s4024 = int_to_ptr.hbm [resolvable:$true] %s4023
          %4029 = dma.vmem_to_hbm [thread:$0]  %s4022, 16384, %s4024, %s4004, 128, 128, 8
        $region40: #{scaled_dot_product_attention.1} parent=31 // pred_fallthru
          _
      $region32: #{scaled_dot_product_attention.1} parent=5 // pred_fallthru
        _
      %p4030 = scmp.le.s32.totalorder 2, %s14
      // Predicated region
      $region41: #{scaled_dot_product_attention.1} parent=5 // pred_check
        %p4031 = pneg %p4030
      $region42: #{scaled_dot_product_attention.1} parent=5 // pred_check_branch
        %4033 = sbr.rel (%p4031) target = $region44
      $region43: #{scaled_dot_product_attention.1} parent=5 // pred_region
        %s4034 = ssub.s32 %s14, 2
        // Predicated region
        $region45: #{scaled_dot_product_attention.1} parent=43 // pred_check
          %p4035 = pneg %p121
        $region46: #{scaled_dot_product_attention.1} parent=43 // pred_check_branch
          %4037 = sbr.rel (%p4035) target = $region48
        $region47: #{scaled_dot_product_attention.1} parent=43 // pred_region
          %s4038 = smul.u32 8, %s20
          %p4039 = scmp.lt.s32.totalorder %s4038, 15
          %s4040 = scalar_select %p4039, %s4038, 15
          %s4041 = smul.addr %s4040, 16
          %s4042 = smul.addr %s4041, 8
          %s4043 = scalar_lea.vmem %s3, %s4042
        $region48: #{scaled_dot_product_attention.1} parent=43 // pred_fallthru
          _
        // Predicated region
        $region49: #{scaled_dot_product_attention.1} parent=43 // pred_check
          %p4044 = pneg %p147
        $region50: #{scaled_dot_product_attention.1} parent=43 // pred_check_branch
          %4046 = sbr.rel (%p4044) target = $region52
        $region51: #{scaled_dot_product_attention.1} parent=43 // pred_region
          %s4047 = sand.u32 %s132, 1
          %s4048 = scalar_lea.sflag [#allocation3], %s4047
          %s4049 = sand.u32 %s132, 1
          %s4050 = smul.addr %s4049, 1024
          %s4051 = scalar_lea.vmem [#allocation2], %s4050
          %4053 = dma.done %s4048, 16384
        $region52: #{scaled_dot_product_attention.1} parent=43 // pred_fallthru
          _
      $region44: #{scaled_dot_product_attention.1} parent=5 // pred_fallthru
        _
    $region6: #{scaled_dot_product_attention.1} parent=1 // loop_footer
      %s18 = sadd.s32 1, %s14
    $region7: #{scaled_dot_product_attention.1} parent=1 // loop_footer_branch
      %13 = sbr.rel target = $region3
    $region8: #{scaled_dot_product_attention.1} parent=1 // loop_exit
      _
    %4054 = vsyncpa [#allocation3], 1
    %s4055 = scalar_lea.sflag [#allocation3], 1
    %4056 = vsyncpa %s4055, 1

</llo_original>
